<compile_context>
chip_gen: v7x
topology: tpu7x:2x2x1
jax: 0.10.0
libtpu: 0.0.40
codegen_flags: <defaults>
</compile_context>

<pallas_src>
import functools
import math

import jax
import jax.numpy as jnp
import numpy as np
from jax.experimental import pallas as pl
from jax.experimental.pallas import tpu as pltpu

_NUM_GROUPS = 32
_MXU_DTYPE = jnp.bfloat16           # conv matmul input dtype (f32 accumulation)
# Keep well under v7x's 64 MiB physical VMEM; v5e/v6e could raise this and use
# larger row tiles, but 40 MiB is safe on every generation.
_VMEM_LIMIT = 40 * 1024 * 1024


# ---------------------------------------------------------------------------
# tile-size heuristic (per-step conv working set, excluding the weight slab)
# ---------------------------------------------------------------------------
def _pick_tile_h(H, W, cin, cout, budget_bytes=8 * 1024 * 1024):
    best = 1
    for th in range(1, H + 1):
        if H % th:
            continue
        p = (th + 2) * W
        work = (2 * th * W * cin * 4            # streamed x tile (double buffered)
                + p * cin * 2                   # bf16 activation slab
                + p * 3 * cin * 2               # bf16 dx-tap slab (K = 3*Cin)
                + th * W * cout * 4             # f32 accumulator
                + 2 * th * W * cout * 4)        # streamed output tile (double buffered)
        if work <= budget_bytes:
            best = th
    return best


# ---------------------------------------------------------------------------
# pass a: GroupNorm statistics reduction -> folded per-channel (scale, shift)
# ---------------------------------------------------------------------------
def _gn_stats_kernel(x_ref, g_ref, b_ref, m_ref, mt_ref, sb_ref, acc_ref, *, n, eps):
    t = pl.program_id(1)

    @pl.when(t == 0)
    def _():
        acc_ref[...] = jnp.zeros_like(acc_ref)

    x = x_ref[0].astype(jnp.float32)                                    # (tile, C)
    acc_ref[...] += jnp.concatenate(
        [jnp.sum(x, axis=0, keepdims=True),
         jnp.sum(x * x, axis=0, keepdims=True)], axis=0)                # (2, C)

    @pl.when(t == pl.num_programs(1) - 1)
    def _():
        s = acc_ref[0:1, :]                                             # (1, C)
        ss = acc_ref[1:2, :]
        gs = jnp.dot(s, m_ref[...], preferred_element_type=jnp.float32)   # (1, G)
        gss = jnp.dot(ss, m_ref[...], preferred_element_type=jnp.float32)
        mean = gs / n
        # TODO(synk): E[x^2]-E[x]^2 in f32 with a >=0 clamp; switch to a two-pass
        #             centered formulation if cancellation shows at huge HW*C/G.
        var = jnp.maximum(gss / n - mean * mean, 0.0)
        rstd = jax.lax.rsqrt(var + eps)
        mean_c = jnp.dot(mean, mt_ref[...], preferred_element_type=jnp.float32)
        rstd_c = jnp.dot(rstd, mt_ref[...], preferred_element_type=jnp.float32)
        scale = rstd_c * g_ref[...]                                     # (1, C)
        shift = b_ref[...] - mean_c * scale
        sb_ref[0] = jnp.concatenate([scale, shift], axis=0)             # (2, C)


def _gn_scale_shift(x_flat, gamma, beta, *, num_groups, eps, tile_rows, W):
    B, HW, C = x_flat.shape
    G = num_groups
    tile = tile_rows * W
    n_tiles = HW // tile
    g_of_c = jnp.arange(C) // (C // G)
    m = (g_of_c[:, None] == jnp.arange(G)[None, :]).astype(jnp.float32)
    return pl.pallas_call(
        functools.partial(_gn_stats_kernel, n=float(HW * (C // G)), eps=eps),
        out_shape=jax.ShapeDtypeStruct((B, 2, C), jnp.float32),
        grid=(B, n_tiles),
        in_specs=[
            pl.BlockSpec((1, tile, C), lambda b, t: (b, t, 0)),
            pl.BlockSpec((1, C), lambda b, t: (0, 0)),
            pl.BlockSpec((1, C), lambda b, t: (0, 0)),
            pl.BlockSpec((C, G), lambda b, t: (0, 0)),
            pl.BlockSpec((G, C), lambda b, t: (0, 0)),
        ],
        out_specs=pl.BlockSpec((1, 2, C), lambda b, t: (b, 0, 0)),
        scratch_shapes=[pltpu.VMEM((2, C), jnp.float32)],
        compiler_params=pltpu.CompilerParams(
            dimension_semantics=("parallel", "arbitrary"),
            vmem_limit_bytes=_VMEM_LIMIT),
    )(x_flat, gamma.reshape(1, C), beta.reshape(1, C), m, m.T)


# ---------------------------------------------------------------------------
# in-kernel helpers for the conv passes
# ---------------------------------------------------------------------------
def _act(v, scale, shift):
    """Folded GroupNorm affine + SiLU, f32."""
    y = v * scale + shift
    return y * jax.nn.sigmoid(y)


def _conv3x3_rows(a, wcat_ref, *, W, tile_h):
    """3x3 SAME conv of a GN+SiLU'd, vertically padded bf16 row-tile.

    a: ((tile_h+2)*W, Cin) bf16 -- image rows [r0-1 .. r0+tile_h] flattened.
    dx taps: masked single-row shifts (bf16), lane-concatenated to K = 3*Cin.
    dy taps: row-sliced views of that slab (no dy-shifted copies materialised).
    Returns the (tile_h*W, Cout) f32 accumulator for the tile interior rows.
    """
    P, cin = a.shape
    col = jax.lax.broadcasted_iota(jnp.int32, (P, 1), 0) % W
    zc = jnp.zeros((1, cin), a.dtype)
    a_left = jnp.where(col > 0, jnp.concatenate([zc, a[:P - 1]], axis=0), 0)
    a_right = jnp.where(col < W - 1, jnp.concatenate([a[1:], zc], axis=0), 0)
    cx = jnp.concatenate([a_left, a, a_right], axis=-1)                 # (P, 3*Cin) bf16
    n_out = tile_h * W
    acc = jnp.dot(cx[:n_out], wcat_ref[0], preferred_element_type=jnp.float32)
    acc = acc + jnp.dot(cx[W:W + n_out], wcat_ref[1], preferred_element_type=jnp.float32)
    acc = acc + jnp.dot(cx[2 * W:2 * W + n_out], wcat_ref[2], preferred_element_type=jnp.float32)
    return acc


def _padded_act_slab(body_ref, top_ref, bot_ref, sb_ref, *, cast_dtype):
    """GN-affine + SiLU on body + halo rows; zero the halos at image borders."""
    t = pl.program_id(1)
    sb = sb_ref[0]                                                      # (2, C)
    scale, shift = sb[0:1], sb[1:2]
    top_m = jnp.where(t > 0, 1.0, 0.0)
    bot_m = jnp.where(t < pl.num_programs(1) - 1, 1.0, 0.0)
    body = _act(body_ref[0].astype(jnp.float32), scale, shift)
    top = _act(top_ref[0].astype(jnp.float32), scale, shift) * top_m
    bot = _act(bot_ref[0].astype(jnp.float32), scale, shift) * bot_m
    return jnp.concatenate([top.astype(cast_dtype),
                            body.astype(cast_dtype),
                            bot.astype(cast_dtype)], axis=0)            # ((tile_h+2)*W, C)


# ---------------------------------------------------------------------------
# pass 1b: GN1 + SiLU -> conv1 + (bias + temb proj)
# ---------------------------------------------------------------------------
def _conv1_kernel(xb_ref, xt_ref, xd_ref, sb_ref, wcat_ref, bias_ref, h_ref, *, W, tile_h):
    a = _padded_act_slab(xb_ref, xt_ref, xd_ref, sb_ref, cast_dtype=_MXU_DTYPE)
    acc = _conv3x3_rows(a, wcat_ref, W=W, tile_h=tile_h)
    h_ref[0] = (acc + bias_ref[0]).astype(h_ref.dtype)


# ---------------------------------------------------------------------------
# pass 2b: GN2 + SiLU -> conv2 + bias -> + shortcut(x)   (dropout = identity, eval)
# ---------------------------------------------------------------------------
def _conv2_kernel(hb_ref, ht_ref, hd_ref, sb_ref, wcat_ref, cb_ref, x_ref, *rest,
                  W, tile_h, nin):
    if nin:
        wn_ref, o_ref = rest
    else:
        (o_ref,) = rest
    # TODO(synk): dropout between norm2/silu and conv2 is identity (eval mode only).
    a = _padded_act_slab(hb_ref, ht_ref, hd_ref, sb_ref, cast_dtype=_MXU_DTYPE)
    acc = _conv3x3_rows(a, wcat_ref, W=W, tile_h=tile_h)
    acc = acc + cb_ref[0]
    if nin:
        # 1x1 nin_shortcut: bf16 operands, f32 accumulation; bias folded into cb.
        sc = jnp.dot(x_ref[0].astype(_MXU_DTYPE), wn_ref[...],
                     preferred_element_type=jnp.float32)
        o_ref[0] = acc + sc
    else:
        # Cin == Cout: plain residual add, no identity matmul.
        o_ref[0] = acc + x_ref[0]


# ---------------------------------------------------------------------------
# forward wrapper (pure glue: layout, temb proj, pallas_call plumbing)
# ---------------------------------------------------------------------------
def resnet_block_forward(x_nchw, temb, p, num_groups=_NUM_GROUPS, eps=1e-6, tile_h=None):
    B, Cin, H, W = x_nchw.shape
    Cout = p["w1"].shape[-1]
    HW = H * W
    G = num_groups
    assert Cin % G == 0 and Cout % G == 0
    assert W % 8 == 0, "W must be a multiple of 8 (sublane alignment of row tiles)"

    if tile_h is None:
        tile_h = _pick_tile_h(H, W, Cin, Cout)
    assert H % tile_h == 0
    n_tiles = H // tile_h
    tileW = tile_h * W

    # NCHW -> flattened NHWC so channels sit on the 128-lane axis.
    x = jnp.transpose(x_nchw, (0, 2, 3, 1)).reshape(B, HW, Cin).astype(jnp.float32)

    # temb projection (tiny matmul) stays in XLA, fused with the conv1 bias into
    # one per-batch bias row fed to the conv1 kernel.
    t_emb = temb * jax.nn.sigmoid(temb)
    bias1 = (t_emb @ p["wt"] + p["bt"] + p["bc1"]).astype(jnp.float32).reshape(B, 1, Cout)

    # conv weights: (ky, kx, Cin, Cout) -> (ky, kx*Cin, Cout), bf16 for the MXU.
    # (At real channel counts Cout >= 256 the full-Cout N keeps v6e/v7x MXUs full.)
    wcat1 = p["w1"].reshape(3, 3 * Cin, Cout).astype(_MXU_DTYPE)
    wcat2 = p["w2"].reshape(3, 3 * Cout, Cout).astype(_MXU_DTYPE)

    conv_params = pltpu.CompilerParams(
        dimension_semantics=("parallel", "parallel"),
        vmem_limit_bytes=_VMEM_LIMIT)

    # halo row index maps (block size W along the flattened HW axis -> row index)
    halo_top = lambda b, t: (b, jnp.maximum(t * tile_h - 1, 0), 0)
    halo_bot = lambda b, t: (b, jnp.minimum((t + 1) * tile_h, H - 1), 0)

    # ---- pass 1a: GN1 statistics
    sb1 = _gn_scale_shift(x, p["g1"], p["b1"], num_groups=G, eps=eps,
                          tile_rows=tile_h, W=W)

    # ---- pass 1b: conv1 (row-tiled, h1 stored bf16)
    h1 = pl.pallas_call(
        functools.partial(_conv1_kernel, W=W, tile_h=tile_h),
        out_shape=jax.ShapeDtypeStruct((B, HW, Cout), _MXU_DTYPE),
        grid=(B, n_tiles),
        in_specs=[
            pl.BlockSpec((1, tileW, Cin), lambda b, t: (b, t, 0)),   # tile body
            pl.BlockSpec((1, W, Cin), halo_top),                     # 1-row top halo
            pl.BlockSpec((1, W, Cin), halo_bot),                     # 1-row bottom halo
            pl.BlockSpec((1, 2, Cin), lambda b, t: (b, 0, 0)),       # (scale, shift)
            pl.BlockSpec((3, 3 * Cin, Cout), lambda b, t: (0, 0, 0)),
            pl.BlockSpec((1, 1, Cout), lambda b, t: (b, 0, 0)),      # bias + temb proj
        ],
        out_specs=pl.BlockSpec((1, tileW, Cout), lambda b, t: (b, t, 0)),
        compiler_params=conv_params,
    )(x, x, x, sb1, wcat1, bias1)

    # ---- pass 2a: GN2 statistics on bf16 h1
    sb2 = _gn_scale_shift(h1, p["g2"], p["b2"], num_groups=G, eps=eps,
                          tile_rows=tile_h, W=W)

    # ---- pass 2b: conv2 + shortcut + residual
    nin = Cin != Cout
    if nin:
        # TODO(synk): use_conv_shortcut=True (3x3 conv shortcut) variant not wired.
        cb2 = (p["bc2"] + p["bn"]).reshape(1, 1, Cout).astype(jnp.float32)
        extra_in = [p["wn"].astype(_MXU_DTYPE)]
        extra_specs = [pl.BlockSpec((Cin, Cout), lambda b, t: (0, 0))]
    else:
        cb2 = p["bc2"].reshape(1, 1, Cout).astype(jnp.float32)
        extra_in = []
        extra_specs = []

    out = pl.pallas_call(
        functools.partial(_conv2_kernel, W=W, tile_h=tile_h, nin=nin),
        out_shape=jax.ShapeDtypeStruct((B, HW, Cout), jnp.float32),
        grid=(B, n_tiles),
        in_specs=[
            pl.BlockSpec((1, tileW, Cout), lambda b, t: (b, t, 0)),  # h1 tile body
            pl.BlockSpec((1, W, Cout), halo_top),
            pl.BlockSpec((1, W, Cout), halo_bot),
            pl.BlockSpec((1, 2, Cout), lambda b, t: (b, 0, 0)),
            pl.BlockSpec((3, 3 * Cout, Cout), lambda b, t: (0, 0, 0)),
            pl.BlockSpec((1, 1, Cout), lambda b, t: (0, 0, 0)),
            pl.BlockSpec((1, tileW, Cin), lambda b, t: (b, t, 0)),   # residual x tile
        ] + extra_specs,
        out_specs=pl.BlockSpec((1, tileW, Cout), lambda b, t: (b, t, 0)),
        compiler_params=conv_params,
    )(h1, h1, h1, sb2, wcat2, cb2, x, *extra_in)

    return jnp.transpose(out.reshape(B, H, W, Cout), (0, 3, 1, 2))


# ---------------------------------------------------------------------------
# pure-JAX f32 reference (verification only)
# ---------------------------------------------------------------------------
def _ref_forward(x_nchw, temb, p, num_groups=_NUM_GROUPS, eps=1e-6):
    def gn(x, gamma, beta):
        B, C, H, W = x.shape
        xg = x.reshape(B, num_groups, -1)
        mean = xg.mean(-1, keepdims=True)
        var = xg.var(-1, keepdims=True)
        xn = ((xg - mean) / jnp.sqrt(var + eps)).reshape(B, C, H, W)
        return xn * gamma[None, :, None, None] + beta[None, :, None, None]

    def silu(v):
        return v * jax.nn.sigmoid(v)

    def conv3(x, w, b):
        y = jax.lax.conv_general_dilated(
            jnp.transpose(x, (0, 2, 3, 1)), w, (1, 1), "SAME",
            dimension_numbers=("NHWC", "HWIO", "NHWC"))
        return jnp.transpose(y + b, (0, 3, 1, 2))

    h = conv3(silu(gn(x_nchw, p["g1"], p["b1"])), p["w1"], p["bc1"])
    tproj = silu(temb) @ p["wt"] + p["bt"]
    h = h + tproj[:, :, None, None]
    h = conv3(silu(gn(h, p["g2"], p["b2"])), p["w2"], p["bc2"])
    if "wn" in p:
        sc = jnp.einsum("bchw,co->bohw", x_nchw, p["wn"]) + p["bn"][None, :, None, None]
    else:
        sc = x_nchw
    return sc + h


# ---------------------------------------------------------------------------
if __name__ == "__main__":
    # Two small configs: Cin == Cout exercises the identity-shortcut fast path
    # (and lane-clean 128-channel taps); Cin != Cout exercises the fused
    # nin_shortcut matmul.  GroupNorm(32) requires C % 32 == 0.
    configs = [
        (2, 128, 128, 16, 16, 128),
        (2, 64, 128, 16, 16, 128),
    ]

    for (B, Cin, Cout, H, W, Tc) in configs:
        key = jax.random.PRNGKey(0)
        ks = jax.random.split(key, 16)

        def nrm(k, shape, scale):
            return (scale * jax.random.normal(k, shape)).astype(jnp.float32)

        params = {
            "g1": 1.0 + nrm(ks[0], (Cin,), 0.1),
            "b1": nrm(ks[1], (Cin,), 0.1),
            "w1": nrm(ks[2], (3, 3, Cin, Cout), 1.0 / math.sqrt(9 * Cin)),
            "bc1": nrm(ks[3], (Cout,), 0.02),
            "wt": nrm(ks[4], (Tc, Cout), 1.0 / math.sqrt(Tc)),
            "bt": nrm(ks[5], (Cout,), 0.02),
            "g2": 1.0 + nrm(ks[6], (Cout,), 0.1),
            "b2": nrm(ks[7], (Cout,), 0.1),
            "w2": nrm(ks[8], (3, 3, Cout, Cout), 1.0 / math.sqrt(9 * Cout)),
            "bc2": nrm(ks[9], (Cout,), 0.02),
        }
        if Cin != Cout:
            params["wn"] = nrm(ks[10], (Cin, Cout), 1.0 / math.sqrt(Cin))
            params["bn"] = nrm(ks[11], (Cout,), 0.02)

        x = jax.random.normal(ks[12], (B, Cin, H, W), jnp.float32)
        temb = jax.random.normal(ks[13], (B, Tc), jnp.float32)

        # tile_h=4 -> 4 row tiles per image (grid (B, 4)) so the first / interior /
        # last halo paths are all exercised even at this small H.
        fwd = jax.jit(functools.partial(resnet_block_forward, tile_h=4))
        out = jax.block_until_ready(fwd(x, temb, params))

        ref = _ref_forward(x, temb, params)
        assert out.shape == (B, Cout, H, W)
        # bf16 MXU inputs / bf16 h1 (f32 accumulation) vs. pure-f32 reference.
        np.testing.assert_allclose(np.asarray(out), np.asarray(ref), rtol=2e-2, atol=2e-2)

    print("KERNEL_OK")
</pallas_src>

<mosaic_0001>
module attributes {stable_mosaic.version = 11 : i64} {
  func.func @_gn_stats_kernel(%arg0: i32, %arg1: i32, %arg2: memref<1x64x128xf32, #tpu.memory_space<vmem>>, %arg3: memref<1x128xf32, #tpu.memory_space<vmem>>, %arg4: memref<1x128xf32, #tpu.memory_space<vmem>>, %arg5: memref<128x32xf32, #tpu.memory_space<vmem>>, %arg6: memref<32x128xf32, #tpu.memory_space<vmem>>, %arg7: memref<1x2x128xf32, #tpu.memory_space<vmem>>, %arg8: memref<2x128xf32, #tpu.memory_space<vmem>>) attributes {dimension_semantics = [#tpu.dimension_semantics<parallel>, #tpu.dimension_semantics<arbitrary>], iteration_bounds = array<i64: 2, 4>, scalar_prefetch = 0 : i64, scratch_operands = 1 : i64, tpu.core_type = #tpu.core_type<tc>, window_params = [{transform_indices = @transform_0, window_bounds = array<i64: 1, 64, 128>}, {pipeline_mode = #tpu.pipeline_mode<synchronous>, transform_indices = @transform_1, window_bounds = array<i64: 1, 128>}, {pipeline_mode = #tpu.pipeline_mode<synchronous>, transform_indices = @transform_2, window_bounds = array<i64: 1, 128>}, {pipeline_mode = #tpu.pipeline_mode<synchronous>, transform_indices = @transform_3, window_bounds = array<i64: 128, 32>}, {pipeline_mode = #tpu.pipeline_mode<synchronous>, transform_indices = @transform_4, window_bounds = array<i64: 32, 128>}, {transform_indices = @transform_5, window_bounds = array<i64: 1, 2, 128>}]} {
    %c0_i32 = arith.constant 0 : i32
    %0 = arith.cmpi eq, %arg1, %c0_i32 : i32
    %1 = arith.extui %0 : i1 to i32
    %c0_i32_0 = arith.constant 0 : i32
    %2 = arith.cmpi ne, %1, %c0_i32_0 : i32
    scf.if %2 {
      %cst_9 = arith.constant 0.000000e+00 : f32
      %17 = vector.broadcast %cst_9 : f32 to vector<2x128xf32>
      %c0_10 = arith.constant 0 : index
      %c0_11 = arith.constant 0 : index
      %18 = vector.load %arg8[%c0_10, %c0_11] : memref<2x128xf32, #tpu.memory_space<vmem>>, vector<2x128xf32>
      tpu.vector_store %arg8[%c0_10, %c0_11], %17 {strides = array<i32>} : memref<2x128xf32, #tpu.memory_space<vmem>>, vector<2x128xf32>,
    } else {
    }
    %c0 = arith.constant 0 : index
    %c0_1 = arith.constant 0 : index
    %c0_2 = arith.constant 0 : index
    %3 = vector.load %arg2[%c0, %c0_1, %c0_2] : memref<1x64x128xf32, #tpu.memory_space<vmem>>, vector<1x64x128xf32>
    %4 = vector.shape_cast %3 : vector<1x64x128xf32> to vector<64x128xf32>
    %c0_3 = arith.constant 0 : index
    %c0_4 = arith.constant 0 : index
    %5 = vector.load %arg8[%c0_3, %c0_4] : memref<2x128xf32, #tpu.memory_space<vmem>>, vector<2x128xf32>
    %cst = arith.constant dense<0.000000e+00> : vector<128xf32>
    %6 = vector.multi_reduction <add>, %4, %cst [0] : vector<64x128xf32> to vector<128xf32>
    %7 = vector.shape_cast %6 : vector<128xf32> to vector<1x128xf32>
    %8 = arith.mulf %4, %4 : vector<64x128xf32>
    %cst_5 = arith.constant dense<0.000000e+00> : vector<128xf32>
    %9 = vector.multi_reduction <add>, %8, %cst_5 [0] : vector<64x128xf32> to vector<128xf32>
    %10 = vector.shape_cast %9 : vector<128xf32> to vector<1x128xf32>
    %11 = tpu.concatenate %7, %10 in 0 : vector<1x128xf32>, vector<1x128xf32> -> vector<2x128xf32>
    %12 = arith.addf %5, %11 : vector<2x128xf32>
    %c0_6 = arith.constant 0 : index
    %c0_7 = arith.constant 0 : index
    %13 = vector.load %arg8[%c0_6, %c0_7] : memref<2x128xf32, #tpu.memory_space<vmem>>, vector<2x128xf32>
    tpu.vector_store %arg8[%c0_6, %c0_7], %12 {strides = array<i32>} : memref<2x128xf32, #tpu.memory_space<vmem>>, vector<2x128xf32>,
    %c3_i32 = arith.constant 3 : i32
    %14 = arith.cmpi eq, %arg1, %c3_i32 : i32
    %15 = arith.extui %14 : i1 to i32
    %c0_i32_8 = arith.constant 0 : i32
    %16 = arith.cmpi ne, %15, %c0_i32_8 : i32
    scf.if %16 {
      %c0_9 = arith.constant 0 : index
      %c0_10 = arith.constant 0 : index
      %17 = vector.load %arg8[%c0_9, %c0_10] : memref<2x128xf32, #tpu.memory_space<vmem>>, vector<1x128xf32>
      %c1 = arith.constant 1 : index
      %c0_11 = arith.constant 0 : index
      %18 = vector.load %arg8[%c1, %c0_11] : memref<2x128xf32, #tpu.memory_space<vmem>>, vector<1x128xf32>
      %c0_12 = arith.constant 0 : index
      %c0_13 = arith.constant 0 : index
      %19 = vector.load %arg5[%c0_12, %c0_13] : memref<128x32xf32, #tpu.memory_space<vmem>>, vector<128x32xf32>
      %cst_14 = arith.constant dense<0.000000e+00> : vector<1x32xf32>
      %20 = tpu.matmul %17, %19, %cst_14 {dimension_numbers = #tpu.dot_dimension_numbers<[1], [0], [0], [1], [0, 0, 1, 1], [], []>} : vector<1x128xf32>, vector<128x32xf32>, vector<1x32xf32> -> vector<1x32xf32>
      %c0_15 = arith.constant 0 : index
      %c0_16 = arith.constant 0 : index
      %21 = vector.load %arg5[%c0_15, %c0_16] : memref<128x32xf32, #tpu.memory_space<vmem>>, vector<128x32xf32>
      %cst_17 = arith.constant dense<0.000000e+00> : vector<1x32xf32>
      %22 = tpu.matmul %18, %21, %cst_17 {dimension_numbers = #tpu.dot_dimension_numbers<[1], [0], [0], [1], [0, 0, 1, 1], [], []>} : vector<1x128xf32>, vector<128x32xf32>, vector<1x32xf32> -> vector<1x32xf32>
      %cst_18 = arith.constant 1.024000e+03 : f32
      %23 = vector.broadcast %cst_18 : f32 to vector<1x32xf32>
      %24 = arith.divf %20, %23 : vector<1x32xf32>
      %cst_19 = arith.constant 1.024000e+03 : f32
      %25 = vector.broadcast %cst_19 : f32 to vector<1x32xf32>
      %26 = arith.divf %22, %25 : vector<1x32xf32>
      %27 = arith.mulf %24, %24 : vector<1x32xf32>
      %28 = arith.subf %26, %27 : vector<1x32xf32>
      %cst_20 = arith.constant 0.000000e+00 : f32
      %29 = vector.broadcast %cst_20 : f32 to vector<1x32xf32>
      %30 = arith.maximumf %28, %29 : vector<1x32xf32>
      %cst_21 = arith.constant 9.99999997E-7 : f32
      %31 = vector.broadcast %cst_21 : f32 to vector<1x32xf32>
      %32 = arith.addf %30, %31 : vector<1x32xf32>
      %33 = math.rsqrt %32 : vector<1x32xf32>
      %c0_22 = arith.constant 0 : index
      %c0_23 = arith.constant 0 : index
      %34 = vector.load %arg6[%c0_22, %c0_23] : memref<32x128xf32, #tpu.memory_space<vmem>>, vector<32x128xf32>
      %cst_24 = arith.constant dense<0.000000e+00> : vector<1x128xf32>
      %35 = tpu.matmul %24, %34, %cst_24 {dimension_numbers = #tpu.dot_dimension_numbers<[1], [0], [0], [1], [0, 0, 1, 1], [], []>} : vector<1x32xf32>, vector<32x128xf32>, vector<1x128xf32> -> vector<1x128xf32>
      %c0_25 = arith.constant 0 : index
      %c0_26 = arith.constant 0 : index
      %36 = vector.load %arg6[%c0_25, %c0_26] : memref<32x128xf32, #tpu.memory_space<vmem>>, vector<32x128xf32>
      %cst_27 = arith.constant dense<0.000000e+00> : vector<1x128xf32>
      %37 = tpu.matmul %33, %36, %cst_27 {dimension_numbers = #tpu.dot_dimension_numbers<[1], [0], [0], [1], [0, 0, 1, 1], [], []>} : vector<1x32xf32>, vector<32x128xf32>, vector<1x128xf32> -> vector<1x128xf32>
      %c0_28 = arith.constant 0 : index
      %c0_29 = arith.constant 0 : index
      %38 = vector.load %arg3[%c0_28, %c0_29] : memref<1x128xf32, #tpu.memory_space<vmem>>, vector<1x128xf32>
      %39 = arith.mulf %37, %38 : vector<1x128xf32>
      %c0_30 = arith.constant 0 : index
      %c0_31 = arith.constant 0 : index
      %40 = vector.load %arg4[%c0_30, %c0_31] : memref<1x128xf32, #tpu.memory_space<vmem>>, vector<1x128xf32>
      %41 = arith.mulf %35, %39 : vector<1x128xf32>
      %42 = arith.subf %40, %41 : vector<1x128xf32>
      %43 = tpu.concatenate %39, %42 in 0 : vector<1x128xf32>, vector<1x128xf32> -> vector<2x128xf32>
      %c0_32 = arith.constant 0 : index
      %c0_33 = arith.constant 0 : index
      %c0_34 = arith.constant 0 : index
      %44 = vector.load %arg7[%c0_32, %c0_33, %c0_34] : memref<1x2x128xf32, #tpu.memory_space<vmem>>, vector<1x2x128xf32>
      %45 = vector.shape_cast %44 : vector<1x2x128xf32> to vector<2x128xf32>
      %46 = vector.shape_cast %43 : vector<2x128xf32> to vector<1x2x128xf32>
      tpu.vector_store %arg7[%c0_32, %c0_33, %c0_34], %46 {strides = array<i32>} : memref<1x2x128xf32, #tpu.memory_space<vmem>>, vector<1x2x128xf32>,
    } else {
    }
    return
  }
  func.func @transform_0(%arg0: i32, %arg1: i32) -> (i32, i32, i32) {
    %c0_i32 = arith.constant 0 : i32
    %c0_i32_0 = arith.constant 0 : i32
    return %arg0, %arg1, %c0_i32 : i32, i32, i32
  }
  func.func @transform_1(%arg0: i32, %arg1: i32) -> (i32, i32) {
    %c0_i32 = arith.constant 0 : i32
    %c0_i32_0 = arith.constant 0 : i32
    %c0_i32_1 = arith.constant 0 : i32
    return %c0_i32, %c0_i32_0 : i32, i32
  }
  func.func @transform_2(%arg0: i32, %arg1: i32) -> (i32, i32) {
    %c0_i32 = arith.constant 0 : i32
    %c0_i32_0 = arith.constant 0 : i32
    %c0_i32_1 = arith.constant 0 : i32
    return %c0_i32, %c0_i32_0 : i32, i32
  }
  func.func @transform_3(%arg0: i32, %arg1: i32) -> (i32, i32) {
    %c0_i32 = arith.constant 0 : i32
    %c0_i32_0 = arith.constant 0 : i32
    %c0_i32_1 = arith.constant 0 : i32
    return %c0_i32, %c0_i32_0 : i32, i32
  }
  func.func @transform_4(%arg0: i32, %arg1: i32) -> (i32, i32) {
    %c0_i32 = arith.constant 0 : i32
    %c0_i32_0 = arith.constant 0 : i32
    %c0_i32_1 = arith.constant 0 : i32
    return %c0_i32, %c0_i32_0 : i32, i32
  }
  func.func @transform_5(%arg0: i32, %arg1: i32) -> (i32, i32, i32) {
    %c0_i32 = arith.constant 0 : i32
    %c0_i32_0 = arith.constant 0 : i32
    %c0_i32_1 = arith.constant 0 : i32
    return %arg0, %c0_i32, %c0_i32_0 : i32, i32, i32
  }
}

module attributes {stable_mosaic.version = 11 : i64} {
  func.func @_gn_stats_kernel(%arg0: i32, %arg1: i32, %arg2: memref<1x64x128xbf16, #tpu.memory_space<vmem>>, %arg3: memref<1x128xf32, #tpu.memory_space<vmem>>, %arg4: memref<1x128xf32, #tpu.memory_space<vmem>>, %arg5: memref<128x32xf32, #tpu.memory_space<vmem>>, %arg6: memref<32x128xf32, #tpu.memory_space<vmem>>, %arg7: memref<1x2x128xf32, #tpu.memory_space<vmem>>, %arg8: memref<2x128xf32, #tpu.memory_space<vmem>>) attributes {dimension_semantics = [#tpu.dimension_semantics<parallel>, #tpu.dimension_semantics<arbitrary>], iteration_bounds = array<i64: 2, 4>, scalar_prefetch = 0 : i64, scratch_operands = 1 : i64, tpu.core_type = #tpu.core_type<tc>, window_params = [{transform_indices = @transform_0, window_bounds = array<i64: 1, 64, 128>}, {pipeline_mode = #tpu.pipeline_mode<synchronous>, transform_indices = @transform_1, window_bounds = array<i64: 1, 128>}, {pipeline_mode = #tpu.pipeline_mode<synchronous>, transform_indices = @transform_2, window_bounds = array<i64: 1, 128>}, {pipeline_mode = #tpu.pipeline_mode<synchronous>, transform_indices = @transform_3, window_bounds = array<i64: 128, 32>}, {pipeline_mode = #tpu.pipeline_mode<synchronous>, transform_indices = @transform_4, window_bounds = array<i64: 32, 128>}, {transform_indices = @transform_5, window_bounds = array<i64: 1, 2, 128>}]} {
    %c0_i32 = arith.constant 0 : i32
    %0 = arith.cmpi eq, %arg1, %c0_i32 : i32
    %1 = arith.extui %0 : i1 to i32
    %c0_i32_0 = arith.constant 0 : i32
    %2 = arith.cmpi ne, %1, %c0_i32_0 : i32
    scf.if %2 {
      %cst_9 = arith.constant 0.000000e+00 : f32
      %18 = vector.broadcast %cst_9 : f32 to vector<2x128xf32>
      %c0_10 = arith.constant 0 : index
      %c0_11 = arith.constant 0 : index
      %19 = vector.load %arg8[%c0_10, %c0_11] : memref<2x128xf32, #tpu.memory_space<vmem>>, vector<2x128xf32>
      tpu.vector_store %arg8[%c0_10, %c0_11], %18 {strides = array<i32>} : memref<2x128xf32, #tpu.memory_space<vmem>>, vector<2x128xf32>,
    } else {
    }
    %c0 = arith.constant 0 : index
    %c0_1 = arith.constant 0 : index
    %c0_2 = arith.constant 0 : index
    %3 = vector.load %arg2[%c0, %c0_1, %c0_2] : memref<1x64x128xbf16, #tpu.memory_space<vmem>>, vector<1x64x128xbf16>
    %4 = vector.shape_cast %3 : vector<1x64x128xbf16> to vector<64x128xbf16>
    %5 = arith.extf %4 : vector<64x128xbf16> to vector<64x128xf32>
    %c0_3 = arith.constant 0 : index
    %c0_4 = arith.constant 0 : index
    %6 = vector.load %arg8[%c0_3, %c0_4] : memref<2x128xf32, #tpu.memory_space<vmem>>, vector<2x128xf32>
    %cst = arith.constant dense<0.000000e+00> : vector<128xf32>
    %7 = vector.multi_reduction <add>, %5, %cst [0] : vector<64x128xf32> to vector<128xf32>
    %8 = vector.shape_cast %7 : vector<128xf32> to vector<1x128xf32>
    %9 = arith.mulf %5, %5 : vector<64x128xf32>
    %cst_5 = arith.constant dense<0.000000e+00> : vector<128xf32>
    %10 = vector.multi_reduction <add>, %9, %cst_5 [0] : vector<64x128xf32> to vector<128xf32>
    %11 = vector.shape_cast %10 : vector<128xf32> to vector<1x128xf32>
    %12 = tpu.concatenate %8, %11 in 0 : vector<1x128xf32>, vector<1x128xf32> -> vector<2x128xf32>
    %13 = arith.addf %6, %12 : vector<2x128xf32>
    %c0_6 = arith.constant 0 : index
    %c0_7 = arith.constant 0 : index
    %14 = vector.load %arg8[%c0_6, %c0_7] : memref<2x128xf32, #tpu.memory_space<vmem>>, vector<2x128xf32>
    tpu.vector_store %arg8[%c0_6, %c0_7], %13 {strides = array<i32>} : memref<2x128xf32, #tpu.memory_space<vmem>>, vector<2x128xf32>,
    %c3_i32 = arith.constant 3 : i32
    %15 = arith.cmpi eq, %arg1, %c3_i32 : i32
    %16 = arith.extui %15 : i1 to i32
    %c0_i32_8 = arith.constant 0 : i32
    %17 = arith.cmpi ne, %16, %c0_i32_8 : i32
    scf.if %17 {
      %c0_9 = arith.constant 0 : index
      %c0_10 = arith.constant 0 : index
      %18 = vector.load %arg8[%c0_9, %c0_10] : memref<2x128xf32, #tpu.memory_space<vmem>>, vector<1x128xf32>
      %c1 = arith.constant 1 : index
      %c0_11 = arith.constant 0 : index
      %19 = vector.load %arg8[%c1, %c0_11] : memref<2x128xf32, #tpu.memory_space<vmem>>, vector<1x128xf32>
      %c0_12 = arith.constant 0 : index
      %c0_13 = arith.constant 0 : index
      %20 = vector.load %arg5[%c0_12, %c0_13] : memref<128x32xf32, #tpu.memory_space<vmem>>, vector<128x32xf32>
      %cst_14 = arith.constant dense<0.000000e+00> : vector<1x32xf32>
      %21 = tpu.matmul %18, %20, %cst_14 {dimension_numbers = #tpu.dot_dimension_numbers<[1], [0], [0], [1], [0, 0, 1, 1], [], []>} : vector<1x128xf32>, vector<128x32xf32>, vector<1x32xf32> -> vector<1x32xf32>
      %c0_15 = arith.constant 0 : index
      %c0_16 = arith.constant 0 : index
      %22 = vector.load %arg5[%c0_15, %c0_16] : memref<128x32xf32, #tpu.memory_space<vmem>>, vector<128x32xf32>
      %cst_17 = arith.constant dense<0.000000e+00> : vector<1x32xf32>
      %23 = tpu.matmul %19, %22, %cst_17 {dimension_numbers = #tpu.dot_dimension_numbers<[1], [0], [0], [1], [0, 0, 1, 1], [], []>} : vector<1x128xf32>, vector<128x32xf32>, vector<1x32xf32> -> vector<1x32xf32>
      %cst_18 = arith.constant 1.024000e+03 : f32
      %24 = vector.broadcast %cst_18 : f32 to vector<1x32xf32>
      %25 = arith.divf %21, %24 : vector<1x32xf32>
      %cst_19 = arith.constant 1.024000e+03 : f32
      %26 = vector.broadcast %cst_19 : f32 to vector<1x32xf32>
      %27 = arith.divf %23, %26 : vector<1x32xf32>
      %28 = arith.mulf %25, %25 : vector<1x32xf32>
      %29 = arith.subf %27, %28 : vector<1x32xf32>
      %cst_20 = arith.constant 0.000000e+00 : f32
      %30 = vector.broadcast %cst_20 : f32 to vector<1x32xf32>
      %31 = arith.maximumf %29, %30 : vector<1x32xf32>
      %cst_21 = arith.constant 9.99999997E-7 : f32
      %32 = vector.broadcast %cst_21 : f32 to vector<1x32xf32>
      %33 = arith.addf %31, %32 : vector<1x32xf32>
      %34 = math.rsqrt %33 : vector<1x32xf32>
      %c0_22 = arith.constant 0 : index
      %c0_23 = arith.constant 0 : index
      %35 = vector.load %arg6[%c0_22, %c0_23] : memref<32x128xf32, #tpu.memory_space<vmem>>, vector<32x128xf32>
      %cst_24 = arith.constant dense<0.000000e+00> : vector<1x128xf32>
      %36 = tpu.matmul %25, %35, %cst_24 {dimension_numbers = #tpu.dot_dimension_numbers<[1], [0], [0], [1], [0, 0, 1, 1], [], []>} : vector<1x32xf32>, vector<32x128xf32>, vector<1x128xf32> -> vector<1x128xf32>
      %c0_25 = arith.constant 0 : index
      %c0_26 = arith.constant 0 : index
      %37 = vector.load %arg6[%c0_25, %c0_26] : memref<32x128xf32, #tpu.memory_space<vmem>>, vector<32x128xf32>
      %cst_27 = arith.constant dense<0.000000e+00> : vector<1x128xf32>
      %38 = tpu.matmul %34, %37, %cst_27 {dimension_numbers = #tpu.dot_dimension_numbers<[1], [0], [0], [1], [0, 0, 1, 1], [], []>} : vector<1x32xf32>, vector<32x128xf32>, vector<1x128xf32> -> vector<1x128xf32>
      %c0_28 = arith.constant 0 : index
      %c0_29 = arith.constant 0 : index
      %39 = vector.load %arg3[%c0_28, %c0_29] : memref<1x128xf32, #tpu.memory_space<vmem>>, vector<1x128xf32>
      %40 = arith.mulf %38, %39 : vector<1x128xf32>
      %c0_30 = arith.constant 0 : index
      %c0_31 = arith.constant 0 : index
      %41 = vector.load %arg4[%c0_30, %c0_31] : memref<1x128xf32, #tpu.memory_space<vmem>>, vector<1x128xf32>
      %42 = arith.mulf %36, %40 : vector<1x128xf32>
      %43 = arith.subf %41, %42 : vector<1x128xf32>
      %44 = tpu.concatenate %40, %43 in 0 : vector<1x128xf32>, vector<1x128xf32> -> vector<2x128xf32>
      %c0_32 = arith.constant 0 : index
      %c0_33 = arith.constant 0 : index
      %c0_34 = arith.constant 0 : index
      %45 = vector.load %arg7[%c0_32, %c0_33, %c0_34] : memref<1x2x128xf32, #tpu.memory_space<vmem>>, vector<1x2x128xf32>
      %46 = vector.shape_cast %45 : vector<1x2x128xf32> to vector<2x128xf32>
      %47 = vector.shape_cast %44 : vector<2x128xf32> to vector<1x2x128xf32>
      tpu.vector_store %arg7[%c0_32, %c0_33, %c0_34], %47 {strides = array<i32>} : memref<1x2x128xf32, #tpu.memory_space<vmem>>, vector<1x2x128xf32>,
    } else {
    }
    return
  }
  func.func @transform_0(%arg0: i32, %arg1: i32) -> (i32, i32, i32) {
    %c0_i32 = arith.constant 0 : i32
    %c0_i32_0 = arith.constant 0 : i32
    return %arg0, %arg1, %c0_i32 : i32, i32, i32
  }
  func.func @transform_1(%arg0: i32, %arg1: i32) -> (i32, i32) {
    %c0_i32 = arith.constant 0 : i32
    %c0_i32_0 = arith.constant 0 : i32
    %c0_i32_1 = arith.constant 0 : i32
    return %c0_i32, %c0_i32_0 : i32, i32
  }
  func.func @transform_2(%arg0: i32, %arg1: i32) -> (i32, i32) {
    %c0_i32 = arith.constant 0 : i32
    %c0_i32_0 = arith.constant 0 : i32
    %c0_i32_1 = arith.constant 0 : i32
    return %c0_i32, %c0_i32_0 : i32, i32
  }
  func.func @transform_3(%arg0: i32, %arg1: i32) -> (i32, i32) {
    %c0_i32 = arith.constant 0 : i32
    %c0_i32_0 = arith.constant 0 : i32
    %c0_i32_1 = arith.constant 0 : i32
    return %c0_i32, %c0_i32_0 : i32, i32
  }
  func.func @transform_4(%arg0: i32, %arg1: i32) -> (i32, i32) {
    %c0_i32 = arith.constant 0 : i32
    %c0_i32_0 = arith.constant 0 : i32
    %c0_i32_1 = arith.constant 0 : i32
    return %c0_i32, %c0_i32_0 : i32, i32
  }
  func.func @transform_5(%arg0: i32, %arg1: i32) -> (i32, i32, i32) {
    %c0_i32 = arith.constant 0 : i32
    %c0_i32_0 = arith.constant 0 : i32
    %c0_i32_1 = arith.constant 0 : i32
    return %arg0, %c0_i32, %c0_i32_0 : i32, i32, i32
  }
}

module attributes {stable_mosaic.version = 11 : i64} {
  func.func @_conv1_kernel(%arg0: i32, %arg1: i32, %arg2: memref<1x64x128xf32, #tpu.memory_space<vmem>>, %arg3: memref<1x16x128xf32, #tpu.memory_space<vmem>>, %arg4: memref<1x16x128xf32, #tpu.memory_space<vmem>>, %arg5: memref<1x2x128xf32, #tpu.memory_space<vmem>>, %arg6: memref<3x384x128xbf16, #tpu.memory_space<vmem>>, %arg7: memref<1x1x128xf32, #tpu.memory_space<vmem>>, %arg8: memref<1x64x128xbf16, #tpu.memory_space<vmem>>) attributes {dimension_semantics = [#tpu.dimension_semantics<parallel>, #tpu.dimension_semantics<parallel>], iteration_bounds = array<i64: 2, 4>, scalar_prefetch = 0 : i64, scratch_operands = 0 : i64, tpu.core_type = #tpu.core_type<tc>, window_params = [{transform_indices = @transform_0, window_bounds = array<i64: 1, 64, 128>}, {transform_indices = @transform_1, window_bounds = array<i64: 1, 16, 128>}, {transform_indices = @transform_2, window_bounds = array<i64: 1, 16, 128>}, {transform_indices = @transform_3, window_bounds = array<i64: 1, 2, 128>}, {pipeline_mode = #tpu.pipeline_mode<synchronous>, transform_indices = @transform_4, window_bounds = array<i64: 3, 384, 128>}, {transform_indices = @transform_5, window_bounds = array<i64: 1, 1, 128>}, {transform_indices = @transform_6, window_bounds = array<i64: 1, 64, 128>}]} {
    %c0 = arith.constant 0 : index
    %c0_0 = arith.constant 0 : index
    %c0_1 = arith.constant 0 : index
    %0 = vector.load %arg5[%c0, %c0_0, %c0_1] : memref<1x2x128xf32, #tpu.memory_space<vmem>>, vector<1x2x128xf32>
    %1 = vector.shape_cast %0 : vector<1x2x128xf32> to vector<2x128xf32>
    %2 = vector.extract_strided_slice %1 {offsets = [0, 0], sizes = [1, 128], strides = [1, 1]} : vector<2x128xf32> to vector<1x128xf32>
    %3 = vector.extract_strided_slice %1 {offsets = [1, 0], sizes = [1, 128], strides = [1, 1]} : vector<2x128xf32> to vector<1x128xf32>
    %c0_i32 = arith.constant 0 : i32
    %4 = arith.cmpi sgt, %arg1, %c0_i32 : i32
    %cst = arith.constant 1.000000e+00 : f32
    %cst_2 = arith.constant 0.000000e+00 : f32
    %5 = arith.select %4, %cst, %cst_2 : f32
    %c3_i32 = arith.constant 3 : i32
    %6 = arith.cmpi slt, %arg1, %c3_i32 : i32
    %cst_3 = arith.constant 1.000000e+00 : f32
    %cst_4 = arith.constant 0.000000e+00 : f32
    %7 = arith.select %6, %cst_3, %cst_4 : f32
    %c0_5 = arith.constant 0 : index
    %c0_6 = arith.constant 0 : index
    %c0_7 = arith.constant 0 : index
    %8 = vector.load %arg2[%c0_5, %c0_6, %c0_7] : memref<1x64x128xf32, #tpu.memory_space<vmem>>, vector<1x64x128xf32>
    %9 = vector.shape_cast %8 : vector<1x64x128xf32> to vector<64x128xf32>
    %10 = vector.broadcast %2 : vector<1x128xf32> to vector<64x128xf32>
    %11 = arith.mulf %9, %10 : vector<64x128xf32>
    %12 = vector.broadcast %3 : vector<1x128xf32> to vector<64x128xf32>
    %13 = arith.addf %11, %12 : vector<64x128xf32>
    %14 = arith.negf %13 : vector<64x128xf32>
    %15 = math.exp %14 : vector<64x128xf32>
    %cst_8 = arith.constant 1.000000e+00 : f32
    %16 = vector.broadcast %cst_8 : f32 to vector<64x128xf32>
    %17 = arith.addf %16, %15 : vector<64x128xf32>
    %18 = arith.divf %16, %17 : vector<64x128xf32>
    %19 = arith.mulf %13, %18 : vector<64x128xf32>
    %c0_9 = arith.constant 0 : index
    %c0_10 = arith.constant 0 : index
    %c0_11 = arith.constant 0 : index
    %20 = vector.load %arg3[%c0_9, %c0_10, %c0_11] : memref<1x16x128xf32, #tpu.memory_space<vmem>>, vector<1x16x128xf32>
    %21 = vector.shape_cast %20 : vector<1x16x128xf32> to vector<16x128xf32>
    %22 = vector.broadcast %2 : vector<1x128xf32> to vector<16x128xf32>
    %23 = arith.mulf %21, %22 : vector<16x128xf32>
    %24 = vector.broadcast %3 : vector<1x128xf32> to vector<16x128xf32>
    %25 = arith.addf %23, %24 : vector<16x128xf32>
    %26 = arith.negf %25 : vector<16x128xf32>
    %27 = math.exp %26 : vector<16x128xf32>
    %cst_12 = arith.constant 1.000000e+00 : f32
    %28 = vector.broadcast %cst_12 : f32 to vector<16x128xf32>
    %29 = arith.addf %28, %27 : vector<16x128xf32>
    %30 = arith.divf %28, %29 : vector<16x128xf32>
    %31 = arith.mulf %25, %30 : vector<16x128xf32>
    %32 = vector.broadcast %5 : f32 to vector<16x128xf32>
    %33 = arith.mulf %31, %32 : vector<16x128xf32>
    %c0_13 = arith.constant 0 : index
    %c0_14 = arith.constant 0 : index
    %c0_15 = arith.constant 0 : index
    %34 = vector.load %arg4[%c0_13, %c0_14, %c0_15] : memref<1x16x128xf32, #tpu.memory_space<vmem>>, vector<1x16x128xf32>
    %35 = vector.shape_cast %34 : vector<1x16x128xf32> to vector<16x128xf32>
    %36 = vector.broadcast %2 : vector<1x128xf32> to vector<16x128xf32>
    %37 = arith.mulf %35, %36 : vector<16x128xf32>
    %38 = vector.broadcast %3 : vector<1x128xf32> to vector<16x128xf32>
    %39 = arith.addf %37, %38 : vector<16x128xf32>
    %40 = arith.negf %39 : vector<16x128xf32>
    %41 = math.exp %40 : vector<16x128xf32>
    %cst_16 = arith.constant 1.000000e+00 : f32
    %42 = vector.broadcast %cst_16 : f32 to vector<16x128xf32>
    %43 = arith.addf %42, %41 : vector<16x128xf32>
    %44 = arith.divf %42, %43 : vector<16x128xf32>
    %45 = arith.mulf %39, %44 : vector<16x128xf32>
    %46 = vector.broadcast %7 : f32 to vector<16x128xf32>
    %47 = arith.mulf %45, %46 : vector<16x128xf32>
    %48 = arith.truncf %33 : vector<16x128xf32> to vector<16x128xbf16>
    %49 = arith.truncf %19 : vector<64x128xf32> to vector<64x128xbf16>
    %50 = arith.truncf %47 : vector<16x128xf32> to vector<16x128xbf16>
    %51 = tpu.concatenate %48, %49, %50 in 0 : vector<16x128xbf16>, vector<64x128xbf16>, vector<16x128xbf16> -> vector<96x128xbf16>
    %52 = tpu.iota {dimensions = array<i32: 0>} : vector<96x1xi32>
    %c16_i32 = arith.constant 16 : i32
    %c0_i32_17 = arith.constant 0 : i32
    %53 = arith.cmpi eq, %c16_i32, %c0_i32_17 : i32
    %c1_i32 = arith.constant 1 : i32
    %54 = arith.select %53, %c1_i32, %c16_i32 : i32
    %55 = vector.broadcast %54 : i32 to vector<96x1xi32>
    %56 = arith.remsi %52, %55 : vector<96x1xi32>
    %c0_i32_18 = arith.constant 0 : i32
    %57 = vector.broadcast %c0_i32_18 : i32 to vector<96x1xi32>
    %58 = arith.cmpi ne, %56, %57 : vector<96x1xi32>
    %c0_i32_19 = arith.constant 0 : i32
    %59 = vector.broadcast %c0_i32_19 : i32 to vector<96x1xi32>
    %60 = arith.cmpi slt, %56, %59 : vector<96x1xi32>
    %c0_i32_20 = arith.constant 0 : i32
    %61 = arith.cmpi slt, %54, %c0_i32_20 : i32
    %62 = vector.broadcast %61 : i1 to vector<96x1xi1>
    %63 = vector.broadcast %62 : vector<96x1xi1> to vector<96x1xi1>
    %64 = arith.xori %60, %63 : vector<96x1xi1>
    %65 = arith.andi %64, %58 : vector<96x1xi1>
    %66 = vector.broadcast %54 : i32 to vector<96x1xi32>
    %67 = arith.addi %56, %66 : vector<96x1xi32>
    %68 = arith.select %65, %67, %56 : vector<96x1xi1>, vector<96x1xi32>
    %cst_21 = arith.constant 0.000000e+00 : bf16
    %69 = vector.broadcast %cst_21 : bf16 to vector<1x128xbf16>
    %c0_i32_22 = arith.constant 0 : i32
    %70 = vector.broadcast %c0_i32_22 : i32 to vector<96x1xi32>
    %71 = arith.cmpi sgt, %68, %70 : vector<96x1xi32>
    %72 = vector.extract_strided_slice %51 {offsets = [0, 0], sizes = [95, 128], strides = [1, 1]} : vector<96x128xbf16> to vector<95x128xbf16>
    %73 = tpu.concatenate %69, %72 in 0 : vector<1x128xbf16>, vector<95x128xbf16> -> vector<96x128xbf16>
    %c0_i32_23 = arith.constant 0 : i32
    %74 = arith.sitofp %c0_i32_23 : i32 to bf16
    %75 = vector.shape_cast %71 : vector<96x1xi1> to vector<96x1xi1>
    %76 = vector.broadcast %75 : vector<96x1xi1> to vector<96x128xi1>
    %77 = vector.broadcast %74 : bf16 to vector<96x128xbf16>
    %78 = arith.select %76, %73, %77 : vector<96x128xi1>, vector<96x128xbf16>
    %c15_i32 = arith.constant 15 : i32
    %79 = vector.broadcast %c15_i32 : i32 to vector<96x1xi32>
    %80 = arith.cmpi slt, %68, %79 : vector<96x1xi32>
    %81 = vector.extract_strided_slice %51 {offsets = [1, 0], sizes = [95, 128], strides = [1, 1]} : vector<96x128xbf16> to vector<95x128xbf16>
    %82 = tpu.concatenate %81, %69 in 0 : vector<95x128xbf16>, vector<1x128xbf16> -> vector<96x128xbf16>
    %c0_i32_24 = arith.constant 0 : i32
    %83 = arith.sitofp %c0_i32_24 : i32 to bf16
    %84 = vector.shape_cast %80 : vector<96x1xi1> to vector<96x1xi1>
    %85 = vector.broadcast %84 : vector<96x1xi1> to vector<96x128xi1>
    %86 = vector.broadcast %83 : bf16 to vector<96x128xbf16>
    %87 = arith.select %85, %82, %86 : vector<96x128xi1>, vector<96x128xbf16>
    %88 = tpu.concatenate %78, %51, %87 in 1 : vector<96x128xbf16>, vector<96x128xbf16>, vector<96x128xbf16> -> vector<96x384xbf16>
    %89 = vector.extract_strided_slice %88 {offsets = [0, 0], sizes = [64, 384], strides = [1, 1]} : vector<96x384xbf16> to vector<64x384xbf16>
    %c0_25 = arith.constant 0 : index
    %c0_26 = arith.constant 0 : index
    %c0_27 = arith.constant 0 : index
    %90 = vector.load %arg6[%c0_25, %c0_26, %c0_27] : memref<3x384x128xbf16, #tpu.memory_space<vmem>>, vector<1x384x128xbf16>
    %91 = vector.shape_cast %90 : vector<1x384x128xbf16> to vector<384x128xbf16>
    %cst_28 = arith.constant dense<0.000000e+00> : vector<64x128xf32>
    %92 = tpu.matmul %89, %91, %cst_28 {dimension_numbers = #tpu.dot_dimension_numbers<[1], [0], [0], [1], [0, 0, 1, 1], [], []>} : vector<64x384xbf16>, vector<384x128xbf16>, vector<64x128xf32> -> vector<64x128xf32>
    %93 = vector.extract_strided_slice %88 {offsets = [16, 0], sizes = [64, 384], strides = [1, 1]} : vector<96x384xbf16> to vector<64x384xbf16>
    %c1 = arith.constant 1 : index
    %c0_29 = arith.constant 0 : index
    %c0_30 = arith.constant 0 : index
    %94 = vector.load %arg6[%c1, %c0_29, %c0_30] : memref<3x384x128xbf16, #tpu.memory_space<vmem>>, vector<1x384x128xbf16>
    %95 = vector.shape_cast %94 : vector<1x384x128xbf16> to vector<384x128xbf16>
    %cst_31 = arith.constant dense<0.000000e+00> : vector<64x128xf32>
    %96 = tpu.matmul %93, %95, %cst_31 {dimension_numbers = #tpu.dot_dimension_numbers<[1], [0], [0], [1], [0, 0, 1, 1], [], []>} : vector<64x384xbf16>, vector<384x128xbf16>, vector<64x128xf32> -> vector<64x128xf32>
    %97 = arith.addf %92, %96 : vector<64x128xf32>
    %98 = vector.extract_strided_slice %88 {offsets = [32, 0], sizes = [64, 384], strides = [1, 1]} : vector<96x384xbf16> to vector<64x384xbf16>
    %c2 = arith.constant 2 : index
    %c0_32 = arith.constant 0 : index
    %c0_33 = arith.constant 0 : index
    %99 = vector.load %arg6[%c2, %c0_32, %c0_33] : memref<3x384x128xbf16, #tpu.memory_space<vmem>>, vector<1x384x128xbf16>
    %100 = vector.shape_cast %99 : vector<1x384x128xbf16> to vector<384x128xbf16>
    %cst_34 = arith.constant dense<0.000000e+00> : vector<64x128xf32>
    %101 = tpu.matmul %98, %100, %cst_34 {dimension_numbers = #tpu.dot_dimension_numbers<[1], [0], [0], [1], [0, 0, 1, 1], [], []>} : vector<64x384xbf16>, vector<384x128xbf16>, vector<64x128xf32> -> vector<64x128xf32>
    %102 = arith.addf %97, %101 : vector<64x128xf32>
    %c0_35 = arith.constant 0 : index
    %c0_36 = arith.constant 0 : index
    %c0_37 = arith.constant 0 : index
    %103 = vector.load %arg7[%c0_35, %c0_36, %c0_37] : memref<1x1x128xf32, #tpu.memory_space<vmem>>, vector<1x1x128xf32>
    %104 = vector.shape_cast %103 : vector<1x1x128xf32> to vector<1x128xf32>
    %105 = vector.broadcast %104 : vector<1x128xf32> to vector<64x128xf32>
    %106 = arith.addf %102, %105 : vector<64x128xf32>
    %107 = arith.truncf %106 : vector<64x128xf32> to vector<64x128xbf16>
    %c0_38 = arith.constant 0 : index
    %c0_39 = arith.constant 0 : index
    %c0_40 = arith.constant 0 : index
    %108 = vector.load %arg8[%c0_38, %c0_39, %c0_40] : memref<1x64x128xbf16, #tpu.memory_space<vmem>>, vector<1x64x128xbf16>
    %109 = vector.shape_cast %108 : vector<1x64x128xbf16> to vector<64x128xbf16>
    %110 = vector.shape_cast %107 : vector<64x128xbf16> to vector<1x64x128xbf16>
    tpu.vector_store %arg8[%c0_38, %c0_39, %c0_40], %110 {strides = array<i32>} : memref<1x64x128xbf16, #tpu.memory_space<vmem>>, vector<1x64x128xbf16>,
    return
  }
  func.func @transform_0(%arg0: i32, %arg1: i32) -> (i32, i32, i32) {
    %c0_i32 = arith.constant 0 : i32
    %c0_i32_0 = arith.constant 0 : i32
    return %arg0, %arg1, %c0_i32 : i32, i32, i32
  }
  func.func @transform_1(%arg0: i32, %arg1: i32) -> (i32, i32, i32) {
    %c4_i32 = arith.constant 4 : i32
    %0 = arith.muli %arg1, %c4_i32 : i32
    %c1_i32 = arith.constant 1 : i32
    %1 = arith.subi %0, %c1_i32 : i32
    %c0_i32 = arith.constant 0 : i32
    %2 = arith.maxsi %1, %c0_i32 : i32
    %c0_i32_0 = arith.constant 0 : i32
    %c0_i32_1 = arith.constant 0 : i32
    return %arg0, %2, %c0_i32_0 : i32, i32, i32
  }
  func.func @transform_2(%arg0: i32, %arg1: i32) -> (i32, i32, i32) {
    %c1_i32 = arith.constant 1 : i32
    %0 = arith.addi %arg1, %c1_i32 : i32
    %c4_i32 = arith.constant 4 : i32
    %1 = arith.muli %0, %c4_i32 : i32
    %c15_i32 = arith.constant 15 : i32
    %2 = arith.minsi %1, %c15_i32 : i32
    %c0_i32 = arith.constant 0 : i32
    %c0_i32_0 = arith.constant 0 : i32
    return %arg0, %2, %c0_i32 : i32, i32, i32
  }
  func.func @transform_3(%arg0: i32, %arg1: i32) -> (i32, i32, i32) {
    %c0_i32 = arith.constant 0 : i32
    %c0_i32_0 = arith.constant 0 : i32
    %c0_i32_1 = arith.constant 0 : i32
    return %arg0, %c0_i32, %c0_i32_0 : i32, i32, i32
  }
  func.func @transform_4(%arg0: i32, %arg1: i32) -> (i32, i32, i32) {
    %c0_i32 = arith.constant 0 : i32
    %c0_i32_0 = arith.constant 0 : i32
    %c0_i32_1 = arith.constant 0 : i32
    %c0_i32_2 = arith.constant 0 : i32
    return %c0_i32, %c0_i32_0, %c0_i32_1 : i32, i32, i32
  }
  func.func @transform_5(%arg0: i32, %arg1: i32) -> (i32, i32, i32) {
    %c0_i32 = arith.constant 0 : i32
    %c0_i32_0 = arith.constant 0 : i32
    %c0_i32_1 = arith.constant 0 : i32
    return %arg0, %c0_i32, %c0_i32_0 : i32, i32, i32
  }
  func.func @transform_6(%arg0: i32, %arg1: i32) -> (i32, i32, i32) {
    %c0_i32 = arith.constant 0 : i32
    %c0_i32_0 = arith.constant 0 : i32
    return %arg0, %arg1, %c0_i32 : i32, i32, i32
  }
}

module attributes {stable_mosaic.version = 11 : i64} {
  func.func @_conv2_kernel(%arg0: i32, %arg1: i32, %arg2: memref<1x64x128xbf16, #tpu.memory_space<vmem>>, %arg3: memref<1x16x128xbf16, #tpu.memory_space<vmem>>, %arg4: memref<1x16x128xbf16, #tpu.memory_space<vmem>>, %arg5: memref<1x2x128xf32, #tpu.memory_space<vmem>>, %arg6: memref<3x384x128xbf16, #tpu.memory_space<vmem>>, %arg7: memref<1x1x128xf32, #tpu.memory_space<vmem>>, %arg8: memref<1x64x128xf32, #tpu.memory_space<vmem>>, %arg9: memref<1x64x128xf32, #tpu.memory_space<vmem>>) attributes {dimension_semantics = [#tpu.dimension_semantics<parallel>, #tpu.dimension_semantics<parallel>], iteration_bounds = array<i64: 2, 4>, scalar_prefetch = 0 : i64, scratch_operands = 0 : i64, tpu.core_type = #tpu.core_type<tc>, window_params = [{transform_indices = @transform_0, window_bounds = array<i64: 1, 64, 128>}, {transform_indices = @transform_1, window_bounds = array<i64: 1, 16, 128>}, {transform_indices = @transform_2, window_bounds = array<i64: 1, 16, 128>}, {transform_indices = @transform_3, window_bounds = array<i64: 1, 2, 128>}, {pipeline_mode = #tpu.pipeline_mode<synchronous>, transform_indices = @transform_4, window_bounds = array<i64: 3, 384, 128>}, {pipeline_mode = #tpu.pipeline_mode<synchronous>, transform_indices = @transform_5, window_bounds = array<i64: 1, 1, 128>}, {transform_indices = @transform_6, window_bounds = array<i64: 1, 64, 128>}, {transform_indices = @transform_7, window_bounds = array<i64: 1, 64, 128>}]} {
    %c0 = arith.constant 0 : index
    %c0_0 = arith.constant 0 : index
    %c0_1 = arith.constant 0 : index
    %0 = vector.load %arg5[%c0, %c0_0, %c0_1] : memref<1x2x128xf32, #tpu.memory_space<vmem>>, vector<1x2x128xf32>
    %1 = vector.shape_cast %0 : vector<1x2x128xf32> to vector<2x128xf32>
    %2 = vector.extract_strided_slice %1 {offsets = [0, 0], sizes = [1, 128], strides = [1, 1]} : vector<2x128xf32> to vector<1x128xf32>
    %3 = vector.extract_strided_slice %1 {offsets = [1, 0], sizes = [1, 128], strides = [1, 1]} : vector<2x128xf32> to vector<1x128xf32>
    %c0_i32 = arith.constant 0 : i32
    %4 = arith.cmpi sgt, %arg1, %c0_i32 : i32
    %cst = arith.constant 1.000000e+00 : f32
    %cst_2 = arith.constant 0.000000e+00 : f32
    %5 = arith.select %4, %cst, %cst_2 : f32
    %c3_i32 = arith.constant 3 : i32
    %6 = arith.cmpi slt, %arg1, %c3_i32 : i32
    %cst_3 = arith.constant 1.000000e+00 : f32
    %cst_4 = arith.constant 0.000000e+00 : f32
    %7 = arith.select %6, %cst_3, %cst_4 : f32
    %c0_5 = arith.constant 0 : index
    %c0_6 = arith.constant 0 : index
    %c0_7 = arith.constant 0 : index
    %8 = vector.load %arg2[%c0_5, %c0_6, %c0_7] : memref<1x64x128xbf16, #tpu.memory_space<vmem>>, vector<1x64x128xbf16>
    %9 = vector.shape_cast %8 : vector<1x64x128xbf16> to vector<64x128xbf16>
    %10 = arith.extf %9 : vector<64x128xbf16> to vector<64x128xf32>
    %11 = vector.broadcast %2 : vector<1x128xf32> to vector<64x128xf32>
    %12 = arith.mulf %10, %11 : vector<64x128xf32>
    %13 = vector.broadcast %3 : vector<1x128xf32> to vector<64x128xf32>
    %14 = arith.addf %12, %13 : vector<64x128xf32>
    %15 = arith.negf %14 : vector<64x128xf32>
    %16 = math.exp %15 : vector<64x128xf32>
    %cst_8 = arith.constant 1.000000e+00 : f32
    %17 = vector.broadcast %cst_8 : f32 to vector<64x128xf32>
    %18 = arith.addf %17, %16 : vector<64x128xf32>
    %19 = arith.divf %17, %18 : vector<64x128xf32>
    %20 = arith.mulf %14, %19 : vector<64x128xf32>
    %c0_9 = arith.constant 0 : index
    %c0_10 = arith.constant 0 : index
    %c0_11 = arith.constant 0 : index
    %21 = vector.load %arg3[%c0_9, %c0_10, %c0_11] : memref<1x16x128xbf16, #tpu.memory_space<vmem>>, vector<1x16x128xbf16>
    %22 = vector.shape_cast %21 : vector<1x16x128xbf16> to vector<16x128xbf16>
    %23 = arith.extf %22 : vector<16x128xbf16> to vector<16x128xf32>
    %24 = vector.broadcast %2 : vector<1x128xf32> to vector<16x128xf32>
    %25 = arith.mulf %23, %24 : vector<16x128xf32>
    %26 = vector.broadcast %3 : vector<1x128xf32> to vector<16x128xf32>
    %27 = arith.addf %25, %26 : vector<16x128xf32>
    %28 = arith.negf %27 : vector<16x128xf32>
    %29 = math.exp %28 : vector<16x128xf32>
    %cst_12 = arith.constant 1.000000e+00 : f32
    %30 = vector.broadcast %cst_12 : f32 to vector<16x128xf32>
    %31 = arith.addf %30, %29 : vector<16x128xf32>
    %32 = arith.divf %30, %31 : vector<16x128xf32>
    %33 = arith.mulf %27, %32 : vector<16x128xf32>
    %34 = vector.broadcast %5 : f32 to vector<16x128xf32>
    %35 = arith.mulf %33, %34 : vector<16x128xf32>
    %c0_13 = arith.constant 0 : index
    %c0_14 = arith.constant 0 : index
    %c0_15 = arith.constant 0 : index
    %36 = vector.load %arg4[%c0_13, %c0_14, %c0_15] : memref<1x16x128xbf16, #tpu.memory_space<vmem>>, vector<1x16x128xbf16>
    %37 = vector.shape_cast %36 : vector<1x16x128xbf16> to vector<16x128xbf16>
    %38 = arith.extf %37 : vector<16x128xbf16> to vector<16x128xf32>
    %39 = vector.broadcast %2 : vector<1x128xf32> to vector<16x128xf32>
    %40 = arith.mulf %38, %39 : vector<16x128xf32>
    %41 = vector.broadcast %3 : vector<1x128xf32> to vector<16x128xf32>
    %42 = arith.addf %40, %41 : vector<16x128xf32>
    %43 = arith.negf %42 : vector<16x128xf32>
    %44 = math.exp %43 : vector<16x128xf32>
    %cst_16 = arith.constant 1.000000e+00 : f32
    %45 = vector.broadcast %cst_16 : f32 to vector<16x128xf32>
    %46 = arith.addf %45, %44 : vector<16x128xf32>
    %47 = arith.divf %45, %46 : vector<16x128xf32>
    %48 = arith.mulf %42, %47 : vector<16x128xf32>
    %49 = vector.broadcast %7 : f32 to vector<16x128xf32>
    %50 = arith.mulf %48, %49 : vector<16x128xf32>
    %51 = arith.truncf %35 : vector<16x128xf32> to vector<16x128xbf16>
    %52 = arith.truncf %20 : vector<64x128xf32> to vector<64x128xbf16>
    %53 = arith.truncf %50 : vector<16x128xf32> to vector<16x128xbf16>
    %54 = tpu.concatenate %51, %52, %53 in 0 : vector<16x128xbf16>, vector<64x128xbf16>, vector<16x128xbf16> -> vector<96x128xbf16>
    %55 = tpu.iota {dimensions = array<i32: 0>} : vector<96x1xi32>
    %c16_i32 = arith.constant 16 : i32
    %c0_i32_17 = arith.constant 0 : i32
    %56 = arith.cmpi eq, %c16_i32, %c0_i32_17 : i32
    %c1_i32 = arith.constant 1 : i32
    %57 = arith.select %56, %c1_i32, %c16_i32 : i32
    %58 = vector.broadcast %57 : i32 to vector<96x1xi32>
    %59 = arith.remsi %55, %58 : vector<96x1xi32>
    %c0_i32_18 = arith.constant 0 : i32
    %60 = vector.broadcast %c0_i32_18 : i32 to vector<96x1xi32>
    %61 = arith.cmpi ne, %59, %60 : vector<96x1xi32>
    %c0_i32_19 = arith.constant 0 : i32
    %62 = vector.broadcast %c0_i32_19 : i32 to vector<96x1xi32>
    %63 = arith.cmpi slt, %59, %62 : vector<96x1xi32>
    %c0_i32_20 = arith.constant 0 : i32
    %64 = arith.cmpi slt, %57, %c0_i32_20 : i32
    %65 = vector.broadcast %64 : i1 to vector<96x1xi1>
    %66 = vector.broadcast %65 : vector<96x1xi1> to vector<96x1xi1>
    %67 = arith.xori %63, %66 : vector<96x1xi1>
    %68 = arith.andi %67, %61 : vector<96x1xi1>
    %69 = vector.broadcast %57 : i32 to vector<96x1xi32>
    %70 = arith.addi %59, %69 : vector<96x1xi32>
    %71 = arith.select %68, %70, %59 : vector<96x1xi1>, vector<96x1xi32>
    %cst_21 = arith.constant 0.000000e+00 : bf16
    %72 = vector.broadcast %cst_21 : bf16 to vector<1x128xbf16>
    %c0_i32_22 = arith.constant 0 : i32
    %73 = vector.broadcast %c0_i32_22 : i32 to vector<96x1xi32>
    %74 = arith.cmpi sgt, %71, %73 : vector<96x1xi32>
    %75 = vector.extract_strided_slice %54 {offsets = [0, 0], sizes = [95, 128], strides = [1, 1]} : vector<96x128xbf16> to vector<95x128xbf16>
    %76 = tpu.concatenate %72, %75 in 0 : vector<1x128xbf16>, vector<95x128xbf16> -> vector<96x128xbf16>
    %c0_i32_23 = arith.constant 0 : i32
    %77 = arith.sitofp %c0_i32_23 : i32 to bf16
    %78 = vector.shape_cast %74 : vector<96x1xi1> to vector<96x1xi1>
    %79 = vector.broadcast %78 : vector<96x1xi1> to vector<96x128xi1>
    %80 = vector.broadcast %77 : bf16 to vector<96x128xbf16>
    %81 = arith.select %79, %76, %80 : vector<96x128xi1>, vector<96x128xbf16>
    %c15_i32 = arith.constant 15 : i32
    %82 = vector.broadcast %c15_i32 : i32 to vector<96x1xi32>
    %83 = arith.cmpi slt, %71, %82 : vector<96x1xi32>
    %84 = vector.extract_strided_slice %54 {offsets = [1, 0], sizes = [95, 128], strides = [1, 1]} : vector<96x128xbf16> to vector<95x128xbf16>
    %85 = tpu.concatenate %84, %72 in 0 : vector<95x128xbf16>, vector<1x128xbf16> -> vector<96x128xbf16>
    %c0_i32_24 = arith.constant 0 : i32
    %86 = arith.sitofp %c0_i32_24 : i32 to bf16
    %87 = vector.shape_cast %83 : vector<96x1xi1> to vector<96x1xi1>
    %88 = vector.broadcast %87 : vector<96x1xi1> to vector<96x128xi1>
    %89 = vector.broadcast %86 : bf16 to vector<96x128xbf16>
    %90 = arith.select %88, %85, %89 : vector<96x128xi1>, vector<96x128xbf16>
    %91 = tpu.concatenate %81, %54, %90 in 1 : vector<96x128xbf16>, vector<96x128xbf16>, vector<96x128xbf16> -> vector<96x384xbf16>
    %92 = vector.extract_strided_slice %91 {offsets = [0, 0], sizes = [64, 384], strides = [1, 1]} : vector<96x384xbf16> to vector<64x384xbf16>
    %c0_25 = arith.constant 0 : index
    %c0_26 = arith.constant 0 : index
    %c0_27 = arith.constant 0 : index
    %93 = vector.load %arg6[%c0_25, %c0_26, %c0_27] : memref<3x384x128xbf16, #tpu.memory_space<vmem>>, vector<1x384x128xbf16>
    %94 = vector.shape_cast %93 : vector<1x384x128xbf16> to vector<384x128xbf16>
    %cst_28 = arith.constant dense<0.000000e+00> : vector<64x128xf32>
    %95 = tpu.matmul %92, %94, %cst_28 {dimension_numbers = #tpu.dot_dimension_numbers<[1], [0], [0], [1], [0, 0, 1, 1], [], []>} : vector<64x384xbf16>, vector<384x128xbf16>, vector<64x128xf32> -> vector<64x128xf32>
    %96 = vector.extract_strided_slice %91 {offsets = [16, 0], sizes = [64, 384], strides = [1, 1]} : vector<96x384xbf16> to vector<64x384xbf16>
    %c1 = arith.constant 1 : index
    %c0_29 = arith.constant 0 : index
    %c0_30 = arith.constant 0 : index
    %97 = vector.load %arg6[%c1, %c0_29, %c0_30] : memref<3x384x128xbf16, #tpu.memory_space<vmem>>, vector<1x384x128xbf16>
    %98 = vector.shape_cast %97 : vector<1x384x128xbf16> to vector<384x128xbf16>
    %cst_31 = arith.constant dense<0.000000e+00> : vector<64x128xf32>
    %99 = tpu.matmul %96, %98, %cst_31 {dimension_numbers = #tpu.dot_dimension_numbers<[1], [0], [0], [1], [0, 0, 1, 1], [], []>} : vector<64x384xbf16>, vector<384x128xbf16>, vector<64x128xf32> -> vector<64x128xf32>
    %100 = arith.addf %95, %99 : vector<64x128xf32>
    %101 = vector.extract_strided_slice %91 {offsets = [32, 0], sizes = [64, 384], strides = [1, 1]} : vector<96x384xbf16> to vector<64x384xbf16>
    %c2 = arith.constant 2 : index
    %c0_32 = arith.constant 0 : index
    %c0_33 = arith.constant 0 : index
    %102 = vector.load %arg6[%c2, %c0_32, %c0_33] : memref<3x384x128xbf16, #tpu.memory_space<vmem>>, vector<1x384x128xbf16>
    %103 = vector.shape_cast %102 : vector<1x384x128xbf16> to vector<384x128xbf16>
    %cst_34 = arith.constant dense<0.000000e+00> : vector<64x128xf32>
    %104 = tpu.matmul %101, %103, %cst_34 {dimension_numbers = #tpu.dot_dimension_numbers<[1], [0], [0], [1], [0, 0, 1, 1], [], []>} : vector<64x384xbf16>, vector<384x128xbf16>, vector<64x128xf32> -> vector<64x128xf32>
    %105 = arith.addf %100, %104 : vector<64x128xf32>
    %c0_35 = arith.constant 0 : index
    %c0_36 = arith.constant 0 : index
    %c0_37 = arith.constant 0 : index
    %106 = vector.load %arg7[%c0_35, %c0_36, %c0_37] : memref<1x1x128xf32, #tpu.memory_space<vmem>>, vector<1x1x128xf32>
    %107 = vector.shape_cast %106 : vector<1x1x128xf32> to vector<1x128xf32>
    %108 = vector.broadcast %107 : vector<1x128xf32> to vector<64x128xf32>
    %109 = arith.addf %105, %108 : vector<64x128xf32>
    %c0_38 = arith.constant 0 : index
    %c0_39 = arith.constant 0 : index
    %c0_40 = arith.constant 0 : index
    %110 = vector.load %arg8[%c0_38, %c0_39, %c0_40] : memref<1x64x128xf32, #tpu.memory_space<vmem>>, vector<1x64x128xf32>
    %111 = vector.shape_cast %110 : vector<1x64x128xf32> to vector<64x128xf32>
    %112 = arith.addf %109, %111 : vector<64x128xf32>
    %c0_41 = arith.constant 0 : index
    %c0_42 = arith.constant 0 : index
    %c0_43 = arith.constant 0 : index
    %113 = vector.load %arg9[%c0_41, %c0_42, %c0_43] : memref<1x64x128xf32, #tpu.memory_space<vmem>>, vector<1x64x128xf32>
    %114 = vector.shape_cast %113 : vector<1x64x128xf32> to vector<64x128xf32>
    %115 = vector.shape_cast %112 : vector<64x128xf32> to vector<1x64x128xf32>
    tpu.vector_store %arg9[%c0_41, %c0_42, %c0_43], %115 {strides = array<i32>} : memref<1x64x128xf32, #tpu.memory_space<vmem>>, vector<1x64x128xf32>,
    return
  }
  func.func @transform_0(%arg0: i32, %arg1: i32) -> (i32, i32, i32) {
    %c0_i32 = arith.constant 0 : i32
    %c0_i32_0 = arith.constant 0 : i32
    return %arg0, %arg1, %c0_i32 : i32, i32, i32
  }
  func.func @transform_1(%arg0: i32, %arg1: i32) -> (i32, i32, i32) {
    %c4_i32 = arith.constant 4 : i32
    %0 = arith.muli %arg1, %c4_i32 : i32
    %c1_i32 = arith.constant 1 : i32
    %1 = arith.subi %0, %c1_i32 : i32
    %c0_i32 = arith.constant 0 : i32
    %2 = arith.maxsi %1, %c0_i32 : i32
    %c0_i32_0 = arith.constant 0 : i32
    %c0_i32_1 = arith.constant 0 : i32
    return %arg0, %2, %c0_i32_0 : i32, i32, i32
  }
  func.func @transform_2(%arg0: i32, %arg1: i32) -> (i32, i32, i32) {
    %c1_i32 = arith.constant 1 : i32
    %0 = arith.addi %arg1, %c1_i32 : i32
    %c4_i32 = arith.constant 4 : i32
    %1 = arith.muli %0, %c4_i32 : i32
    %c15_i32 = arith.constant 15 : i32
    %2 = arith.minsi %1, %c15_i32 : i32
    %c0_i32 = arith.constant 0 : i32
    %c0_i32_0 = arith.constant 0 : i32
    return %arg0, %2, %c0_i32 : i32, i32, i32
  }
  func.func @transform_3(%arg0: i32, %arg1: i32) -> (i32, i32, i32) {
    %c0_i32 = arith.constant 0 : i32
    %c0_i32_0 = arith.constant 0 : i32
    %c0_i32_1 = arith.constant 0 : i32
    return %arg0, %c0_i32, %c0_i32_0 : i32, i32, i32
  }
  func.func @transform_4(%arg0: i32, %arg1: i32) -> (i32, i32, i32) {
    %c0_i32 = arith.constant 0 : i32
    %c0_i32_0 = arith.constant 0 : i32
    %c0_i32_1 = arith.constant 0 : i32
    %c0_i32_2 = arith.constant 0 : i32
    return %c0_i32, %c0_i32_0, %c0_i32_1 : i32, i32, i32
  }
  func.func @transform_5(%arg0: i32, %arg1: i32) -> (i32, i32, i32) {
    %c0_i32 = arith.constant 0 : i32
    %c0_i32_0 = arith.constant 0 : i32
    %c0_i32_1 = arith.constant 0 : i32
    %c0_i32_2 = arith.constant 0 : i32
    return %c0_i32, %c0_i32_0, %c0_i32_1 : i32, i32, i32
  }
  func.func @transform_6(%arg0: i32, %arg1: i32) -> (i32, i32, i32) {
    %c0_i32 = arith.constant 0 : i32
    %c0_i32_0 = arith.constant 0 : i32
    return %arg0, %arg1, %c0_i32 : i32, i32, i32
  }
  func.func @transform_7(%arg0: i32, %arg1: i32) -> (i32, i32, i32) {
    %c0_i32 = arith.constant 0 : i32
    %c0_i32_0 = arith.constant 0 : i32
    return %arg0, %arg1, %c0_i32 : i32, i32, i32
  }
}

</mosaic_0001>

<llo_original>
// kernel: resnet_block_forward.6
$region0: #{resnet_block_forward.6}
  #allocation0 [shape = 'u32[]', space=smem, size = 0x4, offset = 0x4, fixed_abs, tag = 'smem constant byte address 0x4 - core index']
  #allocation1 [shape = 'u32[144,128]{1,0:T(1,128)}', space=vmem, size = 0x12000, scoped, tag = 'internal scratch']
  #allocation2 [shape = 'f32[2,128]{1,0:T(2,128)}', space=vmem, size = 0x400, scoped, tag = 'scratch operand']
  %s0 = inlined_call_operand.vmem [shape: bf16[2,256,128], index: 0, kind: input, shape index: {}]
  %s1 = inlined_call_operand.vmem [shape: f32[1,128], index: 1, kind: input, shape index: {}]
  %s2 = inlined_call_operand.vmem [shape: f32[1,128], index: 2, kind: input, shape index: {}]
  %s3 = inlined_call_operand.vmem [shape: f32[128,32], index: 3, kind: input, shape index: {}]
  %s4 = inlined_call_operand.vmem [shape: f32[32,128], index: 4, kind: input, shape index: {}]
  %s5 = inlined_call_operand.vmem [shape: f32[2,2,128], index: 5, kind: output, shape index: {}]
  %s6 = sld [smem:[#allocation0]]
  $region61: #{resnet_block_forward.6} parent=0
    _
  %s8 = ssub.s32 1, %s6
  %s9 = scalar_select 0, %s8, %s6
  loop: start=0, step=1, limit=10
  $region2: #{resnet_block_forward.6} parent=0 // loop_pre_header
    _
  $region3: #{resnet_block_forward.6} parent=0 // loop_header
    %s11 = sphi 0, %s15
    %p12 = scmp.ge.s32.totalorder %s11, 10
    %s18 = sphi 0, %s30
    %s19 = sphi 0, %s26
    %s20 = sphi 0, %s18
    %s21 = sphi 0, %s19
    %s22 = sphi 0, %s20
    %s23 = sphi 0, %s21
    %s35 = sphi 0, %s37
    %s38 = sphi 0, %s35
    %s39 = sphi 0, %s38
    %s55 = sphi 0, %s39
    %s59 = sphi 0, %s59
    %s61 = sphi 0, %s59
    %s62 = sphi 0, %s61
    %s76 = sphi 0, %s62
    %s80 = sphi 0, %s80
    %s82 = sphi 0, %s80
    %s83 = sphi 0, %s82
    %s97 = sphi 0, %s83
    %s101 = sphi 0, %s101
    %s103 = sphi 0, %s101
    %s104 = sphi 0, %s103
    %s118 = sphi 0, %s104
    %s122 = sphi 0, %s122
    %s124 = sphi 0, %s122
    %s125 = sphi 0, %s124
    %s139 = sphi 0, %s125
    %s145 = sphi 0, %s147
    %s148 = sphi 0, %s145
    %s149 = sphi 0, %s148
    %s165 = sphi 0, %s149
  $region4: #{resnet_block_forward.6} parent=0 // loop_header_branch
    %14 = sbr.rel (%p12) target = $region8
  $region5: #{resnet_block_forward.6} parent=0 // loop_body
    %s16 = ssub.s32 %s11, 1
    %s17 = ssub.s32 %s11, 2
    %s24 = sadd.s32 1, %s19
    %p25 = scmp.ge.s32.totalorder %s24, 4
    %s26 = scalar_select %p25, 0, %s24
    %s27 = sadd.s32 1, %s18
    %s28 = scalar_select %p25, %s27, %s18
    %p29 = scmp.ge.s32.totalorder %s28, 2
    %s30 = scalar_select %p29, 0, %s28
    %s31 = ssub.s32 %s18, %s30
    %s32 = ssub.s32 %s19, %s26
    %s33 = sor.u32 %s31, %s32
    %p34 = scmp.eq.s32.totalorder %s33, 0
    %s36 = sadd.s32 %s35, 1
    %s37 = scalar_select %p34, %s35, %s36
    %p40 = pneg %p34
    %p41 = scmp.eq.s32.totalorder %s11, 7
    %p42 = por %p40, %p41
    %p43 = scmp.ne.s32.totalorder %s35, %s38
    %p44 = scmp.eq.s32.totalorder %s11, 0
    %p45 = por %p43, %p44
    %p46 = scmp.ne.s32.totalorder %s35, %s38
    %p47 = scmp.eq.s32.totalorder %s16, 7
    %p48 = por %p46, %p47
    %p49 = scmp.ne.s32.totalorder %s38, %s39
    %p50 = scmp.eq.s32.totalorder %s16, 0
    %p51 = por %p49, %p50
    %p52 = scmp.ne.s32.totalorder %s38, %s39
    %p53 = scmp.eq.s32.totalorder %s17, 7
    %p54 = por %p52, %p53
    %p56 = scmp.ne.s32.totalorder %s39, %s55
    %p57 = scmp.eq.s32.totalorder %s17, 0
    %p58 = por %p56, %p57
    %s60 = sadd.s32 %s59, 1
    %p63 = scmp.eq.s32.totalorder %s11, 7
    %p64 = scmp.ne.s32.totalorder %s59, %s61
    %p65 = scmp.eq.s32.totalorder %s11, 0
    %p66 = por %p64, %p65
    %p67 = scmp.ne.s32.totalorder %s59, %s61
    %p68 = scmp.eq.s32.totalorder %s16, 7
    %p69 = por %p67, %p68
    %p70 = scmp.ne.s32.totalorder %s61, %s62
    %p71 = scmp.eq.s32.totalorder %s16, 0
    %p72 = por %p70, %p71
    %p73 = scmp.ne.s32.totalorder %s61, %s62
    %p74 = scmp.eq.s32.totalorder %s17, 7
    %p75 = por %p73, %p74
    %p77 = scmp.ne.s32.totalorder %s62, %s76
    %p78 = scmp.eq.s32.totalorder %s17, 0
    %p79 = por %p77, %p78
    %s81 = sadd.s32 %s80, 1
    %p84 = scmp.eq.s32.totalorder %s11, 7
    %p85 = scmp.ne.s32.totalorder %s80, %s82
    %p86 = scmp.eq.s32.totalorder %s11, 0
    %p87 = por %p85, %p86
    %p88 = scmp.ne.s32.totalorder %s80, %s82
    %p89 = scmp.eq.s32.totalorder %s16, 7
    %p90 = por %p88, %p89
    %p91 = scmp.ne.s32.totalorder %s82, %s83
    %p92 = scmp.eq.s32.totalorder %s16, 0
    %p93 = por %p91, %p92
    %p94 = scmp.ne.s32.totalorder %s82, %s83
    %p95 = scmp.eq.s32.totalorder %s17, 7
    %p96 = por %p94, %p95
    %p98 = scmp.ne.s32.totalorder %s83, %s97
    %p99 = scmp.eq.s32.totalorder %s17, 0
    %p100 = por %p98, %p99
    %s102 = sadd.s32 %s101, 1
    %p105 = scmp.eq.s32.totalorder %s11, 7
    %p106 = scmp.ne.s32.totalorder %s101, %s103
    %p107 = scmp.eq.s32.totalorder %s11, 0
    %p108 = por %p106, %p107
    %p109 = scmp.ne.s32.totalorder %s101, %s103
    %p110 = scmp.eq.s32.totalorder %s16, 7
    %p111 = por %p109, %p110
    %p112 = scmp.ne.s32.totalorder %s103, %s104
    %p113 = scmp.eq.s32.totalorder %s16, 0
    %p114 = por %p112, %p113
    %p115 = scmp.ne.s32.totalorder %s103, %s104
    %p116 = scmp.eq.s32.totalorder %s17, 7
    %p117 = por %p115, %p116
    %p119 = scmp.ne.s32.totalorder %s104, %s118
    %p120 = scmp.eq.s32.totalorder %s17, 0
    %p121 = por %p119, %p120
    %s123 = sadd.s32 %s122, 1
    %p126 = scmp.eq.s32.totalorder %s11, 7
    %p127 = scmp.ne.s32.totalorder %s122, %s124
    %p128 = scmp.eq.s32.totalorder %s11, 0
    %p129 = por %p127, %p128
    %p130 = scmp.ne.s32.totalorder %s122, %s124
    %p131 = scmp.eq.s32.totalorder %s16, 7
    %p132 = por %p130, %p131
    %p133 = scmp.ne.s32.totalorder %s124, %s125
    %p134 = scmp.eq.s32.totalorder %s16, 0
    %p135 = por %p133, %p134
    %p136 = scmp.ne.s32.totalorder %s124, %s125
    %p137 = scmp.eq.s32.totalorder %s17, 7
    %p138 = por %p136, %p137
    %p140 = scmp.ne.s32.totalorder %s125, %s139
    %p141 = scmp.eq.s32.totalorder %s17, 0
    %p142 = por %p140, %p141
    %s143 = ssub.s32 %s18, %s30
    %p144 = scmp.eq.s32.totalorder %s143, 0
    %s146 = sadd.s32 %s145, 1
    %s147 = scalar_select %p144, %s145, %s146
    %p150 = pneg %p144
    %p151 = scmp.eq.s32.totalorder %s11, 7
    %p152 = por %p150, %p151
    %p153 = scmp.ne.s32.totalorder %s145, %s148
    %p154 = scmp.eq.s32.totalorder %s11, 0
    %p155 = por %p153, %p154
    %p156 = scmp.ne.s32.totalorder %s145, %s148
    %p157 = scmp.eq.s32.totalorder %s16, 7
    %p158 = por %p156, %p157
    %p159 = scmp.ne.s32.totalorder %s148, %s149
    %p160 = scmp.eq.s32.totalorder %s16, 0
    %p161 = por %p159, %p160
    %p162 = scmp.ne.s32.totalorder %s148, %s149
    %p163 = scmp.eq.s32.totalorder %s17, 7
    %p164 = por %p162, %p163
    %p166 = scmp.ne.s32.totalorder %s149, %s165
    %p167 = scmp.eq.s32.totalorder %s17, 0
    %p168 = por %p166, %p167
    %p169 = scmp.le.s32.totalorder 1, %s11
    %p170 = scmp.lt.s32.totalorder %s11, 9
    %p171 = pnand %p169, %p170
    %p172 = pneg %p171
    // Predicated region
    $region9: #{resnet_block_forward.6} parent=5 // pred_check
      _
    $region10: #{resnet_block_forward.6} parent=5 // pred_check_branch
      %174 = sbr.rel (%p171) target = $region12
    $region11: #{resnet_block_forward.6} parent=5 // pred_region
      %s175 = ssub.s32 %s11, 1
      // Predicated region
      $region13: #{resnet_block_forward.6} parent=11 // pred_check
        %p176 = pneg %p72
      $region14: #{resnet_block_forward.6} parent=11 // pred_check_branch
        %178 = sbr.rel (%p176) target = $region16
      $region15: #{resnet_block_forward.6} parent=11 // pred_region
        _
      $region16: #{resnet_block_forward.6} parent=11 // pred_fallthru
        _
      // Predicated region
      $region17: #{resnet_block_forward.6} parent=11 // pred_check
        %p179 = pneg %p93
      $region18: #{resnet_block_forward.6} parent=11 // pred_check_branch
        %181 = sbr.rel (%p179) target = $region20
      $region19: #{resnet_block_forward.6} parent=11 // pred_region
        _
      $region20: #{resnet_block_forward.6} parent=11 // pred_fallthru
        _
      // Predicated region
      $region21: #{resnet_block_forward.6} parent=11 // pred_check
        %p182 = pneg %p114
      $region22: #{resnet_block_forward.6} parent=11 // pred_check_branch
        %184 = sbr.rel (%p182) target = $region24
      $region23: #{resnet_block_forward.6} parent=11 // pred_region
        _
      $region24: #{resnet_block_forward.6} parent=11 // pred_fallthru
        _
      // Predicated region
      $region25: #{resnet_block_forward.6} parent=11 // pred_check
        %p185 = pneg %p135
      $region26: #{resnet_block_forward.6} parent=11 // pred_check_branch
        %187 = sbr.rel (%p185) target = $region28
      $region27: #{resnet_block_forward.6} parent=11 // pred_region
        _
      $region28: #{resnet_block_forward.6} parent=11 // pred_fallthru
        _
    $region12: #{resnet_block_forward.6} parent=5 // pred_fallthru
      _
    %p188 = scmp.lt.s32.totalorder %s11, 8
    // Predicated region
    $region29: #{resnet_block_forward.6} parent=5 // pred_check
      %p189 = pneg %p188
    $region30: #{resnet_block_forward.6} parent=5 // pred_check_branch
      %191 = sbr.rel (%p189) target = $region32
    $region31: #{resnet_block_forward.6} parent=5 // pred_region
      // Predicated region
      $region33: #{resnet_block_forward.6} parent=31 // pred_check
        %p192 = pneg %p45
      $region34: #{resnet_block_forward.6} parent=31 // pred_check_branch
        %194 = sbr.rel (%p192) target = $region36
      $region35: #{resnet_block_forward.6} parent=31 // pred_region
        %s195 = smul.u32 8, %s19
        %p196 = scmp.lt.s32.totalorder %s18, 1
        %s197 = scalar_select %p196, %s18, 1
        %p198 = scmp.lt.s32.totalorder %s195, 31
        %s199 = scalar_select %p198, %s195, 31
        %s200 = smul.addr %s197, 32
        %s201 = sadd.s32 %s199, %s200
        %s202 = smul.addr %s201, 4
        %s203 = scalar_lea.vmem %s0, %s202
        %s204 = smul.u32 8, %s19
      $region36: #{resnet_block_forward.6} parent=31 // pred_fallthru
        _
    $region32: #{resnet_block_forward.6} parent=5 // pred_fallthru
      _
    %p205 = scmp.le.s32.totalorder 1, %s11
    %p206 = scmp.lt.s32.totalorder %s11, 9
    %p207 = pnand %p205, %p206
    %p208 = pneg %p207
    // Predicated region
    $region37: #{resnet_block_forward.6} parent=5 // pred_check
      _
    $region38: #{resnet_block_forward.6} parent=5 // pred_check_branch
      %210 = sbr.rel (%p207) target = $region40
    $region39: #{resnet_block_forward.6} parent=5 // pred_region
      %s211 = ssub.s32 %s11, 1
      %s212 = smul.u32 8, %s21
      %p213 = scmp.lt.s32.totalorder %s20, 1
      %s214 = scalar_select %p213, %s20, 1
      %p215 = scmp.lt.s32.totalorder %s212, 31
      %s216 = scalar_select %p215, %s212, 31
      %s217 = smul.addr %s214, 32
      %s218 = sadd.s32 %s216, %s217
      %s219 = smul.addr %s218, 4
      %s220 = scalar_lea.vmem %s0, %s219
      %p221 = pneg %p51
      %p222 = pneg %p48
      %p223 = pneg %p72
      %p224 = pneg %p69
      %p225 = pneg %p93
      %p226 = pneg %p90
      %p227 = pneg %p114
      %p228 = pneg %p111
      %p229 = pneg %p135
      %p230 = pneg %p132
      %p231 = pneg %p161
      %p232 = pneg %p158
      %p233 = scmp.lt.s32.totalorder %s20, 1
      %s234 = scalar_select %p233, %s20, 1
      %s235 = smul.addr %s234, 2
      %s236 = scalar_lea.vmem %s5, %s235
      %s237 = smul.u32 8, %s21
      %p238 = scmp.lt.s32.totalorder %s20, 1
      %s239 = scalar_select %p238, %s20, 1
      %p240 = scmp.lt.s32.totalorder %s237, 31
      %s241 = scalar_select %p240, %s237, 31
      %s242 = smul.addr %s239, 32
      %s243 = sadd.s32 %s241, %s242
      %s244 = smul.addr %s243, 4
      %s245 = scalar_lea.vmem %s0, %s244
      %s246 = smul.u32 8, %s21
      %p247 = scmp.lt.s32.totalorder %s20, 1
      %s248 = scalar_select %p247, %s20, 1
      %s249 = smul.addr %s248, 2
      %s250 = scalar_lea.vmem %s5, %s249
      %p251 = scmp.eq.s32.totalorder %s21, 0
      // Predicated region
      $region41: #{resnet_block_forward.6} parent=39 // pred_check
        %p252 = pneg %p251
      $region42: #{resnet_block_forward.6} parent=39 // pred_check_branch
        %254 = sbr.rel (%p252) target = $region44
      $region43: #{resnet_block_forward.6} parent=39 // pred_region
        %255 = vst [vmem:[#allocation2] sm:$0x3] 0.0
      $region44: #{resnet_block_forward.6} parent=39 // pred_fallthru
        _
      %v256 = vld [vmem:[%s245] sm:$0xf]
      %v257 = vld [vmem:[%s245 + $0x4] sm:$0xf]
      %v258 = vld [vmem:[%s245 + $0x8] sm:$0xf]
      %v259 = vld [vmem:[%s245 + $0xc] sm:$0xf]
      %v260 = vld [vmem:[%s245 + $0x10] sm:$0xf]
      %v261 = vld [vmem:[%s245 + $0x14] sm:$0xf]
      %v262 = vld [vmem:[%s245 + $0x18] sm:$0xf]
      %v263 = vld [vmem:[%s245 + $0x1c] sm:$0xf]
      %v264 = vunpack.c.l.bf16 %v256
      %v265 = vunpack.c.l.bf16 %v257
      %v266 = vunpack.c.l.bf16 %v258
      %v267 = vunpack.c.l.bf16 %v259
      %v268 = vunpack.c.l.bf16 %v260
      %v269 = vunpack.c.l.bf16 %v261
      %v270 = vunpack.c.l.bf16 %v262
      %v271 = vunpack.c.l.bf16 %v263
      %v272 = vld [vmem:[#allocation2] sm:$0x3]
      %v273 = vadd.f32 %v264, %v265
      %v274 = vadd.f32 %v273, %v266
      %v275 = vadd.f32 %v274, %v267
      %v276 = vadd.f32 %v275, %v268
      %v277 = vadd.f32 %v276, %v269
      %v278 = vadd.f32 %v277, %v270
      %v279 = vadd.f32 %v278, %v271
      %v280 = vrot.slane %v279, 4
      %v281 = vadd.f32 %v279, %v280
      %v282 = vrot.slane %v281, 2
      %v283 = vadd.f32 %v281, %v282
      %v284 = vrot.slane %v283, 1
      %v285 = vadd.f32 %v283, %v284
      %v286 = vmul.f32 %v264, %v264
      %v287 = vmul.f32 %v265, %v265
      %v288 = vmul.f32 %v266, %v266
      %v289 = vmul.f32 %v267, %v267
      %v290 = vmul.f32 %v268, %v268
      %v291 = vmul.f32 %v269, %v269
      %v292 = vmul.f32 %v270, %v270
      %v293 = vmul.f32 %v271, %v271
      %v294 = vadd.f32 %v286, %v287
      %v295 = vadd.f32 %v294, %v288
      %v296 = vadd.f32 %v295, %v289
      %v297 = vadd.f32 %v296, %v290
      %v298 = vadd.f32 %v297, %v291
      %v299 = vadd.f32 %v298, %v292
      %v300 = vadd.f32 %v299, %v293
      %v301 = vrot.slane %v300, 4
      %v302 = vadd.f32 %v300, %v301
      %v303 = vrot.slane %v302, 2
      %v304 = vadd.f32 %v302, %v303
      %v305 = vrot.slane %v304, 1
      %v306 = vadd.f32 %v304, %v305
      %vm307 = vcmask 1040384
      %v308 = vsel %vm307, %v285, %v306
      %v309 = vadd.f32 %v272, %v308
      %310 = vst [vmem:[#allocation2] sm:$0x3] %v309
      %p311 = scmp.eq.s32.totalorder %s21, 3
      // Predicated region
      $region45: #{resnet_block_forward.6} parent=39 // pred_check
        %p312 = pneg %p311
      $region46: #{resnet_block_forward.6} parent=39 // pred_check_branch
        %314 = sbr.rel (%p312) target = $region48
      $region47: #{resnet_block_forward.6} parent=39 // pred_region
        %v315 = vld [vmem:[#allocation2] sm:$0x1]
        %v316 = vld [vmem:[#allocation2 + $0x1] sm:$0x1]
        %v317 = vld [vmem:[%s3] sm:$0xff]
        %v318 = vld [vmem:[%s3 + $0x8] sm:$0xff]
        %v319 = vld [vmem:[%s3 + $0x10] sm:$0xff]
        %v320 = vld [vmem:[%s3 + $0x18] sm:$0xff]
        %v321 = vld [vmem:[%s3 + $0x20] sm:$0xff]
        %v322 = vld [vmem:[%s3 + $0x28] sm:$0xff]
        %v323 = vld [vmem:[%s3 + $0x30] sm:$0xff]
        %v324 = vld [vmem:[%s3 + $0x38] sm:$0xff]
        %v325 = vld [vmem:[%s3 + $0x40] sm:$0xff]
        %v326 = vld [vmem:[%s3 + $0x48] sm:$0xff]
        %v327 = vld [vmem:[%s3 + $0x50] sm:$0xff]
        %v328 = vld [vmem:[%s3 + $0x58] sm:$0xff]
        %v329 = vld [vmem:[%s3 + $0x60] sm:$0xff]
        %v330 = vld [vmem:[%s3 + $0x68] sm:$0xff]
        %v331 = vld [vmem:[%s3 + $0x70] sm:$0xff]
        %v332 = vld [vmem:[%s3 + $0x78] sm:$0xff]
        %333 = vmatprep.subr.mxu0 0.0
        %334 = vmatpush1.msra.mxu0 %v317
        %335 = vmatprep.subr.mxu0 0.0
        %336 = vmatpush1.msra.mxu0 %v318
        %337 = vmatprep.subr.mxu0 0.0
        %338 = vmatpush1.msra.mxu0 %v319
        %339 = vmatprep.subr.mxu0 0.0
        %340 = vmatpush1.msra.mxu0 %v320
        %341 = vmatprep.subr.mxu0 0.0
        %342 = vmatpush1.msra.mxu0 %v321
        %343 = vmatprep.subr.mxu0 0.0
        %344 = vmatpush1.msra.mxu0 %v322
        %345 = vmatprep.subr.mxu0 0.0
        %346 = vmatpush1.msra.mxu0 %v323
        %347 = vmatprep.subr.mxu0 0.0
        %348 = vmatpush1.msra.mxu0 %v324
        %349 = vmatprep.subr.mxu0 0.0
        %350 = vmatpush1.msra.mxu0 %v325
        %351 = vmatprep.subr.mxu0 0.0
        %352 = vmatpush1.msra.mxu0 %v326
        %353 = vmatprep.subr.mxu0 0.0
        %354 = vmatpush1.msra.mxu0 %v327
        %355 = vmatprep.subr.mxu0 0.0
        %356 = vmatpush1.msra.mxu0 %v328
        %357 = vmatprep.subr.mxu0 0.0
        %358 = vmatpush1.msra.mxu0 %v329
        %359 = vmatprep.subr.mxu0 0.0
        %360 = vmatpush1.msra.mxu0 %v330
        %361 = vmatprep.subr.mxu0 0.0
        %362 = vmatpush1.msra.mxu0 %v331
        %363 = vmatprep.subr.mxu0 0.0
        %364 = vmatpush1.msra.mxu0 %v332
        %365 = vmatprep.subr.mxu0 0.0
        %366 = vmatpush1.msra.mxu0 0.0
        %367 = vmatprep.subr.mxu0 0.0
        %368 = vmatpush1.msra.mxu0 0.0
        %369 = vmatprep.subr.mxu0 0.0
        %370 = vmatpush1.msra.mxu0 0.0
        %371 = vmatprep.subr.mxu0 0.0
        %372 = vmatpush1.msra.mxu0 0.0
        %373 = vmatprep.subr.mxu0 0.0
        %374 = vmatpush1.msra.mxu0 0.0
        %375 = vmatprep.subr.mxu0 0.0
        %376 = vmatpush1.msra.mxu0 0.0
        %377 = vmatprep.subr.mxu0 0.0
        %378 = vmatpush1.msra.mxu0 0.0
        %379 = vmatprep.subr.mxu0 0.0
        %380 = vmatpush1.msra.mxu0 0.0
        %381 = vmatprep.subr.mxu0 0.0
        %382 = vmatpush1.msra.mxu0 0.0
        %383 = vmatprep.subr.mxu0 0.0
        %384 = vmatpush1.msra.mxu0 0.0
        %385 = vmatprep.subr.mxu0 0.0
        %386 = vmatpush1.msra.mxu0 0.0
        %387 = vmatprep.subr.mxu0 0.0
        %388 = vmatpush1.msra.mxu0 0.0
        %389 = vmatprep.subr.mxu0 0.0
        %390 = vmatpush1.msra.mxu0 0.0
        %391 = vmatprep.subr.mxu0 0.0
        %392 = vmatpush1.msra.mxu0 0.0
        %393 = vmatprep.subr.mxu0 0.0
        %394 = vmatpush1.msra.mxu0 0.0
        %395 = vmatprep.subr.mxu0 0.0
        %396 = vmatpush1.msra.mxu0 0.0
        %397 = vmatprep.mubr.f32.mxu0 0.0
        %398 = vmatmul.mubr.f32.gmra.mrb[0].mxu0 %v315
        %v399 = vpop.f32.mrb[0].mxu0
        %v400 = vadd.f32 0.0, %v399
        %v401 = vpop.f32.mrb[0].mxu0
        %402 = vdwg.mxu0
        %403 = vmatprep.subr.mxu0 0.0
        %404 = vmatpush1.msra.mxu0 %v317
        %405 = vmatprep.subr.mxu0 0.0
        %406 = vmatpush1.msra.mxu0 %v318
        %407 = vmatprep.subr.mxu0 0.0
        %408 = vmatpush1.msra.mxu0 %v319
        %409 = vmatprep.subr.mxu0 0.0
        %410 = vmatpush1.msra.mxu0 %v320
        %411 = vmatprep.subr.mxu0 0.0
        %412 = vmatpush1.msra.mxu0 %v321
        %413 = vmatprep.subr.mxu0 0.0
        %414 = vmatpush1.msra.mxu0 %v322
        %415 = vmatprep.subr.mxu0 0.0
        %416 = vmatpush1.msra.mxu0 %v323
        %417 = vmatprep.subr.mxu0 0.0
        %418 = vmatpush1.msra.mxu0 %v324
        %419 = vmatprep.subr.mxu0 0.0
        %420 = vmatpush1.msra.mxu0 %v325
        %421 = vmatprep.subr.mxu0 0.0
        %422 = vmatpush1.msra.mxu0 %v326
        %423 = vmatprep.subr.mxu0 0.0
        %424 = vmatpush1.msra.mxu0 %v327
        %425 = vmatprep.subr.mxu0 0.0
        %426 = vmatpush1.msra.mxu0 %v328
        %427 = vmatprep.subr.mxu0 0.0
        %428 = vmatpush1.msra.mxu0 %v329
        %429 = vmatprep.subr.mxu0 0.0
        %430 = vmatpush1.msra.mxu0 %v330
        %431 = vmatprep.subr.mxu0 0.0
        %432 = vmatpush1.msra.mxu0 %v331
        %433 = vmatprep.subr.mxu0 0.0
        %434 = vmatpush1.msra.mxu0 %v332
        %435 = vmatprep.subr.mxu0 0.0
        %436 = vmatpush1.msra.mxu0 0.0
        %437 = vmatprep.subr.mxu0 0.0
        %438 = vmatpush1.msra.mxu0 0.0
        %439 = vmatprep.subr.mxu0 0.0
        %440 = vmatpush1.msra.mxu0 0.0
        %441 = vmatprep.subr.mxu0 0.0
        %442 = vmatpush1.msra.mxu0 0.0
        %443 = vmatprep.subr.mxu0 0.0
        %444 = vmatpush1.msra.mxu0 0.0
        %445 = vmatprep.subr.mxu0 0.0
        %446 = vmatpush1.msra.mxu0 0.0
        %447 = vmatprep.subr.mxu0 0.0
        %448 = vmatpush1.msra.mxu0 0.0
        %449 = vmatprep.subr.mxu0 0.0
        %450 = vmatpush1.msra.mxu0 0.0
        %451 = vmatprep.subr.mxu0 0.0
        %452 = vmatpush1.msra.mxu0 0.0
        %453 = vmatprep.subr.mxu0 0.0
        %454 = vmatpush1.msra.mxu0 0.0
        %455 = vmatprep.subr.mxu0 0.0
        %456 = vmatpush1.msra.mxu0 0.0
        %457 = vmatprep.subr.mxu0 0.0
        %458 = vmatpush1.msra.mxu0 0.0
        %459 = vmatprep.subr.mxu0 0.0
        %460 = vmatpush1.msra.mxu0 0.0
        %461 = vmatprep.subr.mxu0 0.0
        %462 = vmatpush1.msra.mxu0 0.0
        %463 = vmatprep.subr.mxu0 0.0
        %464 = vmatpush1.msra.mxu0 0.0
        %465 = vmatprep.subr.mxu0 0.0
        %466 = vmatpush1.msra.mxu0 0.0
        %467 = vmatprep.mubr.f32.mxu0 0.0
        %468 = vmatmul.mubr.f32.gmra.mrb[0].mxu0 %v316
        %v469 = vpop.f32.mrb[0].mxu0
        %v470 = vadd.f32 0.0, %v469
        %v471 = vpop.f32.mrb[0].mxu0
        %472 = vdwg.mxu0
        %v473 = vrcp.pop 1024.0
        %v474 = vmul.f32 %v400, %v473
        %v475 = vmul.f32 %v470, %v473
        %v476 = vmul.f32 %v474, %v474
        %v477 = vsub.f32 %v475, %v476
        %v478 = vmax.f32 %v477, 0.0
        %v479 = vadd.f32 %v478, 1e-06
        %v480 = vrsqrt.pop %v479
        %v481 = vld [vmem:[%s4] sm:$0xff]
        %v482 = vld [vmem:[%s4 + $0x8] sm:$0xff]
        %v483 = vld [vmem:[%s4 + $0x10] sm:$0xff]
        %v484 = vld [vmem:[%s4 + $0x18] sm:$0xff]
        %vm485 = vcmask 261120
        %v487 = vsel %vm485, %v474, 0
        %489 = vmatprep.subr.mxu0 0.0
        %490 = vmatpush1.msra.mxu0 %v481
        %491 = vmatprep.subr.mxu0 0.0
        %492 = vmatpush1.msra.mxu0 %v482
        %493 = vmatprep.subr.mxu0 0.0
        %494 = vmatpush1.msra.mxu0 %v483
        %495 = vmatprep.subr.mxu0 0.0
        %496 = vmatpush1.msra.mxu0 %v484
        %497 = vmatprep.subr.mxu0 0.0
        %498 = vmatpush1.msra.mxu0 0.0
        %499 = vmatprep.subr.mxu0 0.0
        %500 = vmatpush1.msra.mxu0 0.0
        %501 = vmatprep.subr.mxu0 0.0
        %502 = vmatpush1.msra.mxu0 0.0
        %503 = vmatprep.subr.mxu0 0.0
        %504 = vmatpush1.msra.mxu0 0.0
        %505 = vmatprep.subr.mxu0 0.0
        %506 = vmatpush1.msra.mxu0 0.0
        %507 = vmatprep.subr.mxu0 0.0
        %508 = vmatpush1.msra.mxu0 0.0
        %509 = vmatprep.subr.mxu0 0.0
        %510 = vmatpush1.msra.mxu0 0.0
        %511 = vmatprep.subr.mxu0 0.0
        %512 = vmatpush1.msra.mxu0 0.0
        %513 = vmatprep.subr.mxu0 0.0
        %514 = vmatpush1.msra.mxu0 0.0
        %515 = vmatprep.subr.mxu0 0.0
        %516 = vmatpush1.msra.mxu0 0.0
        %517 = vmatprep.subr.mxu0 0.0
        %518 = vmatpush1.msra.mxu0 0.0
        %519 = vmatprep.subr.mxu0 0.0
        %520 = vmatpush1.msra.mxu0 0.0
        %521 = vmatprep.subr.mxu0 0.0
        %522 = vmatpush1.msra.mxu0 0.0
        %523 = vmatprep.subr.mxu0 0.0
        %524 = vmatpush1.msra.mxu0 0.0
        %525 = vmatprep.subr.mxu0 0.0
        %526 = vmatpush1.msra.mxu0 0.0
        %527 = vmatprep.subr.mxu0 0.0
        %528 = vmatpush1.msra.mxu0 0.0
        %529 = vmatprep.subr.mxu0 0.0
        %530 = vmatpush1.msra.mxu0 0.0
        %531 = vmatprep.subr.mxu0 0.0
        %532 = vmatpush1.msra.mxu0 0.0
        %533 = vmatprep.subr.mxu0 0.0
        %534 = vmatpush1.msra.mxu0 0.0
        %535 = vmatprep.subr.mxu0 0.0
        %536 = vmatpush1.msra.mxu0 0.0
        %537 = vmatprep.subr.mxu0 0.0
        %538 = vmatpush1.msra.mxu0 0.0
        %539 = vmatprep.subr.mxu0 0.0
        %540 = vmatpush1.msra.mxu0 0.0
        %541 = vmatprep.subr.mxu0 0.0
        %542 = vmatpush1.msra.mxu0 0.0
        %543 = vmatprep.subr.mxu0 0.0
        %544 = vmatpush1.msra.mxu0 0.0
        %545 = vmatprep.subr.mxu0 0.0
        %546 = vmatpush1.msra.mxu0 0.0
        %547 = vmatprep.subr.mxu0 0.0
        %548 = vmatpush1.msra.mxu0 0.0
        %549 = vmatprep.subr.mxu0 0.0
        %550 = vmatpush1.msra.mxu0 0.0
        %551 = vmatprep.subr.mxu0 0.0
        %552 = vmatpush1.msra.mxu0 0.0
        %553 = vmatprep.mubr.f32.mxu0 0.0
        %554 = vmatmul.mubr.f32.gmra.mrb[0].mxu0 %v487
        %v555 = vpop.f32.mrb[0].mxu0
        %v556 = vadd.f32 0.0, %v555
        %v557 = vpop.f32.mrb[0].mxu0
        %558 = vdwg.mxu0
        %v560 = vsel %vm485, %v480, 0
        %562 = vmatprep.subr.mxu0 0.0
        %563 = vmatpush1.msra.mxu0 %v481
        %564 = vmatprep.subr.mxu0 0.0
        %565 = vmatpush1.msra.mxu0 %v482
        %566 = vmatprep.subr.mxu0 0.0
        %567 = vmatpush1.msra.mxu0 %v483
        %568 = vmatprep.subr.mxu0 0.0
        %569 = vmatpush1.msra.mxu0 %v484
        %570 = vmatprep.subr.mxu0 0.0
        %571 = vmatpush1.msra.mxu0 0.0
        %572 = vmatprep.subr.mxu0 0.0
        %573 = vmatpush1.msra.mxu0 0.0
        %574 = vmatprep.subr.mxu0 0.0
        %575 = vmatpush1.msra.mxu0 0.0
        %576 = vmatprep.subr.mxu0 0.0
        %577 = vmatpush1.msra.mxu0 0.0
        %578 = vmatprep.subr.mxu0 0.0
        %579 = vmatpush1.msra.mxu0 0.0
        %580 = vmatprep.subr.mxu0 0.0
        %581 = vmatpush1.msra.mxu0 0.0
        %582 = vmatprep.subr.mxu0 0.0
        %583 = vmatpush1.msra.mxu0 0.0
        %584 = vmatprep.subr.mxu0 0.0
        %585 = vmatpush1.msra.mxu0 0.0
        %586 = vmatprep.subr.mxu0 0.0
        %587 = vmatpush1.msra.mxu0 0.0
        %588 = vmatprep.subr.mxu0 0.0
        %589 = vmatpush1.msra.mxu0 0.0
        %590 = vmatprep.subr.mxu0 0.0
        %591 = vmatpush1.msra.mxu0 0.0
        %592 = vmatprep.subr.mxu0 0.0
        %593 = vmatpush1.msra.mxu0 0.0
        %594 = vmatprep.subr.mxu0 0.0
        %595 = vmatpush1.msra.mxu0 0.0
        %596 = vmatprep.subr.mxu0 0.0
        %597 = vmatpush1.msra.mxu0 0.0
        %598 = vmatprep.subr.mxu0 0.0
        %599 = vmatpush1.msra.mxu0 0.0
        %600 = vmatprep.subr.mxu0 0.0
        %601 = vmatpush1.msra.mxu0 0.0
        %602 = vmatprep.subr.mxu0 0.0
        %603 = vmatpush1.msra.mxu0 0.0
        %604 = vmatprep.subr.mxu0 0.0
        %605 = vmatpush1.msra.mxu0 0.0
        %606 = vmatprep.subr.mxu0 0.0
        %607 = vmatpush1.msra.mxu0 0.0
        %608 = vmatprep.subr.mxu0 0.0
        %609 = vmatpush1.msra.mxu0 0.0
        %610 = vmatprep.subr.mxu0 0.0
        %611 = vmatpush1.msra.mxu0 0.0
        %612 = vmatprep.subr.mxu0 0.0
        %613 = vmatpush1.msra.mxu0 0.0
        %614 = vmatprep.subr.mxu0 0.0
        %615 = vmatpush1.msra.mxu0 0.0
        %616 = vmatprep.subr.mxu0 0.0
        %617 = vmatpush1.msra.mxu0 0.0
        %618 = vmatprep.subr.mxu0 0.0
        %619 = vmatpush1.msra.mxu0 0.0
        %620 = vmatprep.subr.mxu0 0.0
        %621 = vmatpush1.msra.mxu0 0.0
        %622 = vmatprep.subr.mxu0 0.0
        %623 = vmatpush1.msra.mxu0 0.0
        %624 = vmatprep.subr.mxu0 0.0
        %625 = vmatpush1.msra.mxu0 0.0
        %626 = vmatprep.mubr.f32.mxu0 0.0
        %627 = vmatmul.mubr.f32.gmra.mrb[0].mxu0 %v560
        %v628 = vpop.f32.mrb[0].mxu0
        %v629 = vadd.f32 0.0, %v628
        %v630 = vpop.f32.mrb[0].mxu0
        %631 = vdwg.mxu0
        %v632 = vld [vmem:[%s1] sm:$0x1]
        %v633 = vmul.f32 %v629, %v632
        %v634 = vld [vmem:[%s2] sm:$0x1]
        %v635 = vmul.f32 %v556, %v633
        %v636 = vsub.f32 %v634, %v635
        %v638 = vlaneseq
        %v639 = vshrl.u32 %v638, 7
        %v640 = vsub.s32 0, %v639
        %v641 = vrot.slane %v636, %v640
        %v643 = vsel %vm307, %v633, %v641
        %644 = vst [vmem:[%s250] sm:$0x3] %v643
      $region48: #{resnet_block_forward.6} parent=39 // pred_fallthru
        _
      %p645 = scmp.lt.s32.totalorder %s20, 1
      %s646 = scalar_select %p645, %s20, 1
      %s647 = smul.addr %s646, 2
      %s648 = scalar_lea.vmem %s5, %s647
      // Predicated region
      $region49: #{resnet_block_forward.6} parent=39 // pred_check
        %p649 = pneg %p158
      $region50: #{resnet_block_forward.6} parent=39 // pred_check_branch
        %651 = sbr.rel (%p649) target = $region52
      $region51: #{resnet_block_forward.6} parent=39 // pred_region
        _
      $region52: #{resnet_block_forward.6} parent=39 // pred_fallthru
        _
    $region40: #{resnet_block_forward.6} parent=5 // pred_fallthru
      _
    %p652 = scmp.le.s32.totalorder 2, %s11
    // Predicated region
    $region53: #{resnet_block_forward.6} parent=5 // pred_check
      %p653 = pneg %p652
    $region54: #{resnet_block_forward.6} parent=5 // pred_check_branch
      %655 = sbr.rel (%p653) target = $region56
    $region55: #{resnet_block_forward.6} parent=5 // pred_region
      %s656 = ssub.s32 %s11, 2
      // Predicated region
      $region57: #{resnet_block_forward.6} parent=55 // pred_check
        %p657 = pneg %p164
      $region58: #{resnet_block_forward.6} parent=55 // pred_check_branch
        %659 = sbr.rel (%p657) target = $region60
      $region59: #{resnet_block_forward.6} parent=55 // pred_region
        %p660 = scmp.lt.s32.totalorder %s22, 1
        %s661 = scalar_select %p660, %s22, 1
        %s662 = smul.addr %s661, 2
        %s663 = scalar_lea.vmem %s5, %s662
      $region60: #{resnet_block_forward.6} parent=55 // pred_fallthru
        _
    $region56: #{resnet_block_forward.6} parent=5 // pred_fallthru
      _
  $region6: #{resnet_block_forward.6} parent=0 // loop_footer
    %s15 = sadd.s32 1, %s11
  $region7: #{resnet_block_forward.6} parent=0 // loop_footer_branch
    %10 = sbr.rel target = $region3
  $region8: #{resnet_block_forward.6} parent=0 // loop_exit
    _

// kernel: resnet_block_forward.4
$region0: #{resnet_block_forward.4}
  #allocation0 [shape = 'u32[]', space=smem, size = 0x4, offset = 0x4, fixed_abs, tag = 'smem constant byte address 0x4 - core index']
  #allocation1 [shape = 'u32[144,128]{1,0:T(1,128)}', space=vmem, size = 0x12000, scoped, tag = 'internal scratch']
  #allocation2 [shape = 'f32[2,128]{1,0:T(2,128)}', space=vmem, size = 0x400, scoped, tag = 'scratch operand']
  %s0 = inlined_call_operand.hbm [shape: f32[2,256,128], index: 0, kind: input, shape index: {}]
  %s1 = inlined_call_operand.vmem [shape: f32[1,128], index: 1, kind: input, shape index: {}]
  %s2 = inlined_call_operand.vmem [shape: f32[1,128], index: 2, kind: input, shape index: {}]
  %s3 = inlined_call_operand.vmem [shape: f32[128,32], index: 3, kind: input, shape index: {}]
  %s4 = inlined_call_operand.vmem [shape: f32[32,128], index: 4, kind: input, shape index: {}]
  %s5 = inlined_call_operand.vmem [shape: f32[2,2,128], index: 5, kind: output, shape index: {}]
  %s6 = sld [smem:[#allocation0]]
  $region65: #{resnet_block_forward.4} parent=0
    _
  %s8 = ssub.s32 1, %s6
  %s9 = scalar_select 0, %s8, %s6
  $region1: #{resnet_block_forward.4} parent=0
    #allocation3 [shape = 'u8[65536]{0}', space=vmem, size = 0x10000, scoped, tag = 'input window, operand 0']
    #allocation4 [shape = 's32[2]{0}', space=sflag, size = 0x8, scoped, tag = 'scoped memory for resnet_block_forward.4']
    %10 = vsyncpa [#allocation4], 0
    %s11 = scalar_lea.sflag [#allocation4], 1
    %12 = vsyncpa %s11, 0
    loop: start=0, step=1, limit=10
    $region2: #{resnet_block_forward.4} parent=1 // loop_pre_header
      _
    $region3: #{resnet_block_forward.4} parent=1 // loop_header
      %s14 = sphi 0, %s18
      %p15 = scmp.ge.s32.totalorder %s14, 10
      %s21 = sphi 0, %s33
      %s22 = sphi 0, %s29
      %s23 = sphi 0, %s21
      %s24 = sphi 0, %s22
      %s25 = sphi 0, %s23
      %s26 = sphi 0, %s24
      %s38 = sphi 0, %s40
      %s41 = sphi 0, %s38
      %s42 = sphi 0, %s41
      %s58 = sphi 0, %s42
      %s62 = sphi 0, %s62
      %s64 = sphi 0, %s62
      %s65 = sphi 0, %s64
      %s79 = sphi 0, %s65
      %s83 = sphi 0, %s83
      %s85 = sphi 0, %s83
      %s86 = sphi 0, %s85
      %s100 = sphi 0, %s86
      %s104 = sphi 0, %s104
      %s106 = sphi 0, %s104
      %s107 = sphi 0, %s106
      %s121 = sphi 0, %s107
      %s125 = sphi 0, %s125
      %s127 = sphi 0, %s125
      %s128 = sphi 0, %s127
      %s142 = sphi 0, %s128
      %s148 = sphi 0, %s150
      %s151 = sphi 0, %s148
      %s152 = sphi 0, %s151
      %s168 = sphi 0, %s152
    $region4: #{resnet_block_forward.4} parent=1 // loop_header_branch
      %17 = sbr.rel (%p15) target = $region8
    $region5: #{resnet_block_forward.4} parent=1 // loop_body
      %s19 = ssub.s32 %s14, 1
      %s20 = ssub.s32 %s14, 2
      %s27 = sadd.s32 1, %s22
      %p28 = scmp.ge.s32.totalorder %s27, 4
      %s29 = scalar_select %p28, 0, %s27
      %s30 = sadd.s32 1, %s21
      %s31 = scalar_select %p28, %s30, %s21
      %p32 = scmp.ge.s32.totalorder %s31, 2
      %s33 = scalar_select %p32, 0, %s31
      %s34 = ssub.s32 %s21, %s33
      %s35 = ssub.s32 %s22, %s29
      %s36 = sor.u32 %s34, %s35
      %p37 = scmp.eq.s32.totalorder %s36, 0
      %s39 = sadd.s32 %s38, 1
      %s40 = scalar_select %p37, %s38, %s39
      %p43 = pneg %p37
      %p44 = scmp.eq.s32.totalorder %s14, 7
      %p45 = por %p43, %p44
      %p46 = scmp.ne.s32.totalorder %s38, %s41
      %p47 = scmp.eq.s32.totalorder %s14, 0
      %p48 = por %p46, %p47
      %p49 = scmp.ne.s32.totalorder %s38, %s41
      %p50 = scmp.eq.s32.totalorder %s19, 7
      %p51 = por %p49, %p50
      %p52 = scmp.ne.s32.totalorder %s41, %s42
      %p53 = scmp.eq.s32.totalorder %s19, 0
      %p54 = por %p52, %p53
      %p55 = scmp.ne.s32.totalorder %s41, %s42
      %p56 = scmp.eq.s32.totalorder %s20, 7
      %p57 = por %p55, %p56
      %p59 = scmp.ne.s32.totalorder %s42, %s58
      %p60 = scmp.eq.s32.totalorder %s20, 0
      %p61 = por %p59, %p60
      %s63 = sadd.s32 %s62, 1
      %p66 = scmp.eq.s32.totalorder %s14, 7
      %p67 = scmp.ne.s32.totalorder %s62, %s64
      %p68 = scmp.eq.s32.totalorder %s14, 0
      %p69 = por %p67, %p68
      %p70 = scmp.ne.s32.totalorder %s62, %s64
      %p71 = scmp.eq.s32.totalorder %s19, 7
      %p72 = por %p70, %p71
      %p73 = scmp.ne.s32.totalorder %s64, %s65
      %p74 = scmp.eq.s32.totalorder %s19, 0
      %p75 = por %p73, %p74
      %p76 = scmp.ne.s32.totalorder %s64, %s65
      %p77 = scmp.eq.s32.totalorder %s20, 7
      %p78 = por %p76, %p77
      %p80 = scmp.ne.s32.totalorder %s65, %s79
      %p81 = scmp.eq.s32.totalorder %s20, 0
      %p82 = por %p80, %p81
      %s84 = sadd.s32 %s83, 1
      %p87 = scmp.eq.s32.totalorder %s14, 7
      %p88 = scmp.ne.s32.totalorder %s83, %s85
      %p89 = scmp.eq.s32.totalorder %s14, 0
      %p90 = por %p88, %p89
      %p91 = scmp.ne.s32.totalorder %s83, %s85
      %p92 = scmp.eq.s32.totalorder %s19, 7
      %p93 = por %p91, %p92
      %p94 = scmp.ne.s32.totalorder %s85, %s86
      %p95 = scmp.eq.s32.totalorder %s19, 0
      %p96 = por %p94, %p95
      %p97 = scmp.ne.s32.totalorder %s85, %s86
      %p98 = scmp.eq.s32.totalorder %s20, 7
      %p99 = por %p97, %p98
      %p101 = scmp.ne.s32.totalorder %s86, %s100
      %p102 = scmp.eq.s32.totalorder %s20, 0
      %p103 = por %p101, %p102
      %s105 = sadd.s32 %s104, 1
      %p108 = scmp.eq.s32.totalorder %s14, 7
      %p109 = scmp.ne.s32.totalorder %s104, %s106
      %p110 = scmp.eq.s32.totalorder %s14, 0
      %p111 = por %p109, %p110
      %p112 = scmp.ne.s32.totalorder %s104, %s106
      %p113 = scmp.eq.s32.totalorder %s19, 7
      %p114 = por %p112, %p113
      %p115 = scmp.ne.s32.totalorder %s106, %s107
      %p116 = scmp.eq.s32.totalorder %s19, 0
      %p117 = por %p115, %p116
      %p118 = scmp.ne.s32.totalorder %s106, %s107
      %p119 = scmp.eq.s32.totalorder %s20, 7
      %p120 = por %p118, %p119
      %p122 = scmp.ne.s32.totalorder %s107, %s121
      %p123 = scmp.eq.s32.totalorder %s20, 0
      %p124 = por %p122, %p123
      %s126 = sadd.s32 %s125, 1
      %p129 = scmp.eq.s32.totalorder %s14, 7
      %p130 = scmp.ne.s32.totalorder %s125, %s127
      %p131 = scmp.eq.s32.totalorder %s14, 0
      %p132 = por %p130, %p131
      %p133 = scmp.ne.s32.totalorder %s125, %s127
      %p134 = scmp.eq.s32.totalorder %s19, 7
      %p135 = por %p133, %p134
      %p136 = scmp.ne.s32.totalorder %s127, %s128
      %p137 = scmp.eq.s32.totalorder %s19, 0
      %p138 = por %p136, %p137
      %p139 = scmp.ne.s32.totalorder %s127, %s128
      %p140 = scmp.eq.s32.totalorder %s20, 7
      %p141 = por %p139, %p140
      %p143 = scmp.ne.s32.totalorder %s128, %s142
      %p144 = scmp.eq.s32.totalorder %s20, 0
      %p145 = por %p143, %p144
      %s146 = ssub.s32 %s21, %s33
      %p147 = scmp.eq.s32.totalorder %s146, 0
      %s149 = sadd.s32 %s148, 1
      %s150 = scalar_select %p147, %s148, %s149
      %p153 = pneg %p147
      %p154 = scmp.eq.s32.totalorder %s14, 7
      %p155 = por %p153, %p154
      %p156 = scmp.ne.s32.totalorder %s148, %s151
      %p157 = scmp.eq.s32.totalorder %s14, 0
      %p158 = por %p156, %p157
      %p159 = scmp.ne.s32.totalorder %s148, %s151
      %p160 = scmp.eq.s32.totalorder %s19, 7
      %p161 = por %p159, %p160
      %p162 = scmp.ne.s32.totalorder %s151, %s152
      %p163 = scmp.eq.s32.totalorder %s19, 0
      %p164 = por %p162, %p163
      %p165 = scmp.ne.s32.totalorder %s151, %s152
      %p166 = scmp.eq.s32.totalorder %s20, 7
      %p167 = por %p165, %p166
      %p169 = scmp.ne.s32.totalorder %s152, %s168
      %p170 = scmp.eq.s32.totalorder %s20, 0
      %p171 = por %p169, %p170
      %p172 = scmp.le.s32.totalorder 1, %s14
      %p173 = scmp.lt.s32.totalorder %s14, 9
      %p174 = pnand %p172, %p173
      %p175 = pneg %p174
      // Predicated region
      $region9: #{resnet_block_forward.4} parent=5 // pred_check
        _
      $region10: #{resnet_block_forward.4} parent=5 // pred_check_branch
        %177 = sbr.rel (%p174) target = $region12
      $region11: #{resnet_block_forward.4} parent=5 // pred_region
        %s178 = ssub.s32 %s14, 1
        // Predicated region
        $region13: #{resnet_block_forward.4} parent=11 // pred_check
          %p179 = pneg %p75
        $region14: #{resnet_block_forward.4} parent=11 // pred_check_branch
          %181 = sbr.rel (%p179) target = $region16
        $region15: #{resnet_block_forward.4} parent=11 // pred_region
          _
        $region16: #{resnet_block_forward.4} parent=11 // pred_fallthru
          _
        // Predicated region
        $region17: #{resnet_block_forward.4} parent=11 // pred_check
          %p182 = pneg %p96
        $region18: #{resnet_block_forward.4} parent=11 // pred_check_branch
          %184 = sbr.rel (%p182) target = $region20
        $region19: #{resnet_block_forward.4} parent=11 // pred_region
          _
        $region20: #{resnet_block_forward.4} parent=11 // pred_fallthru
          _
        // Predicated region
        $region21: #{resnet_block_forward.4} parent=11 // pred_check
          %p185 = pneg %p117
        $region22: #{resnet_block_forward.4} parent=11 // pred_check_branch
          %187 = sbr.rel (%p185) target = $region24
        $region23: #{resnet_block_forward.4} parent=11 // pred_region
          _
        $region24: #{resnet_block_forward.4} parent=11 // pred_fallthru
          _
        // Predicated region
        $region25: #{resnet_block_forward.4} parent=11 // pred_check
          %p188 = pneg %p138
        $region26: #{resnet_block_forward.4} parent=11 // pred_check_branch
          %190 = sbr.rel (%p188) target = $region28
        $region27: #{resnet_block_forward.4} parent=11 // pred_region
          _
        $region28: #{resnet_block_forward.4} parent=11 // pred_fallthru
          _
      $region12: #{resnet_block_forward.4} parent=5 // pred_fallthru
        _
      %p191 = scmp.lt.s32.totalorder %s14, 8
      // Predicated region
      $region29: #{resnet_block_forward.4} parent=5 // pred_check
        %p192 = pneg %p191
      $region30: #{resnet_block_forward.4} parent=5 // pred_check_branch
        %194 = sbr.rel (%p192) target = $region32
      $region31: #{resnet_block_forward.4} parent=5 // pred_region
        // Predicated region
        $region33: #{resnet_block_forward.4} parent=31 // pred_check
          %p195 = pneg %p48
        $region34: #{resnet_block_forward.4} parent=31 // pred_check_branch
          %197 = sbr.rel (%p195) target = $region36
        $region35: #{resnet_block_forward.4} parent=31 // pred_region
          %s198 = sand.u32 %s38, 1
          %s199 = scalar_lea.sflag [#allocation4], %s198
          %s200 = sand.u32 %s38, 1
          %s201 = smul.addr %s200, 64
          %s202 = scalar_lea.vmem [#allocation3], %s201
          %s203 = smul.u32 8, %s22
          %s205 = ssub.s32 1024, 1024
          %206 = vsyncadd %s199, %s205
          %s207 = smul.addr %s21, 32
          %s208 = sadd.s32 %s203, %s207
          %s209 = smul.addr %s208, 128
          %s210 = scalar_lea.hbm %s0, %s209
          %s211 = sshll.u32 %s202, 4
          %s212 = int_to_ptr.vmem [resolvable:$true] %s211
          %217 = dma.hbm_to_vmem [thread:$0]  %s210, 1024, %s212, %s199, 128, 128, 8
        $region36: #{resnet_block_forward.4} parent=31 // pred_fallthru
          _
      $region32: #{resnet_block_forward.4} parent=5 // pred_fallthru
        _
      %p218 = scmp.le.s32.totalorder 1, %s14
      %p219 = scmp.lt.s32.totalorder %s14, 9
      %p220 = pnand %p218, %p219
      %p221 = pneg %p220
      // Predicated region
      $region37: #{resnet_block_forward.4} parent=5 // pred_check
        _
      $region38: #{resnet_block_forward.4} parent=5 // pred_check_branch
        %223 = sbr.rel (%p220) target = $region40
      $region39: #{resnet_block_forward.4} parent=5 // pred_region
        %s224 = ssub.s32 %s14, 1
        %s225 = sand.u32 %s41, 1
        %s226 = scalar_lea.sflag [#allocation4], %s225
        %s227 = sand.u32 %s41, 1
        %s228 = smul.addr %s227, 64
        %s229 = scalar_lea.vmem [#allocation3], %s228
        // Predicated region
        $region41: #{resnet_block_forward.4} parent=39 // pred_check
          %p230 = pneg %p54
        $region42: #{resnet_block_forward.4} parent=39 // pred_check_branch
          %232 = sbr.rel (%p230) target = $region44
        $region43: #{resnet_block_forward.4} parent=39 // pred_region
          %233 = dma.done %s226, 1024
        $region44: #{resnet_block_forward.4} parent=39 // pred_fallthru
          _
        %s234 = sand.u32 %s41, 1
        %s235 = scalar_lea.sflag [#allocation4], %s234
        %s236 = sand.u32 %s41, 1
        %s237 = smul.addr %s236, 64
        %s238 = scalar_lea.vmem [#allocation3], %s237
        %p239 = pneg %p54
        %p240 = pneg %p51
        %p241 = pneg %p75
        %p242 = pneg %p72
        %p243 = pneg %p96
        %p244 = pneg %p93
        %p245 = pneg %p117
        %p246 = pneg %p114
        %p247 = pneg %p138
        %p248 = pneg %p135
        %p249 = pneg %p164
        %p250 = pneg %p161
        %p251 = scmp.lt.s32.totalorder %s23, 1
        %s252 = scalar_select %p251, %s23, 1
        %s253 = smul.addr %s252, 2
        %s254 = scalar_lea.vmem %s5, %s253
        %s255 = smul.u32 8, %s24
        %p256 = scmp.lt.s32.totalorder %s23, 1
        %s257 = scalar_select %p256, %s23, 1
        %s258 = smul.addr %s257, 2
        %s259 = scalar_lea.vmem %s5, %s258
        %p260 = scmp.eq.s32.totalorder %s24, 0
        // Predicated region
        $region45: #{resnet_block_forward.4} parent=39 // pred_check
          %p261 = pneg %p260
        $region46: #{resnet_block_forward.4} parent=39 // pred_check_branch
          %263 = sbr.rel (%p261) target = $region48
        $region47: #{resnet_block_forward.4} parent=39 // pred_region
          %264 = vst [vmem:[#allocation2] sm:$0x3] 0.0
        $region48: #{resnet_block_forward.4} parent=39 // pred_fallthru
          _
        %v265 = vld [vmem:[%s229] sm:$0xff]
        %v266 = vld [vmem:[%s229 + $0x8] sm:$0xff]
        %v267 = vld [vmem:[%s229 + $0x10] sm:$0xff]
        %v268 = vld [vmem:[%s229 + $0x18] sm:$0xff]
        %v269 = vld [vmem:[%s229 + $0x20] sm:$0xff]
        %v270 = vld [vmem:[%s229 + $0x28] sm:$0xff]
        %v271 = vld [vmem:[%s229 + $0x30] sm:$0xff]
        %v272 = vld [vmem:[%s229 + $0x38] sm:$0xff]
        %v273 = vld [vmem:[#allocation2] sm:$0x3]
        %v274 = vadd.f32 %v265, %v266
        %v275 = vadd.f32 %v274, %v267
        %v276 = vadd.f32 %v275, %v268
        %v277 = vadd.f32 %v276, %v269
        %v278 = vadd.f32 %v277, %v270
        %v279 = vadd.f32 %v278, %v271
        %v280 = vadd.f32 %v279, %v272
        %v281 = vrot.slane %v280, 4
        %v282 = vadd.f32 %v280, %v281
        %v283 = vrot.slane %v282, 2
        %v284 = vadd.f32 %v282, %v283
        %v285 = vrot.slane %v284, 1
        %v286 = vadd.f32 %v284, %v285
        %v287 = vmul.f32 %v265, %v265
        %v288 = vmul.f32 %v266, %v266
        %v289 = vmul.f32 %v267, %v267
        %v290 = vmul.f32 %v268, %v268
        %v291 = vmul.f32 %v269, %v269
        %v292 = vmul.f32 %v270, %v270
        %v293 = vmul.f32 %v271, %v271
        %v294 = vmul.f32 %v272, %v272
        %v295 = vadd.f32 %v287, %v288
        %v296 = vadd.f32 %v295, %v289
        %v297 = vadd.f32 %v296, %v290
        %v298 = vadd.f32 %v297, %v291
        %v299 = vadd.f32 %v298, %v292
        %v300 = vadd.f32 %v299, %v293
        %v301 = vadd.f32 %v300, %v294
        %v302 = vrot.slane %v301, 4
        %v303 = vadd.f32 %v301, %v302
        %v304 = vrot.slane %v303, 2
        %v305 = vadd.f32 %v303, %v304
        %v306 = vrot.slane %v305, 1
        %v307 = vadd.f32 %v305, %v306
        %vm308 = vcmask 1040384
        %v309 = vsel %vm308, %v286, %v307
        %v310 = vadd.f32 %v273, %v309
        %311 = vst [vmem:[#allocation2] sm:$0x3] %v310
        %p312 = scmp.eq.s32.totalorder %s24, 3
        // Predicated region
        $region49: #{resnet_block_forward.4} parent=39 // pred_check
          %p313 = pneg %p312
        $region50: #{resnet_block_forward.4} parent=39 // pred_check_branch
          %315 = sbr.rel (%p313) target = $region52
        $region51: #{resnet_block_forward.4} parent=39 // pred_region
          %v316 = vld [vmem:[#allocation2] sm:$0x1]
          %v317 = vld [vmem:[#allocation2 + $0x1] sm:$0x1]
          %v318 = vld [vmem:[%s3] sm:$0xff]
          %v319 = vld [vmem:[%s3 + $0x8] sm:$0xff]
          %v320 = vld [vmem:[%s3 + $0x10] sm:$0xff]
          %v321 = vld [vmem:[%s3 + $0x18] sm:$0xff]
          %v322 = vld [vmem:[%s3 + $0x20] sm:$0xff]
          %v323 = vld [vmem:[%s3 + $0x28] sm:$0xff]
          %v324 = vld [vmem:[%s3 + $0x30] sm:$0xff]
          %v325 = vld [vmem:[%s3 + $0x38] sm:$0xff]
          %v326 = vld [vmem:[%s3 + $0x40] sm:$0xff]
          %v327 = vld [vmem:[%s3 + $0x48] sm:$0xff]
          %v328 = vld [vmem:[%s3 + $0x50] sm:$0xff]
          %v329 = vld [vmem:[%s3 + $0x58] sm:$0xff]
          %v330 = vld [vmem:[%s3 + $0x60] sm:$0xff]
          %v331 = vld [vmem:[%s3 + $0x68] sm:$0xff]
          %v332 = vld [vmem:[%s3 + $0x70] sm:$0xff]
          %v333 = vld [vmem:[%s3 + $0x78] sm:$0xff]
          %334 = vmatprep.subr.mxu0 0.0
          %335 = vmatpush1.msra.mxu0 %v318
          %336 = vmatprep.subr.mxu0 0.0
          %337 = vmatpush1.msra.mxu0 %v319
          %338 = vmatprep.subr.mxu0 0.0
          %339 = vmatpush1.msra.mxu0 %v320
          %340 = vmatprep.subr.mxu0 0.0
          %341 = vmatpush1.msra.mxu0 %v321
          %342 = vmatprep.subr.mxu0 0.0
          %343 = vmatpush1.msra.mxu0 %v322
          %344 = vmatprep.subr.mxu0 0.0
          %345 = vmatpush1.msra.mxu0 %v323
          %346 = vmatprep.subr.mxu0 0.0
          %347 = vmatpush1.msra.mxu0 %v324
          %348 = vmatprep.subr.mxu0 0.0
          %349 = vmatpush1.msra.mxu0 %v325
          %350 = vmatprep.subr.mxu0 0.0
          %351 = vmatpush1.msra.mxu0 %v326
          %352 = vmatprep.subr.mxu0 0.0
          %353 = vmatpush1.msra.mxu0 %v327
          %354 = vmatprep.subr.mxu0 0.0
          %355 = vmatpush1.msra.mxu0 %v328
          %356 = vmatprep.subr.mxu0 0.0
          %357 = vmatpush1.msra.mxu0 %v329
          %358 = vmatprep.subr.mxu0 0.0
          %359 = vmatpush1.msra.mxu0 %v330
          %360 = vmatprep.subr.mxu0 0.0
          %361 = vmatpush1.msra.mxu0 %v331
          %362 = vmatprep.subr.mxu0 0.0
          %363 = vmatpush1.msra.mxu0 %v332
          %364 = vmatprep.subr.mxu0 0.0
          %365 = vmatpush1.msra.mxu0 %v333
          %366 = vmatprep.subr.mxu0 0.0
          %367 = vmatpush1.msra.mxu0 0.0
          %368 = vmatprep.subr.mxu0 0.0
          %369 = vmatpush1.msra.mxu0 0.0
          %370 = vmatprep.subr.mxu0 0.0
          %371 = vmatpush1.msra.mxu0 0.0
          %372 = vmatprep.subr.mxu0 0.0
          %373 = vmatpush1.msra.mxu0 0.0
          %374 = vmatprep.subr.mxu0 0.0
          %375 = vmatpush1.msra.mxu0 0.0
          %376 = vmatprep.subr.mxu0 0.0
          %377 = vmatpush1.msra.mxu0 0.0
          %378 = vmatprep.subr.mxu0 0.0
          %379 = vmatpush1.msra.mxu0 0.0
          %380 = vmatprep.subr.mxu0 0.0
          %381 = vmatpush1.msra.mxu0 0.0
          %382 = vmatprep.subr.mxu0 0.0
          %383 = vmatpush1.msra.mxu0 0.0
          %384 = vmatprep.subr.mxu0 0.0
          %385 = vmatpush1.msra.mxu0 0.0
          %386 = vmatprep.subr.mxu0 0.0
          %387 = vmatpush1.msra.mxu0 0.0
          %388 = vmatprep.subr.mxu0 0.0
          %389 = vmatpush1.msra.mxu0 0.0
          %390 = vmatprep.subr.mxu0 0.0
          %391 = vmatpush1.msra.mxu0 0.0
          %392 = vmatprep.subr.mxu0 0.0
          %393 = vmatpush1.msra.mxu0 0.0
          %394 = vmatprep.subr.mxu0 0.0
          %395 = vmatpush1.msra.mxu0 0.0
          %396 = vmatprep.subr.mxu0 0.0
          %397 = vmatpush1.msra.mxu0 0.0
          %398 = vmatprep.mubr.f32.mxu0 0.0
          %399 = vmatmul.mubr.f32.gmra.mrb[0].mxu0 %v316
          %v400 = vpop.f32.mrb[0].mxu0
          %v401 = vadd.f32 0.0, %v400
          %v402 = vpop.f32.mrb[0].mxu0
          %403 = vdwg.mxu0
          %404 = vmatprep.subr.mxu0 0.0
          %405 = vmatpush1.msra.mxu0 %v318
          %406 = vmatprep.subr.mxu0 0.0
          %407 = vmatpush1.msra.mxu0 %v319
          %408 = vmatprep.subr.mxu0 0.0
          %409 = vmatpush1.msra.mxu0 %v320
          %410 = vmatprep.subr.mxu0 0.0
          %411 = vmatpush1.msra.mxu0 %v321
          %412 = vmatprep.subr.mxu0 0.0
          %413 = vmatpush1.msra.mxu0 %v322
          %414 = vmatprep.subr.mxu0 0.0
          %415 = vmatpush1.msra.mxu0 %v323
          %416 = vmatprep.subr.mxu0 0.0
          %417 = vmatpush1.msra.mxu0 %v324
          %418 = vmatprep.subr.mxu0 0.0
          %419 = vmatpush1.msra.mxu0 %v325
          %420 = vmatprep.subr.mxu0 0.0
          %421 = vmatpush1.msra.mxu0 %v326
          %422 = vmatprep.subr.mxu0 0.0
          %423 = vmatpush1.msra.mxu0 %v327
          %424 = vmatprep.subr.mxu0 0.0
          %425 = vmatpush1.msra.mxu0 %v328
          %426 = vmatprep.subr.mxu0 0.0
          %427 = vmatpush1.msra.mxu0 %v329
          %428 = vmatprep.subr.mxu0 0.0
          %429 = vmatpush1.msra.mxu0 %v330
          %430 = vmatprep.subr.mxu0 0.0
          %431 = vmatpush1.msra.mxu0 %v331
          %432 = vmatprep.subr.mxu0 0.0
          %433 = vmatpush1.msra.mxu0 %v332
          %434 = vmatprep.subr.mxu0 0.0
          %435 = vmatpush1.msra.mxu0 %v333
          %436 = vmatprep.subr.mxu0 0.0
          %437 = vmatpush1.msra.mxu0 0.0
          %438 = vmatprep.subr.mxu0 0.0
          %439 = vmatpush1.msra.mxu0 0.0
          %440 = vmatprep.subr.mxu0 0.0
          %441 = vmatpush1.msra.mxu0 0.0
          %442 = vmatprep.subr.mxu0 0.0
          %443 = vmatpush1.msra.mxu0 0.0
          %444 = vmatprep.subr.mxu0 0.0
          %445 = vmatpush1.msra.mxu0 0.0
          %446 = vmatprep.subr.mxu0 0.0
          %447 = vmatpush1.msra.mxu0 0.0
          %448 = vmatprep.subr.mxu0 0.0
          %449 = vmatpush1.msra.mxu0 0.0
          %450 = vmatprep.subr.mxu0 0.0
          %451 = vmatpush1.msra.mxu0 0.0
          %452 = vmatprep.subr.mxu0 0.0
          %453 = vmatpush1.msra.mxu0 0.0
          %454 = vmatprep.subr.mxu0 0.0
          %455 = vmatpush1.msra.mxu0 0.0
          %456 = vmatprep.subr.mxu0 0.0
          %457 = vmatpush1.msra.mxu0 0.0
          %458 = vmatprep.subr.mxu0 0.0
          %459 = vmatpush1.msra.mxu0 0.0
          %460 = vmatprep.subr.mxu0 0.0
          %461 = vmatpush1.msra.mxu0 0.0
          %462 = vmatprep.subr.mxu0 0.0
          %463 = vmatpush1.msra.mxu0 0.0
          %464 = vmatprep.subr.mxu0 0.0
          %465 = vmatpush1.msra.mxu0 0.0
          %466 = vmatprep.subr.mxu0 0.0
          %467 = vmatpush1.msra.mxu0 0.0
          %468 = vmatprep.mubr.f32.mxu0 0.0
          %469 = vmatmul.mubr.f32.gmra.mrb[0].mxu0 %v317
          %v470 = vpop.f32.mrb[0].mxu0
          %v471 = vadd.f32 0.0, %v470
          %v472 = vpop.f32.mrb[0].mxu0
          %473 = vdwg.mxu0
          %v474 = vrcp.pop 1024.0
          %v475 = vmul.f32 %v401, %v474
          %v476 = vmul.f32 %v471, %v474
          %v477 = vmul.f32 %v475, %v475
          %v478 = vsub.f32 %v476, %v477
          %v479 = vmax.f32 %v478, 0.0
          %v480 = vadd.f32 %v479, 1e-06
          %v481 = vrsqrt.pop %v480
          %v482 = vld [vmem:[%s4] sm:$0xff]
          %v483 = vld [vmem:[%s4 + $0x8] sm:$0xff]
          %v484 = vld [vmem:[%s4 + $0x10] sm:$0xff]
          %v485 = vld [vmem:[%s4 + $0x18] sm:$0xff]
          %vm486 = vcmask 261120
          %v488 = vsel %vm486, %v475, 0
          %490 = vmatprep.subr.mxu0 0.0
          %491 = vmatpush1.msra.mxu0 %v482
          %492 = vmatprep.subr.mxu0 0.0
          %493 = vmatpush1.msra.mxu0 %v483
          %494 = vmatprep.subr.mxu0 0.0
          %495 = vmatpush1.msra.mxu0 %v484
          %496 = vmatprep.subr.mxu0 0.0
          %497 = vmatpush1.msra.mxu0 %v485
          %498 = vmatprep.subr.mxu0 0.0
          %499 = vmatpush1.msra.mxu0 0.0
          %500 = vmatprep.subr.mxu0 0.0
          %501 = vmatpush1.msra.mxu0 0.0
          %502 = vmatprep.subr.mxu0 0.0
          %503 = vmatpush1.msra.mxu0 0.0
          %504 = vmatprep.subr.mxu0 0.0
          %505 = vmatpush1.msra.mxu0 0.0
          %506 = vmatprep.subr.mxu0 0.0
          %507 = vmatpush1.msra.mxu0 0.0
          %508 = vmatprep.subr.mxu0 0.0
          %509 = vmatpush1.msra.mxu0 0.0
          %510 = vmatprep.subr.mxu0 0.0
          %511 = vmatpush1.msra.mxu0 0.0
          %512 = vmatprep.subr.mxu0 0.0
          %513 = vmatpush1.msra.mxu0 0.0
          %514 = vmatprep.subr.mxu0 0.0
          %515 = vmatpush1.msra.mxu0 0.0
          %516 = vmatprep.subr.mxu0 0.0
          %517 = vmatpush1.msra.mxu0 0.0
          %518 = vmatprep.subr.mxu0 0.0
          %519 = vmatpush1.msra.mxu0 0.0
          %520 = vmatprep.subr.mxu0 0.0
          %521 = vmatpush1.msra.mxu0 0.0
          %522 = vmatprep.subr.mxu0 0.0
          %523 = vmatpush1.msra.mxu0 0.0
          %524 = vmatprep.subr.mxu0 0.0
          %525 = vmatpush1.msra.mxu0 0.0
          %526 = vmatprep.subr.mxu0 0.0
          %527 = vmatpush1.msra.mxu0 0.0
          %528 = vmatprep.subr.mxu0 0.0
          %529 = vmatpush1.msra.mxu0 0.0
          %530 = vmatprep.subr.mxu0 0.0
          %531 = vmatpush1.msra.mxu0 0.0
          %532 = vmatprep.subr.mxu0 0.0
          %533 = vmatpush1.msra.mxu0 0.0
          %534 = vmatprep.subr.mxu0 0.0
          %535 = vmatpush1.msra.mxu0 0.0
          %536 = vmatprep.subr.mxu0 0.0
          %537 = vmatpush1.msra.mxu0 0.0
          %538 = vmatprep.subr.mxu0 0.0
          %539 = vmatpush1.msra.mxu0 0.0
          %540 = vmatprep.subr.mxu0 0.0
          %541 = vmatpush1.msra.mxu0 0.0
          %542 = vmatprep.subr.mxu0 0.0
          %543 = vmatpush1.msra.mxu0 0.0
          %544 = vmatprep.subr.mxu0 0.0
          %545 = vmatpush1.msra.mxu0 0.0
          %546 = vmatprep.subr.mxu0 0.0
          %547 = vmatpush1.msra.mxu0 0.0
          %548 = vmatprep.subr.mxu0 0.0
          %549 = vmatpush1.msra.mxu0 0.0
          %550 = vmatprep.subr.mxu0 0.0
          %551 = vmatpush1.msra.mxu0 0.0
          %552 = vmatprep.subr.mxu0 0.0
          %553 = vmatpush1.msra.mxu0 0.0
          %554 = vmatprep.mubr.f32.mxu0 0.0
          %555 = vmatmul.mubr.f32.gmra.mrb[0].mxu0 %v488
          %v556 = vpop.f32.mrb[0].mxu0
          %v557 = vadd.f32 0.0, %v556
          %v558 = vpop.f32.mrb[0].mxu0
          %559 = vdwg.mxu0
          %v561 = vsel %vm486, %v481, 0
          %563 = vmatprep.subr.mxu0 0.0
          %564 = vmatpush1.msra.mxu0 %v482
          %565 = vmatprep.subr.mxu0 0.0
          %566 = vmatpush1.msra.mxu0 %v483
          %567 = vmatprep.subr.mxu0 0.0
          %568 = vmatpush1.msra.mxu0 %v484
          %569 = vmatprep.subr.mxu0 0.0
          %570 = vmatpush1.msra.mxu0 %v485
          %571 = vmatprep.subr.mxu0 0.0
          %572 = vmatpush1.msra.mxu0 0.0
          %573 = vmatprep.subr.mxu0 0.0
          %574 = vmatpush1.msra.mxu0 0.0
          %575 = vmatprep.subr.mxu0 0.0
          %576 = vmatpush1.msra.mxu0 0.0
          %577 = vmatprep.subr.mxu0 0.0
          %578 = vmatpush1.msra.mxu0 0.0
          %579 = vmatprep.subr.mxu0 0.0
          %580 = vmatpush1.msra.mxu0 0.0
          %581 = vmatprep.subr.mxu0 0.0
          %582 = vmatpush1.msra.mxu0 0.0
          %583 = vmatprep.subr.mxu0 0.0
          %584 = vmatpush1.msra.mxu0 0.0
          %585 = vmatprep.subr.mxu0 0.0
          %586 = vmatpush1.msra.mxu0 0.0
          %587 = vmatprep.subr.mxu0 0.0
          %588 = vmatpush1.msra.mxu0 0.0
          %589 = vmatprep.subr.mxu0 0.0
          %590 = vmatpush1.msra.mxu0 0.0
          %591 = vmatprep.subr.mxu0 0.0
          %592 = vmatpush1.msra.mxu0 0.0
          %593 = vmatprep.subr.mxu0 0.0
          %594 = vmatpush1.msra.mxu0 0.0
          %595 = vmatprep.subr.mxu0 0.0
          %596 = vmatpush1.msra.mxu0 0.0
          %597 = vmatprep.subr.mxu0 0.0
          %598 = vmatpush1.msra.mxu0 0.0
          %599 = vmatprep.subr.mxu0 0.0
          %600 = vmatpush1.msra.mxu0 0.0
          %601 = vmatprep.subr.mxu0 0.0
          %602 = vmatpush1.msra.mxu0 0.0
          %603 = vmatprep.subr.mxu0 0.0
          %604 = vmatpush1.msra.mxu0 0.0
          %605 = vmatprep.subr.mxu0 0.0
          %606 = vmatpush1.msra.mxu0 0.0
          %607 = vmatprep.subr.mxu0 0.0
          %608 = vmatpush1.msra.mxu0 0.0
          %609 = vmatprep.subr.mxu0 0.0
          %610 = vmatpush1.msra.mxu0 0.0
          %611 = vmatprep.subr.mxu0 0.0
          %612 = vmatpush1.msra.mxu0 0.0
          %613 = vmatprep.subr.mxu0 0.0
          %614 = vmatpush1.msra.mxu0 0.0
          %615 = vmatprep.subr.mxu0 0.0
          %616 = vmatpush1.msra.mxu0 0.0
          %617 = vmatprep.subr.mxu0 0.0
          %618 = vmatpush1.msra.mxu0 0.0
          %619 = vmatprep.subr.mxu0 0.0
          %620 = vmatpush1.msra.mxu0 0.0
          %621 = vmatprep.subr.mxu0 0.0
          %622 = vmatpush1.msra.mxu0 0.0
          %623 = vmatprep.subr.mxu0 0.0
          %624 = vmatpush1.msra.mxu0 0.0
          %625 = vmatprep.subr.mxu0 0.0
          %626 = vmatpush1.msra.mxu0 0.0
          %627 = vmatprep.mubr.f32.mxu0 0.0
          %628 = vmatmul.mubr.f32.gmra.mrb[0].mxu0 %v561
          %v629 = vpop.f32.mrb[0].mxu0
          %v630 = vadd.f32 0.0, %v629
          %v631 = vpop.f32.mrb[0].mxu0
          %632 = vdwg.mxu0
          %v633 = vld [vmem:[%s1] sm:$0x1]
          %v634 = vmul.f32 %v630, %v633
          %v635 = vld [vmem:[%s2] sm:$0x1]
          %v636 = vmul.f32 %v557, %v634
          %v637 = vsub.f32 %v635, %v636
          %v639 = vlaneseq
          %v640 = vshrl.u32 %v639, 7
          %v641 = vsub.s32 0, %v640
          %v642 = vrot.slane %v637, %v641
          %v644 = vsel %vm308, %v634, %v642
          %645 = vst [vmem:[%s259] sm:$0x3] %v644
        $region52: #{resnet_block_forward.4} parent=39 // pred_fallthru
          _
        %p646 = scmp.lt.s32.totalorder %s23, 1
        %s647 = scalar_select %p646, %s23, 1
        %s648 = smul.addr %s647, 2
        %s649 = scalar_lea.vmem %s5, %s648
        // Predicated region
        $region53: #{resnet_block_forward.4} parent=39 // pred_check
          %p650 = pneg %p161
        $region54: #{resnet_block_forward.4} parent=39 // pred_check_branch
          %652 = sbr.rel (%p650) target = $region56
        $region55: #{resnet_block_forward.4} parent=39 // pred_region
          _
        $region56: #{resnet_block_forward.4} parent=39 // pred_fallthru
          _
      $region40: #{resnet_block_forward.4} parent=5 // pred_fallthru
        _
      %p653 = scmp.le.s32.totalorder 2, %s14
      // Predicated region
      $region57: #{resnet_block_forward.4} parent=5 // pred_check
        %p654 = pneg %p653
      $region58: #{resnet_block_forward.4} parent=5 // pred_check_branch
        %656 = sbr.rel (%p654) target = $region60
      $region59: #{resnet_block_forward.4} parent=5 // pred_region
        %s657 = ssub.s32 %s14, 2
        // Predicated region
        $region61: #{resnet_block_forward.4} parent=59 // pred_check
          %p658 = pneg %p167
        $region62: #{resnet_block_forward.4} parent=59 // pred_check_branch
          %660 = sbr.rel (%p658) target = $region64
        $region63: #{resnet_block_forward.4} parent=59 // pred_region
          %p661 = scmp.lt.s32.totalorder %s25, 1
          %s662 = scalar_select %p661, %s25, 1
          %s663 = smul.addr %s662, 2
          %s664 = scalar_lea.vmem %s5, %s663
        $region64: #{resnet_block_forward.4} parent=59 // pred_fallthru
          _
      $region60: #{resnet_block_forward.4} parent=5 // pred_fallthru
        _
    $region6: #{resnet_block_forward.4} parent=1 // loop_footer
      %s18 = sadd.s32 1, %s14
    $region7: #{resnet_block_forward.4} parent=1 // loop_footer_branch
      %13 = sbr.rel target = $region3
    $region8: #{resnet_block_forward.4} parent=1 // loop_exit
      _
    %665 = vsyncpa [#allocation4], 1
    %s666 = scalar_lea.sflag [#allocation4], 1
    %667 = vsyncpa %s666, 1

// kernel: resnet_block_forward.5
$region0: #{resnet_block_forward.5}
  #allocation0 [shape = 'u32[]', space=smem, size = 0x4, offset = 0x4, fixed_abs, tag = 'smem constant byte address 0x4 - core index']
  #allocation1 [shape = 'u32[144,128]{1,0:T(1,128)}', space=vmem, size = 0x12000, scoped, tag = 'internal scratch']
  %s0 = inlined_call_operand.vmem [shape: f32[2,256,128], index: 0, kind: input, shape index: {}, may-alias: {0,1,2}]
  %s1 = inlined_call_operand.vmem [shape: f32[2,256,128], index: 1, kind: input, shape index: {}, may-alias: {0,1,2}]
  %s2 = inlined_call_operand.vmem [shape: f32[2,256,128], index: 2, kind: input, shape index: {}, may-alias: {0,1,2}]
  %s3 = inlined_call_operand.vmem [shape: f32[2,2,128], index: 3, kind: input, shape index: {}]
  %s4 = inlined_call_operand.vmem [shape: bf16[3,384,128], index: 4, kind: input, shape index: {}]
  %s5 = inlined_call_operand.vmem [shape: f32[2,1,128], index: 5, kind: input, shape index: {}]
  %s6 = inlined_call_operand.vmem [shape: bf16[2,256,128], index: 6, kind: output, shape index: {}]
  %s7 = sld [smem:[#allocation0]]
  $region57: #{resnet_block_forward.5} parent=0
    _
  %s9 = ssub.s32 1, %s7
  %s10 = scalar_select 0, %s9, %s7
  loop: start=0, step=1, limit=10
  $region2: #{resnet_block_forward.5} parent=0 // loop_pre_header
    _
  $region3: #{resnet_block_forward.5} parent=0 // loop_header
    %s12 = sphi 0, %s16
    %p13 = scmp.ge.s32.totalorder %s12, 10
    %s19 = sphi 0, %s31
    %s20 = sphi 0, %s27
    %s21 = sphi 0, %s19
    %s22 = sphi 0, %s20
    %s23 = sphi 0, %s21
    %s24 = sphi 0, %s22
    %s36 = sphi 0, %s38
    %s39 = sphi 0, %s36
    %s40 = sphi 0, %s39
    %s56 = sphi 0, %s40
    %s72 = sphi 0, %s74
    %s75 = sphi 0, %s72
    %s76 = sphi 0, %s75
    %s92 = sphi 0, %s76
    %s108 = sphi 0, %s110
    %s111 = sphi 0, %s108
    %s112 = sphi 0, %s111
    %s128 = sphi 0, %s112
    %s134 = sphi 0, %s136
    %s137 = sphi 0, %s134
    %s138 = sphi 0, %s137
    %s154 = sphi 0, %s138
    %s158 = sphi 0, %s158
    %s160 = sphi 0, %s158
    %s161 = sphi 0, %s160
    %s175 = sphi 0, %s161
    %s181 = sphi 0, %s183
    %s184 = sphi 0, %s181
    %s185 = sphi 0, %s184
    %s201 = sphi 0, %s185
    %s209 = sphi 0, %s211
    %s212 = sphi 0, %s209
    %s213 = sphi 0, %s212
    %s229 = sphi 0, %s213
  $region4: #{resnet_block_forward.5} parent=0 // loop_header_branch
    %15 = sbr.rel (%p13) target = $region8
  $region5: #{resnet_block_forward.5} parent=0 // loop_body
    %s17 = ssub.s32 %s12, 1
    %s18 = ssub.s32 %s12, 2
    %s25 = sadd.s32 1, %s20
    %p26 = scmp.ge.s32.totalorder %s25, 4
    %s27 = scalar_select %p26, 0, %s25
    %s28 = sadd.s32 1, %s19
    %s29 = scalar_select %p26, %s28, %s19
    %p30 = scmp.ge.s32.totalorder %s29, 2
    %s31 = scalar_select %p30, 0, %s29
    %s32 = ssub.s32 %s19, %s31
    %s33 = ssub.s32 %s20, %s27
    %s34 = sor.u32 %s32, %s33
    %p35 = scmp.eq.s32.totalorder %s34, 0
    %s37 = sadd.s32 %s36, 1
    %s38 = scalar_select %p35, %s36, %s37
    %p41 = pneg %p35
    %p42 = scmp.eq.s32.totalorder %s12, 7
    %p43 = por %p41, %p42
    %p44 = scmp.ne.s32.totalorder %s36, %s39
    %p45 = scmp.eq.s32.totalorder %s12, 0
    %p46 = por %p44, %p45
    %p47 = scmp.ne.s32.totalorder %s36, %s39
    %p48 = scmp.eq.s32.totalorder %s17, 7
    %p49 = por %p47, %p48
    %p50 = scmp.ne.s32.totalorder %s39, %s40
    %p51 = scmp.eq.s32.totalorder %s17, 0
    %p52 = por %p50, %p51
    %p53 = scmp.ne.s32.totalorder %s39, %s40
    %p54 = scmp.eq.s32.totalorder %s18, 7
    %p55 = por %p53, %p54
    %p57 = scmp.ne.s32.totalorder %s40, %s56
    %p58 = scmp.eq.s32.totalorder %s18, 0
    %p59 = por %p57, %p58
    %s60 = smul.u32 %s20, 4
    %s61 = ssub.s32 %s60, 1
    %p62 = scmp.gt.s32.totalorder %s61, 0
    %s63 = scalar_select %p62, %s61, 0
    %s64 = smul.u32 %s27, 4
    %s65 = ssub.s32 %s64, 1
    %p66 = scmp.gt.s32.totalorder %s65, 0
    %s67 = scalar_select %p66, %s65, 0
    %s68 = ssub.s32 %s19, %s31
    %s69 = ssub.s32 %s63, %s67
    %s70 = sor.u32 %s68, %s69
    %p71 = scmp.eq.s32.totalorder %s70, 0
    %s73 = sadd.s32 %s72, 1
    %s74 = scalar_select %p71, %s72, %s73
    %p77 = pneg %p71
    %p78 = scmp.eq.s32.totalorder %s12, 7
    %p79 = por %p77, %p78
    %p80 = scmp.ne.s32.totalorder %s72, %s75
    %p81 = scmp.eq.s32.totalorder %s12, 0
    %p82 = por %p80, %p81
    %p83 = scmp.ne.s32.totalorder %s72, %s75
    %p84 = scmp.eq.s32.totalorder %s17, 7
    %p85 = por %p83, %p84
    %p86 = scmp.ne.s32.totalorder %s75, %s76
    %p87 = scmp.eq.s32.totalorder %s17, 0
    %p88 = por %p86, %p87
    %p89 = scmp.ne.s32.totalorder %s75, %s76
    %p90 = scmp.eq.s32.totalorder %s18, 7
    %p91 = por %p89, %p90
    %p93 = scmp.ne.s32.totalorder %s76, %s92
    %p94 = scmp.eq.s32.totalorder %s18, 0
    %p95 = por %p93, %p94
    %s96 = sadd.s32 %s20, 1
    %s97 = smul.u32 %s96, 4
    %p98 = scmp.lt.s32.totalorder %s97, 15
    %s99 = scalar_select %p98, %s97, 15
    %s100 = sadd.s32 %s27, 1
    %s101 = smul.u32 %s100, 4
    %p102 = scmp.lt.s32.totalorder %s101, 15
    %s103 = scalar_select %p102, %s101, 15
    %s104 = ssub.s32 %s19, %s31
    %s105 = ssub.s32 %s99, %s103
    %s106 = sor.u32 %s104, %s105
    %p107 = scmp.eq.s32.totalorder %s106, 0
    %s109 = sadd.s32 %s108, 1
    %s110 = scalar_select %p107, %s108, %s109
    %p113 = pneg %p107
    %p114 = scmp.eq.s32.totalorder %s12, 7
    %p115 = por %p113, %p114
    %p116 = scmp.ne.s32.totalorder %s108, %s111
    %p117 = scmp.eq.s32.totalorder %s12, 0
    %p118 = por %p116, %p117
    %p119 = scmp.ne.s32.totalorder %s108, %s111
    %p120 = scmp.eq.s32.totalorder %s17, 7
    %p121 = por %p119, %p120
    %p122 = scmp.ne.s32.totalorder %s111, %s112
    %p123 = scmp.eq.s32.totalorder %s17, 0
    %p124 = por %p122, %p123
    %p125 = scmp.ne.s32.totalorder %s111, %s112
    %p126 = scmp.eq.s32.totalorder %s18, 7
    %p127 = por %p125, %p126
    %p129 = scmp.ne.s32.totalorder %s112, %s128
    %p130 = scmp.eq.s32.totalorder %s18, 0
    %p131 = por %p129, %p130
    %s132 = ssub.s32 %s19, %s31
    %p133 = scmp.eq.s32.totalorder %s132, 0
    %s135 = sadd.s32 %s134, 1
    %s136 = scalar_select %p133, %s134, %s135
    %p139 = pneg %p133
    %p140 = scmp.eq.s32.totalorder %s12, 7
    %p141 = por %p139, %p140
    %p142 = scmp.ne.s32.totalorder %s134, %s137
    %p143 = scmp.eq.s32.totalorder %s12, 0
    %p144 = por %p142, %p143
    %p145 = scmp.ne.s32.totalorder %s134, %s137
    %p146 = scmp.eq.s32.totalorder %s17, 7
    %p147 = por %p145, %p146
    %p148 = scmp.ne.s32.totalorder %s137, %s138
    %p149 = scmp.eq.s32.totalorder %s17, 0
    %p150 = por %p148, %p149
    %p151 = scmp.ne.s32.totalorder %s137, %s138
    %p152 = scmp.eq.s32.totalorder %s18, 7
    %p153 = por %p151, %p152
    %p155 = scmp.ne.s32.totalorder %s138, %s154
    %p156 = scmp.eq.s32.totalorder %s18, 0
    %p157 = por %p155, %p156
    %s159 = sadd.s32 %s158, 1
    %p162 = scmp.eq.s32.totalorder %s12, 7
    %p163 = scmp.ne.s32.totalorder %s158, %s160
    %p164 = scmp.eq.s32.totalorder %s12, 0
    %p165 = por %p163, %p164
    %p166 = scmp.ne.s32.totalorder %s158, %s160
    %p167 = scmp.eq.s32.totalorder %s17, 7
    %p168 = por %p166, %p167
    %p169 = scmp.ne.s32.totalorder %s160, %s161
    %p170 = scmp.eq.s32.totalorder %s17, 0
    %p171 = por %p169, %p170
    %p172 = scmp.ne.s32.totalorder %s160, %s161
    %p173 = scmp.eq.s32.totalorder %s18, 7
    %p174 = por %p172, %p173
    %p176 = scmp.ne.s32.totalorder %s161, %s175
    %p177 = scmp.eq.s32.totalorder %s18, 0
    %p178 = por %p176, %p177
    %s179 = ssub.s32 %s19, %s31
    %p180 = scmp.eq.s32.totalorder %s179, 0
    %s182 = sadd.s32 %s181, 1
    %s183 = scalar_select %p180, %s181, %s182
    %p186 = pneg %p180
    %p187 = scmp.eq.s32.totalorder %s12, 7
    %p188 = por %p186, %p187
    %p189 = scmp.ne.s32.totalorder %s181, %s184
    %p190 = scmp.eq.s32.totalorder %s12, 0
    %p191 = por %p189, %p190
    %p192 = scmp.ne.s32.totalorder %s181, %s184
    %p193 = scmp.eq.s32.totalorder %s17, 7
    %p194 = por %p192, %p193
    %p195 = scmp.ne.s32.totalorder %s184, %s185
    %p196 = scmp.eq.s32.totalorder %s17, 0
    %p197 = por %p195, %p196
    %p198 = scmp.ne.s32.totalorder %s184, %s185
    %p199 = scmp.eq.s32.totalorder %s18, 7
    %p200 = por %p198, %p199
    %p202 = scmp.ne.s32.totalorder %s185, %s201
    %p203 = scmp.eq.s32.totalorder %s18, 0
    %p204 = por %p202, %p203
    %s205 = ssub.s32 %s19, %s31
    %s206 = ssub.s32 %s20, %s27
    %s207 = sor.u32 %s205, %s206
    %p208 = scmp.eq.s32.totalorder %s207, 0
    %s210 = sadd.s32 %s209, 1
    %s211 = scalar_select %p208, %s209, %s210
    %p214 = pneg %p208
    %p215 = scmp.eq.s32.totalorder %s12, 7
    %p216 = por %p214, %p215
    %p217 = scmp.ne.s32.totalorder %s209, %s212
    %p218 = scmp.eq.s32.totalorder %s12, 0
    %p219 = por %p217, %p218
    %p220 = scmp.ne.s32.totalorder %s209, %s212
    %p221 = scmp.eq.s32.totalorder %s17, 7
    %p222 = por %p220, %p221
    %p223 = scmp.ne.s32.totalorder %s212, %s213
    %p224 = scmp.eq.s32.totalorder %s17, 0
    %p225 = por %p223, %p224
    %p226 = scmp.ne.s32.totalorder %s212, %s213
    %p227 = scmp.eq.s32.totalorder %s18, 7
    %p228 = por %p226, %p227
    %p230 = scmp.ne.s32.totalorder %s213, %s229
    %p231 = scmp.eq.s32.totalorder %s18, 0
    %p232 = por %p230, %p231
    %p233 = scmp.le.s32.totalorder 1, %s12
    %p234 = scmp.lt.s32.totalorder %s12, 9
    %p235 = pnand %p233, %p234
    %p236 = pneg %p235
    // Predicated region
    $region9: #{resnet_block_forward.5} parent=5 // pred_check
      _
    $region10: #{resnet_block_forward.5} parent=5 // pred_check_branch
      %238 = sbr.rel (%p235) target = $region12
    $region11: #{resnet_block_forward.5} parent=5 // pred_region
      %s239 = ssub.s32 %s12, 1
      // Predicated region
      $region13: #{resnet_block_forward.5} parent=11 // pred_check
        %p240 = pneg %p171
      $region14: #{resnet_block_forward.5} parent=11 // pred_check_branch
        %242 = sbr.rel (%p240) target = $region16
      $region15: #{resnet_block_forward.5} parent=11 // pred_region
        _
      $region16: #{resnet_block_forward.5} parent=11 // pred_fallthru
        _
    $region12: #{resnet_block_forward.5} parent=5 // pred_fallthru
      _
    %p243 = scmp.lt.s32.totalorder %s12, 8
    // Predicated region
    $region17: #{resnet_block_forward.5} parent=5 // pred_check
      %p244 = pneg %p243
    $region18: #{resnet_block_forward.5} parent=5 // pred_check_branch
      %246 = sbr.rel (%p244) target = $region20
    $region19: #{resnet_block_forward.5} parent=5 // pred_region
      // Predicated region
      $region21: #{resnet_block_forward.5} parent=19 // pred_check
        %p247 = pneg %p46
      $region22: #{resnet_block_forward.5} parent=19 // pred_check_branch
        %249 = sbr.rel (%p247) target = $region24
      $region23: #{resnet_block_forward.5} parent=19 // pred_region
        %s250 = smul.u32 8, %s20
        %p251 = scmp.lt.s32.totalorder %s19, 1
        %s252 = scalar_select %p251, %s19, 1
        %p253 = scmp.lt.s32.totalorder %s250, 31
        %s254 = scalar_select %p253, %s250, 31
        %s255 = smul.addr %s252, 32
        %s256 = sadd.s32 %s254, %s255
        %s257 = smul.addr %s256, 8
        %s258 = scalar_lea.vmem %s0, %s257
        %s259 = smul.u32 8, %s20
      $region24: #{resnet_block_forward.5} parent=19 // pred_fallthru
        _
      // Predicated region
      $region25: #{resnet_block_forward.5} parent=19 // pred_check
        %p260 = pneg %p82
      $region26: #{resnet_block_forward.5} parent=19 // pred_check_branch
        %262 = sbr.rel (%p260) target = $region28
      $region27: #{resnet_block_forward.5} parent=19 // pred_region
        %s263 = smul.u32 %s20, 4
        %s264 = ssub.s32 %s263, 1
        %p265 = scmp.gt.s32.totalorder %s264, 0
        %s266 = scalar_select %p265, %s264, 0
        %s267 = smul.u32 2, %s266
        %p268 = scmp.lt.s32.totalorder %s19, 1
        %s269 = scalar_select %p268, %s19, 1
        %p270 = scmp.lt.s32.totalorder %s267, 31
        %s271 = scalar_select %p270, %s267, 31
        %s272 = smul.addr %s269, 32
        %s273 = sadd.s32 %s271, %s272
        %s274 = smul.addr %s273, 8
        %s275 = scalar_lea.vmem %s1, %s274
        %s276 = smul.u32 %s20, 4
        %s277 = ssub.s32 %s276, 1
        %p278 = scmp.gt.s32.totalorder %s277, 0
        %s279 = scalar_select %p278, %s277, 0
        %s280 = smul.u32 2, %s279
      $region28: #{resnet_block_forward.5} parent=19 // pred_fallthru
        _
      // Predicated region
      $region29: #{resnet_block_forward.5} parent=19 // pred_check
        %p281 = pneg %p118
      $region30: #{resnet_block_forward.5} parent=19 // pred_check_branch
        %283 = sbr.rel (%p281) target = $region32
      $region31: #{resnet_block_forward.5} parent=19 // pred_region
        %s284 = sadd.s32 %s20, 1
        %s285 = smul.u32 %s284, 4
        %p286 = scmp.lt.s32.totalorder %s285, 15
        %s287 = scalar_select %p286, %s285, 15
        %s288 = smul.u32 2, %s287
        %p289 = scmp.lt.s32.totalorder %s19, 1
        %s290 = scalar_select %p289, %s19, 1
        %p291 = scmp.lt.s32.totalorder %s288, 31
        %s292 = scalar_select %p291, %s288, 31
        %s293 = smul.addr %s290, 32
        %s294 = sadd.s32 %s292, %s293
        %s295 = smul.addr %s294, 8
        %s296 = scalar_lea.vmem %s2, %s295
        %s297 = sadd.s32 %s20, 1
        %s298 = smul.u32 %s297, 4
        %p299 = scmp.lt.s32.totalorder %s298, 15
        %s300 = scalar_select %p299, %s298, 15
        %s301 = smul.u32 2, %s300
      $region32: #{resnet_block_forward.5} parent=19 // pred_fallthru
        _
      // Predicated region
      $region33: #{resnet_block_forward.5} parent=19 // pred_check
        %p302 = pneg %p144
      $region34: #{resnet_block_forward.5} parent=19 // pred_check_branch
        %304 = sbr.rel (%p302) target = $region36
      $region35: #{resnet_block_forward.5} parent=19 // pred_region
        %p305 = scmp.lt.s32.totalorder %s19, 1
        %s306 = scalar_select %p305, %s19, 1
        %s307 = smul.addr %s306, 2
        %s308 = scalar_lea.vmem %s3, %s307
      $region36: #{resnet_block_forward.5} parent=19 // pred_fallthru
        _
      // Predicated region
      $region37: #{resnet_block_forward.5} parent=19 // pred_check
        %p309 = pneg %p191
      $region38: #{resnet_block_forward.5} parent=19 // pred_check_branch
        %311 = sbr.rel (%p309) target = $region40
      $region39: #{resnet_block_forward.5} parent=19 // pred_region
        %p312 = scmp.lt.s32.totalorder %s19, 1
        %s313 = scalar_select %p312, %s19, 1
        %s314 = scalar_lea.vmem %s5, %s313
      $region40: #{resnet_block_forward.5} parent=19 // pred_fallthru
        _
    $region20: #{resnet_block_forward.5} parent=5 // pred_fallthru
      _
    %p315 = scmp.le.s32.totalorder 1, %s12
    %p316 = scmp.lt.s32.totalorder %s12, 9
    %p317 = pnand %p315, %p316
    %p318 = pneg %p317
    // Predicated region
    $region41: #{resnet_block_forward.5} parent=5 // pred_check
      _
    $region42: #{resnet_block_forward.5} parent=5 // pred_check_branch
      %320 = sbr.rel (%p317) target = $region44
    $region43: #{resnet_block_forward.5} parent=5 // pred_region
      %s321 = ssub.s32 %s12, 1
      %s322 = smul.u32 8, %s22
      %p323 = scmp.lt.s32.totalorder %s21, 1
      %s324 = scalar_select %p323, %s21, 1
      %p325 = scmp.lt.s32.totalorder %s322, 31
      %s326 = scalar_select %p325, %s322, 31
      %s327 = smul.addr %s324, 32
      %s328 = sadd.s32 %s326, %s327
      %s329 = smul.addr %s328, 8
      %s330 = scalar_lea.vmem %s0, %s329
      %p331 = pneg %p52
      %p332 = pneg %p49
      %s333 = smul.u32 %s22, 4
      %s334 = ssub.s32 %s333, 1
      %p335 = scmp.gt.s32.totalorder %s334, 0
      %s336 = scalar_select %p335, %s334, 0
      %s337 = smul.u32 2, %s336
      %p338 = scmp.lt.s32.totalorder %s21, 1
      %s339 = scalar_select %p338, %s21, 1
      %p340 = scmp.lt.s32.totalorder %s337, 31
      %s341 = scalar_select %p340, %s337, 31
      %s342 = smul.addr %s339, 32
      %s343 = sadd.s32 %s341, %s342
      %s344 = smul.addr %s343, 8
      %s345 = scalar_lea.vmem %s1, %s344
      %p346 = pneg %p88
      %p347 = pneg %p85
      %s348 = sadd.s32 %s22, 1
      %s349 = smul.u32 %s348, 4
      %p350 = scmp.lt.s32.totalorder %s349, 15
      %s351 = scalar_select %p350, %s349, 15
      %s352 = smul.u32 2, %s351
      %p353 = scmp.lt.s32.totalorder %s21, 1
      %s354 = scalar_select %p353, %s21, 1
      %p355 = scmp.lt.s32.totalorder %s352, 31
      %s356 = scalar_select %p355, %s352, 31
      %s357 = smul.addr %s354, 32
      %s358 = sadd.s32 %s356, %s357
      %s359 = smul.addr %s358, 8
      %s360 = scalar_lea.vmem %s2, %s359
      %p361 = pneg %p124
      %p362 = pneg %p121
      %p363 = scmp.lt.s32.totalorder %s21, 1
      %s364 = scalar_select %p363, %s21, 1
      %s365 = smul.addr %s364, 2
      %s366 = scalar_lea.vmem %s3, %s365
      %p367 = pneg %p150
      %p368 = pneg %p147
      %p369 = pneg %p171
      %p370 = pneg %p168
      %p371 = scmp.lt.s32.totalorder %s21, 1
      %s372 = scalar_select %p371, %s21, 1
      %s373 = scalar_lea.vmem %s5, %s372
      %p374 = pneg %p197
      %p375 = pneg %p194
      %p376 = pneg %p225
      %p377 = pneg %p222
      %s378 = smul.u32 8, %s22
      %p379 = scmp.lt.s32.totalorder %s21, 1
      %s380 = scalar_select %p379, %s21, 1
      %p381 = scmp.lt.s32.totalorder %s378, 31
      %s382 = scalar_select %p381, %s378, 31
      %s383 = smul.addr %s380, 32
      %s384 = sadd.s32 %s382, %s383
      %s385 = smul.addr %s384, 4
      %s386 = scalar_lea.vmem %s6, %s385
      %s387 = smul.u32 8, %s22
      %p388 = scmp.lt.s32.totalorder %s21, 1
      %s389 = scalar_select %p388, %s21, 1
      %p390 = scmp.lt.s32.totalorder %s387, 31
      %s391 = scalar_select %p390, %s387, 31
      %s392 = smul.addr %s389, 32
      %s393 = sadd.s32 %s391, %s392
      %s394 = smul.addr %s393, 8
      %s395 = scalar_lea.vmem %s0, %s394
      %s396 = smul.u32 8, %s22
      %s397 = smul.u32 %s22, 4
      %s398 = ssub.s32 %s397, 1
      %p399 = scmp.gt.s32.totalorder %s398, 0
      %s400 = scalar_select %p399, %s398, 0
      %s401 = smul.u32 2, %s400
      %p402 = scmp.lt.s32.totalorder %s21, 1
      %s403 = scalar_select %p402, %s21, 1
      %p404 = scmp.lt.s32.totalorder %s401, 31
      %s405 = scalar_select %p404, %s401, 31
      %s406 = smul.addr %s403, 32
      %s407 = sadd.s32 %s405, %s406
      %s408 = smul.addr %s407, 8
      %s409 = scalar_lea.vmem %s1, %s408
      %s410 = smul.u32 %s22, 4
      %s411 = ssub.s32 %s410, 1
      %p412 = scmp.gt.s32.totalorder %s411, 0
      %s413 = scalar_select %p412, %s411, 0
      %s414 = smul.u32 2, %s413
      %s415 = sadd.s32 %s22, 1
      %s416 = smul.u32 %s415, 4
      %p417 = scmp.lt.s32.totalorder %s416, 15
      %s418 = scalar_select %p417, %s416, 15
      %s419 = smul.u32 2, %s418
      %p420 = scmp.lt.s32.totalorder %s21, 1
      %s421 = scalar_select %p420, %s21, 1
      %p422 = scmp.lt.s32.totalorder %s419, 31
      %s423 = scalar_select %p422, %s419, 31
      %s424 = smul.addr %s421, 32
      %s425 = sadd.s32 %s423, %s424
      %s426 = smul.addr %s425, 8
      %s427 = scalar_lea.vmem %s2, %s426
      %s428 = sadd.s32 %s22, 1
      %s429 = smul.u32 %s428, 4
      %p430 = scmp.lt.s32.totalorder %s429, 15
      %s431 = scalar_select %p430, %s429, 15
      %s432 = smul.u32 2, %s431
      %p433 = scmp.lt.s32.totalorder %s21, 1
      %s434 = scalar_select %p433, %s21, 1
      %s435 = smul.addr %s434, 2
      %s436 = scalar_lea.vmem %s3, %s435
      %p437 = scmp.lt.s32.totalorder %s21, 1
      %s438 = scalar_select %p437, %s21, 1
      %s439 = scalar_lea.vmem %s5, %s438
      %s440 = smul.u32 8, %s22
      %p441 = scmp.lt.s32.totalorder %s21, 1
      %s442 = scalar_select %p441, %s21, 1
      %p443 = scmp.lt.s32.totalorder %s440, 31
      %s444 = scalar_select %p443, %s440, 31
      %s445 = smul.addr %s442, 32
      %s446 = sadd.s32 %s444, %s445
      %s447 = smul.addr %s446, 4
      %s448 = scalar_lea.vmem %s6, %s447
      %s449 = smul.u32 8, %s22
      %v453 = vld [vmem:[%s436] sm:$0x3]
      %p454 = scmp.gt.s32.totalorder %s22, 0
      %s455 = scalar_select %p454, 1.0, 0.0
      %p456 = scmp.lt.s32.totalorder %s22, 3
      %s457 = scalar_select %p456, 1.0, 0.0
      %v458 = vld [vmem:[%s395] sm:$0xff]
      %v459 = vld [vmem:[%s395 + $0x8] sm:$0xff]
      %v460 = vld [vmem:[%s395 + $0x10] sm:$0xff]
      %v461 = vld [vmem:[%s395 + $0x18] sm:$0xff]
      %v462 = vld [vmem:[%s395 + $0x20] sm:$0xff]
      %v463 = vld [vmem:[%s395 + $0x28] sm:$0xff]
      %v464 = vld [vmem:[%s395 + $0x30] sm:$0xff]
      %v465 = vld [vmem:[%s395 + $0x38] sm:$0xff]
      %v466 = vlaneseq
      %v467 = vshrl.u32 %v466, 7
      %v468 = vsub.s32 0, %v467
      %v469 = vrot.slane %v453, %v468
      %v470 = vmul.f32 %v458, %v469
      %v471 = vmul.f32 %v459, %v469
      %v472 = vmul.f32 %v460, %v469
      %v473 = vmul.f32 %v461, %v469
      %v474 = vmul.f32 %v462, %v469
      %v475 = vmul.f32 %v463, %v469
      %v476 = vmul.f32 %v464, %v469
      %v477 = vmul.f32 %v465, %v469
      %v478 = vlaneseq
      %v479 = vshrl.u32 %v478, 7
      %v480 = vsub.s32 1, %v479
      %v481 = vrot.slane %v453, %v480
      %v482 = vadd.f32 %v470, %v481
      %v483 = vadd.f32 %v471, %v481
      %v484 = vadd.f32 %v472, %v481
      %v485 = vadd.f32 %v473, %v481
      %v486 = vadd.f32 %v474, %v481
      %v487 = vadd.f32 %v475, %v481
      %v488 = vadd.f32 %v476, %v481
      %v489 = vadd.f32 %v477, %v481
      %v490 = vxor.u32 %v482, 2147483648
      %v491 = vxor.u32 %v483, 2147483648
      %v492 = vxor.u32 %v484, 2147483648
      %v493 = vxor.u32 %v485, 2147483648
      %v494 = vxor.u32 %v486, 2147483648
      %v495 = vxor.u32 %v487, 2147483648
      %v496 = vxor.u32 %v488, 2147483648
      %v497 = vxor.u32 %v489, 2147483648
      %v498 = vmul.f32 %v490, 1.442695
      %v499 = vpow.pop %v498
      %v500 = vmul.f32 %v491, 1.442695
      %v501 = vpow.pop %v500
      %v502 = vmul.f32 %v492, 1.442695
      %v503 = vpow.pop %v502
      %v504 = vmul.f32 %v493, 1.442695
      %v505 = vpow.pop %v504
      %v506 = vmul.f32 %v494, 1.442695
      %v507 = vpow.pop %v506
      %v508 = vmul.f32 %v495, 1.442695
      %v509 = vpow.pop %v508
      %v510 = vmul.f32 %v496, 1.442695
      %v511 = vpow.pop %v510
      %v512 = vmul.f32 %v497, 1.442695
      %v513 = vpow.pop %v512
      %v514 = vadd.f32 %v499, 1.0
      %v515 = vadd.f32 %v501, 1.0
      %v516 = vadd.f32 %v503, 1.0
      %v517 = vadd.f32 %v505, 1.0
      %v518 = vadd.f32 %v507, 1.0
      %v519 = vadd.f32 %v509, 1.0
      %v520 = vadd.f32 %v511, 1.0
      %v521 = vadd.f32 %v513, 1.0
      %v522 = vrcp.pop %v514
      %v523 = vmul.f32 1.0, %v522
      %v524 = vrcp.pop %v515
      %v525 = vmul.f32 1.0, %v524
      %v526 = vrcp.pop %v516
      %v527 = vmul.f32 1.0, %v526
      %v528 = vrcp.pop %v517
      %v529 = vmul.f32 1.0, %v528
      %v530 = vrcp.pop %v518
      %v531 = vmul.f32 1.0, %v530
      %v532 = vrcp.pop %v519
      %v533 = vmul.f32 1.0, %v532
      %v534 = vrcp.pop %v520
      %v535 = vmul.f32 1.0, %v534
      %v536 = vrcp.pop %v521
      %v537 = vmul.f32 1.0, %v536
      %v538 = vmul.f32 %v482, %v523
      %v539 = vmul.f32 %v483, %v525
      %v540 = vmul.f32 %v484, %v527
      %v541 = vmul.f32 %v485, %v529
      %v542 = vmul.f32 %v486, %v531
      %v543 = vmul.f32 %v487, %v533
      %v544 = vmul.f32 %v488, %v535
      %v545 = vmul.f32 %v489, %v537
      %v546 = vld [vmem:[%s409] sm:$0xff]
      %v547 = vld [vmem:[%s409 + $0x8] sm:$0xff]
      %v548 = vmul.f32 %v546, %v469
      %v549 = vmul.f32 %v547, %v469
      %v550 = vadd.f32 %v548, %v481
      %v551 = vadd.f32 %v549, %v481
      %v552 = vxor.u32 %v550, 2147483648
      %v553 = vxor.u32 %v551, 2147483648
      %v554 = vmul.f32 %v552, 1.442695
      %v555 = vpow.pop %v554
      %v556 = vmul.f32 %v553, 1.442695
      %v557 = vpow.pop %v556
      %v558 = vadd.f32 %v555, 1.0
      %v559 = vadd.f32 %v557, 1.0
      %v560 = vrcp.pop %v558
      %v561 = vmul.f32 1.0, %v560
      %v562 = vrcp.pop %v559
      %v563 = vmul.f32 1.0, %v562
      %v564 = vmul.f32 %v550, %v561
      %v565 = vmul.f32 %v551, %v563
      %v566 = vstv %s455
      %v567 = vmul.f32 %v564, %v566
      %v568 = vmul.f32 %v565, %v566
      %v569 = vld [vmem:[%s427] sm:$0xff]
      %v570 = vld [vmem:[%s427 + $0x8] sm:$0xff]
      %v571 = vmul.f32 %v569, %v469
      %v572 = vmul.f32 %v570, %v469
      %v573 = vadd.f32 %v571, %v481
      %v574 = vadd.f32 %v572, %v481
      %v575 = vxor.u32 %v573, 2147483648
      %v576 = vxor.u32 %v574, 2147483648
      %v577 = vmul.f32 %v575, 1.442695
      %v578 = vpow.pop %v577
      %v579 = vmul.f32 %v576, 1.442695
      %v580 = vpow.pop %v579
      %v581 = vadd.f32 %v578, 1.0
      %v582 = vadd.f32 %v580, 1.0
      %v583 = vrcp.pop %v581
      %v584 = vmul.f32 1.0, %v583
      %v585 = vrcp.pop %v582
      %v586 = vmul.f32 1.0, %v585
      %v587 = vmul.f32 %v573, %v584
      %v588 = vmul.f32 %v574, %v586
      %v589 = vstv %s457
      %v590 = vmul.f32 %v587, %v589
      %v591 = vmul.f32 %v588, %v589
      %v592 = vpack.c.bf16 %v568, %v567
      %v593 = vpack.c.bf16 %v539, %v538
      %v594 = vpack.c.bf16 %v541, %v540
      %v595 = vpack.c.bf16 %v543, %v542
      %v596 = vpack.c.bf16 %v545, %v544
      %v597 = vpack.c.bf16 %v591, %v590
      %v598 = vlaneseq
      %v599 = vshrl.u32 %v598, 7
      %v600 = vadd.s32 %v599, 8
      %v601 = vadd.s32 %v599, 16
      %v602 = vadd.s32 %v599, 24
      %v603 = vadd.s32 %v599, 32
      %v604 = vadd.s32 %v599, 40
      %v605 = vadd.s32 %v599, 48
      %v606 = vadd.s32 %v599, 56
      %v607 = vadd.s32 %v599, 64
      %v608 = vadd.s32 %v599, 72
      %v609 = vadd.s32 %v599, 80
      %v610 = vadd.s32 %v599, 88
      %vm611 = vcmp.lt.s32.totalorder %v599, 0
      %v612 = vsub.s32 0, %v599
      %v613 = vsel %vm611, %v612, %v599
      %v614 = vshrl.u32 %v613, 4
      %v615 = vand.u32 %v613, 15
      %v616 = vsub.s32 0, %v615
      %v617 = vsel %vm611, %v616, %v615
      %vm618 = vcmp.lt.s32.totalorder %v600, 0
      %v619 = vsub.s32 0, %v600
      %v620 = vsel %vm618, %v619, %v600
      %v621 = vshrl.u32 %v620, 4
      %v622 = vand.u32 %v620, 15
      %v623 = vsub.s32 0, %v622
      %v624 = vsel %vm618, %v623, %v622
      %vm625 = vcmp.lt.s32.totalorder %v601, 0
      %v626 = vsub.s32 0, %v601
      %v627 = vsel %vm625, %v626, %v601
      %v628 = vshrl.u32 %v627, 4
      %v629 = vand.u32 %v627, 15
      %v630 = vsub.s32 0, %v629
      %v631 = vsel %vm625, %v630, %v629
      %vm632 = vcmp.lt.s32.totalorder %v602, 0
      %v633 = vsub.s32 0, %v602
      %v634 = vsel %vm632, %v633, %v602
      %v635 = vshrl.u32 %v634, 4
      %v636 = vand.u32 %v634, 15
      %v637 = vsub.s32 0, %v636
      %v638 = vsel %vm632, %v637, %v636
      %vm639 = vcmp.lt.s32.totalorder %v603, 0
      %v640 = vsub.s32 0, %v603
      %v641 = vsel %vm639, %v640, %v603
      %v642 = vshrl.u32 %v641, 4
      %v643 = vand.u32 %v641, 15
      %v644 = vsub.s32 0, %v643
      %v645 = vsel %vm639, %v644, %v643
      %vm646 = vcmp.lt.s32.totalorder %v604, 0
      %v647 = vsub.s32 0, %v604
      %v648 = vsel %vm646, %v647, %v604
      %v649 = vshrl.u32 %v648, 4
      %v650 = vand.u32 %v648, 15
      %v651 = vsub.s32 0, %v650
      %v652 = vsel %vm646, %v651, %v650
      %vm653 = vcmp.lt.s32.totalorder %v605, 0
      %v654 = vsub.s32 0, %v605
      %v655 = vsel %vm653, %v654, %v605
      %v656 = vshrl.u32 %v655, 4
      %v657 = vand.u32 %v655, 15
      %v658 = vsub.s32 0, %v657
      %v659 = vsel %vm653, %v658, %v657
      %vm660 = vcmp.lt.s32.totalorder %v606, 0
      %v661 = vsub.s32 0, %v606
      %v662 = vsel %vm660, %v661, %v606
      %v663 = vshrl.u32 %v662, 4
      %v664 = vand.u32 %v662, 15
      %v665 = vsub.s32 0, %v664
      %v666 = vsel %vm660, %v665, %v664
      %vm667 = vcmp.lt.s32.totalorder %v607, 0
      %v668 = vsub.s32 0, %v607
      %v669 = vsel %vm667, %v668, %v607
      %v670 = vshrl.u32 %v669, 4
      %v671 = vand.u32 %v669, 15
      %v672 = vsub.s32 0, %v671
      %v673 = vsel %vm667, %v672, %v671
      %vm674 = vcmp.lt.s32.totalorder %v608, 0
      %v675 = vsub.s32 0, %v608
      %v676 = vsel %vm674, %v675, %v608
      %v677 = vshrl.u32 %v676, 4
      %v678 = vand.u32 %v676, 15
      %v679 = vsub.s32 0, %v678
      %v680 = vsel %vm674, %v679, %v678
      %vm681 = vcmp.lt.s32.totalorder %v609, 0
      %v682 = vsub.s32 0, %v609
      %v683 = vsel %vm681, %v682, %v609
      %v684 = vshrl.u32 %v683, 4
      %v685 = vand.u32 %v683, 15
      %v686 = vsub.s32 0, %v685
      %v687 = vsel %vm681, %v686, %v685
      %vm688 = vcmp.lt.s32.totalorder %v610, 0
      %v689 = vsub.s32 0, %v610
      %v690 = vsel %vm688, %v689, %v610
      %v691 = vshrl.u32 %v690, 4
      %v692 = vand.u32 %v690, 15
      %v693 = vsub.s32 0, %v692
      %v694 = vsel %vm688, %v693, %v692
      %vm695 = vcmp.ne.s32.totalorder %v617, 0
      %vm696 = vcmp.ne.s32.totalorder %v624, 0
      %vm697 = vcmp.ne.s32.totalorder %v631, 0
      %vm698 = vcmp.ne.s32.totalorder %v638, 0
      %vm699 = vcmp.ne.s32.totalorder %v645, 0
      %vm700 = vcmp.ne.s32.totalorder %v652, 0
      %vm701 = vcmp.ne.s32.totalorder %v659, 0
      %vm702 = vcmp.ne.s32.totalorder %v666, 0
      %vm703 = vcmp.ne.s32.totalorder %v673, 0
      %vm704 = vcmp.ne.s32.totalorder %v680, 0
      %vm705 = vcmp.ne.s32.totalorder %v687, 0
      %vm706 = vcmp.ne.s32.totalorder %v694, 0
      %vm707 = vcmp.lt.s32.totalorder %v617, 0
      %vm708 = vcmp.lt.s32.totalorder %v624, 0
      %vm709 = vcmp.lt.s32.totalorder %v631, 0
      %vm710 = vcmp.lt.s32.totalorder %v638, 0
      %vm711 = vcmp.lt.s32.totalorder %v645, 0
      %vm712 = vcmp.lt.s32.totalorder %v652, 0
      %vm713 = vcmp.lt.s32.totalorder %v659, 0
      %vm714 = vcmp.lt.s32.totalorder %v666, 0
      %vm715 = vcmp.lt.s32.totalorder %v673, 0
      %vm716 = vcmp.lt.s32.totalorder %v680, 0
      %vm717 = vcmp.lt.s32.totalorder %v687, 0
      %vm718 = vcmp.lt.s32.totalorder %v694, 0
      %vm719 = vmand %vm707, %vm695
      %vm720 = vmand %vm708, %vm696
      %vm721 = vmand %vm709, %vm697
      %vm722 = vmand %vm710, %vm698
      %vm723 = vmand %vm711, %vm699
      %vm724 = vmand %vm712, %vm700
      %vm725 = vmand %vm713, %vm701
      %vm726 = vmand %vm714, %vm702
      %vm727 = vmand %vm715, %vm703
      %vm728 = vmand %vm716, %vm704
      %vm729 = vmand %vm717, %vm705
      %vm730 = vmand %vm718, %vm706
      %v731 = vadd.s32 %v617, 16
      %v732 = vadd.s32 %v624, 16
      %v733 = vadd.s32 %v631, 16
      %v734 = vadd.s32 %v638, 16
      %v735 = vadd.s32 %v645, 16
      %v736 = vadd.s32 %v652, 16
      %v737 = vadd.s32 %v659, 16
      %v738 = vadd.s32 %v666, 16
      %v739 = vadd.s32 %v673, 16
      %v740 = vadd.s32 %v680, 16
      %v741 = vadd.s32 %v687, 16
      %v742 = vadd.s32 %v694, 16
      %v743 = vsel %vm719, %v731, %v617
      %v744 = vsel %vm720, %v732, %v624
      %v745 = vsel %vm721, %v733, %v631
      %v746 = vsel %vm722, %v734, %v638
      %v747 = vsel %vm723, %v735, %v645
      %v748 = vsel %vm724, %v736, %v652
      %v749 = vsel %vm725, %v737, %v659
      %v750 = vsel %vm726, %v738, %v666
      %v751 = vsel %vm727, %v739, %v673
      %v752 = vsel %vm728, %v740, %v680
      %v753 = vsel %vm729, %v741, %v687
      %v754 = vsel %vm730, %v742, %v694
      %vm755 = vcmp.gt.s32.totalorder %v743, 0
      %vm756 = vcmp.gt.s32.totalorder %v744, 0
      %vm757 = vcmp.gt.s32.totalorder %v745, 0
      %vm758 = vcmp.gt.s32.totalorder %v746, 0
      %vm759 = vcmp.gt.s32.totalorder %v747, 0
      %vm760 = vcmp.gt.s32.totalorder %v748, 0
      %vm761 = vcmp.gt.s32.totalorder %v749, 0
      %vm762 = vcmp.gt.s32.totalorder %v750, 0
      %vm763 = vcmp.gt.s32.totalorder %v751, 0
      %vm764 = vcmp.gt.s32.totalorder %v752, 0
      %vm765 = vcmp.gt.s32.totalorder %v753, 0
      %vm766 = vcmp.gt.s32.totalorder %v754, 0
      %vm767 = vsmask.f32 256
      %v769 = vshrl.u32 %v592, 16
      %v771 = vrot.slane %v769, 7
      %v772 = vshll.u32 %v592, 16
      %v774 = vor.u32 %v771, %v772
      %v776 = vshrl.u32 %v593, 16
      %v778 = vrot.slane %v776, 7
      %v779 = vshll.u32 %v593, 16
      %v781 = vor.u32 %v778, %v779
      %v782 = vsel %vm767, %v771, %v781
      %v784 = vshrl.u32 %v594, 16
      %v786 = vrot.slane %v784, 7
      %v787 = vshll.u32 %v594, 16
      %v789 = vor.u32 %v786, %v787
      %v790 = vsel %vm767, %v778, %v789
      %v792 = vshrl.u32 %v595, 16
      %v794 = vrot.slane %v792, 7
      %v795 = vshll.u32 %v595, 16
      %v797 = vor.u32 %v794, %v795
      %v798 = vsel %vm767, %v786, %v797
      %v800 = vshrl.u32 %v596, 16
      %v802 = vrot.slane %v800, 7
      %v803 = vshll.u32 %v596, 16
      %v805 = vor.u32 %v802, %v803
      %v806 = vsel %vm767, %v794, %v805
      %v808 = vshrl.u32 %v597, 16
      %v810 = vrot.slane %v808, 7
      %v811 = vshll.u32 %v597, 16
      %v813 = vor.u32 %v810, %v811
      %v814 = vsel %vm767, %v802, %v813
      %vm821 = vcmask 1040384
      %vm822 = vmand %vm821, %vm767
      %v823 = vsel %vm822, 0, %v774
      %v824 = vsel %vm755, 1, 0
      %v825 = vsel %vm756, 1, 0
      %v826 = vsel %vm757, 1, 0
      %v827 = vsel %vm758, 1, 0
      %v828 = vsel %vm759, 1, 0
      %v829 = vsel %vm760, 1, 0
      %v830 = vsel %vm761, 1, 0
      %v831 = vsel %vm762, 1, 0
      %v832 = vsel %vm763, 1, 0
      %v833 = vsel %vm764, 1, 0
      %v834 = vsel %vm765, 1, 0
      %v835 = vsel %vm766, 1, 0
      %vm836 = vcmp.eq.s32.totalorder %v824, 1
      %vm837 = vcmp.eq.s32.totalorder %v825, 1
      %vm838 = vcmp.eq.s32.totalorder %v826, 1
      %vm839 = vcmp.eq.s32.totalorder %v827, 1
      %vm840 = vcmp.eq.s32.totalorder %v828, 1
      %vm841 = vcmp.eq.s32.totalorder %v829, 1
      %vm842 = vcmp.eq.s32.totalorder %v830, 1
      %vm843 = vcmp.eq.s32.totalorder %v831, 1
      %vm844 = vcmp.eq.s32.totalorder %v832, 1
      %vm845 = vcmp.eq.s32.totalorder %v833, 1
      %vm846 = vcmp.eq.s32.totalorder %v834, 1
      %vm847 = vcmp.eq.s32.totalorder %v835, 1
      %vm848 = vmpackc.low %vm836, %vm836
      %vm849 = vmpackc.low %vm837, %vm837
      %vm850 = vmpackc.low %vm838, %vm838
      %vm851 = vmpackc.low %vm839, %vm839
      %vm852 = vmpackc.low %vm840, %vm840
      %vm853 = vmpackc.low %vm841, %vm841
      %vm854 = vmpackc.low %vm842, %vm842
      %vm855 = vmpackc.low %vm843, %vm843
      %vm856 = vmpackc.low %vm844, %vm844
      %vm857 = vmpackc.low %vm845, %vm845
      %vm858 = vmpackc.low %vm846, %vm846
      %vm859 = vmpackc.low %vm847, %vm847
      %v860 = vsel %vm848, 65537, 0
      %v861 = vsel %vm849, 65537, 0
      %v862 = vsel %vm850, 65537, 0
      %v863 = vsel %vm851, 65537, 0
      %v864 = vsel %vm852, 65537, 0
      %v865 = vsel %vm853, 65537, 0
      %v866 = vsel %vm854, 65537, 0
      %v867 = vsel %vm855, 65537, 0
      %v868 = vsel %vm856, 65537, 0
      %v869 = vsel %vm857, 65537, 0
      %v870 = vsel %vm858, 65537, 0
      %v871 = vsel %vm859, 65537, 0
      %v872 = vunpack.c.l.b16 %v860
      %v873 = vunpack.c.l.b16 %v861
      %v874 = vunpack.c.l.b16 %v862
      %v875 = vunpack.c.l.b16 %v863
      %v876 = vunpack.c.l.b16 %v864
      %v877 = vunpack.c.l.b16 %v865
      %v878 = vunpack.c.l.b16 %v866
      %v879 = vunpack.c.l.b16 %v867
      %v880 = vunpack.c.l.b16 %v868
      %v881 = vunpack.c.l.b16 %v869
      %v882 = vunpack.c.l.b16 %v870
      %v883 = vunpack.c.l.b16 %v871
      %v884 = vpack.c.b16 %v873, %v872
      %v885 = vpack.c.b16 %v875, %v874
      %v886 = vpack.c.b16 %v877, %v876
      %v887 = vpack.c.b16 %v879, %v878
      %v888 = vpack.c.b16 %v881, %v880
      %v889 = vpack.c.b16 %v883, %v882
      %vm890 = vcmp.ne.s16.totalorder %v884, 0
      %vm891 = vcmp.ne.s16.totalorder %v885, 0
      %vm892 = vcmp.ne.s16.totalorder %v886, 0
      %vm893 = vcmp.ne.s16.totalorder %v887, 0
      %vm894 = vcmp.ne.s16.totalorder %v888, 0
      %vm895 = vcmp.ne.s16.totalorder %v889, 0
      %v896 = vsel %vm890, %v823, 0
      %v897 = vsel %vm891, %v782, 0
      %v898 = vsel %vm892, %v790, 0
      %v899 = vsel %vm893, %v798, 0
      %v900 = vsel %vm894, %v806, 0
      %v901 = vsel %vm895, %v814, 0
      %vm902 = vcmp.lt.s32.totalorder %v743, 15
      %vm903 = vcmp.lt.s32.totalorder %v744, 15
      %vm904 = vcmp.lt.s32.totalorder %v745, 15
      %vm905 = vcmp.lt.s32.totalorder %v746, 15
      %vm906 = vcmp.lt.s32.totalorder %v747, 15
      %vm907 = vcmp.lt.s32.totalorder %v748, 15
      %vm908 = vcmp.lt.s32.totalorder %v749, 15
      %vm909 = vcmp.lt.s32.totalorder %v750, 15
      %vm910 = vcmp.lt.s32.totalorder %v751, 15
      %vm911 = vcmp.lt.s32.totalorder %v752, 15
      %vm912 = vcmp.lt.s32.totalorder %v753, 15
      %vm913 = vcmp.lt.s32.totalorder %v754, 15
      %vm914 = vsmask.f32 7424
      %v915 = vrot.slane %v772, 1
      %v916 = vor.u32 %v769, %v915
      %v917 = vrot.slane %v779, 1
      %v918 = vsel %vm914, %v916, %v917
      %v919 = vor.u32 %v776, %v917
      %v920 = vrot.slane %v787, 1
      %v921 = vsel %vm914, %v919, %v920
      %v922 = vor.u32 %v784, %v920
      %v923 = vrot.slane %v795, 1
      %v924 = vsel %vm914, %v922, %v923
      %v925 = vor.u32 %v792, %v923
      %v926 = vrot.slane %v803, 1
      %v927 = vsel %vm914, %v925, %v926
      %v928 = vor.u32 %v800, %v926
      %v929 = vrot.slane %v811, 1
      %v930 = vsel %vm914, %v928, %v929
      %v931 = vor.u32 %v808, %v929
      %vm938 = vcmask 1047552
      %vm939 = vmand %vm938, %vm914
      %v940 = vsel %vm939, %v931, 0
      %v941 = vsel %vm902, 1, 0
      %v942 = vsel %vm903, 1, 0
      %v943 = vsel %vm904, 1, 0
      %v944 = vsel %vm905, 1, 0
      %v945 = vsel %vm906, 1, 0
      %v946 = vsel %vm907, 1, 0
      %v947 = vsel %vm908, 1, 0
      %v948 = vsel %vm909, 1, 0
      %v949 = vsel %vm910, 1, 0
      %v950 = vsel %vm911, 1, 0
      %v951 = vsel %vm912, 1, 0
      %v952 = vsel %vm913, 1, 0
      %vm953 = vcmp.eq.s32.totalorder %v941, 1
      %vm954 = vcmp.eq.s32.totalorder %v942, 1
      %vm955 = vcmp.eq.s32.totalorder %v943, 1
      %vm956 = vcmp.eq.s32.totalorder %v944, 1
      %vm957 = vcmp.eq.s32.totalorder %v945, 1
      %vm958 = vcmp.eq.s32.totalorder %v946, 1
      %vm959 = vcmp.eq.s32.totalorder %v947, 1
      %vm960 = vcmp.eq.s32.totalorder %v948, 1
      %vm961 = vcmp.eq.s32.totalorder %v949, 1
      %vm962 = vcmp.eq.s32.totalorder %v950, 1
      %vm963 = vcmp.eq.s32.totalorder %v951, 1
      %vm964 = vcmp.eq.s32.totalorder %v952, 1
      %vm965 = vmpackc.low %vm953, %vm953
      %vm966 = vmpackc.low %vm954, %vm954
      %vm967 = vmpackc.low %vm955, %vm955
      %vm968 = vmpackc.low %vm956, %vm956
      %vm969 = vmpackc.low %vm957, %vm957
      %vm970 = vmpackc.low %vm958, %vm958
      %vm971 = vmpackc.low %vm959, %vm959
      %vm972 = vmpackc.low %vm960, %vm960
      %vm973 = vmpackc.low %vm961, %vm961
      %vm974 = vmpackc.low %vm962, %vm962
      %vm975 = vmpackc.low %vm963, %vm963
      %vm976 = vmpackc.low %vm964, %vm964
      %v977 = vsel %vm965, 65537, 0
      %v978 = vsel %vm966, 65537, 0
      %v979 = vsel %vm967, 65537, 0
      %v980 = vsel %vm968, 65537, 0
      %v981 = vsel %vm969, 65537, 0
      %v982 = vsel %vm970, 65537, 0
      %v983 = vsel %vm971, 65537, 0
      %v984 = vsel %vm972, 65537, 0
      %v985 = vsel %vm973, 65537, 0
      %v986 = vsel %vm974, 65537, 0
      %v987 = vsel %vm975, 65537, 0
      %v988 = vsel %vm976, 65537, 0
      %v989 = vunpack.c.l.b16 %v977
      %v990 = vunpack.c.l.b16 %v978
      %v991 = vunpack.c.l.b16 %v979
      %v992 = vunpack.c.l.b16 %v980
      %v993 = vunpack.c.l.b16 %v981
      %v994 = vunpack.c.l.b16 %v982
      %v995 = vunpack.c.l.b16 %v983
      %v996 = vunpack.c.l.b16 %v984
      %v997 = vunpack.c.l.b16 %v985
      %v998 = vunpack.c.l.b16 %v986
      %v999 = vunpack.c.l.b16 %v987
      %v1000 = vunpack.c.l.b16 %v988
      %v1001 = vpack.c.b16 %v990, %v989
      %v1002 = vpack.c.b16 %v992, %v991
      %v1003 = vpack.c.b16 %v994, %v993
      %v1004 = vpack.c.b16 %v996, %v995
      %v1005 = vpack.c.b16 %v998, %v997
      %v1006 = vpack.c.b16 %v1000, %v999
      %vm1007 = vcmp.ne.s16.totalorder %v1001, 0
      %vm1008 = vcmp.ne.s16.totalorder %v1002, 0
      %vm1009 = vcmp.ne.s16.totalorder %v1003, 0
      %vm1010 = vcmp.ne.s16.totalorder %v1004, 0
      %vm1011 = vcmp.ne.s16.totalorder %v1005, 0
      %vm1012 = vcmp.ne.s16.totalorder %v1006, 0
      %v1013 = vsel %vm1007, %v918, 0
      %v1014 = vsel %vm1008, %v921, 0
      %v1015 = vsel %vm1009, %v924, 0
      %v1016 = vsel %vm1010, %v927, 0
      %v1017 = vsel %vm1011, %v930, 0
      %v1018 = vsel %vm1012, %v940, 0
      %v1019 = vld [vmem:[%s4] sm:$0xf]
      %v1020 = vld [vmem:[%s4 + $0x4] sm:$0xf]
      %v1021 = vld [vmem:[%s4 + $0x8] sm:$0xf]
      %v1022 = vld [vmem:[%s4 + $0xc] sm:$0xf]
      %v1023 = vld [vmem:[%s4 + $0x10] sm:$0xf]
      %v1024 = vld [vmem:[%s4 + $0x14] sm:$0xf]
      %v1025 = vld [vmem:[%s4 + $0x18] sm:$0xf]
      %v1026 = vld [vmem:[%s4 + $0x1c] sm:$0xf]
      %v1027 = vld [vmem:[%s4 + $0x20] sm:$0xf]
      %v1028 = vld [vmem:[%s4 + $0x24] sm:$0xf]
      %v1029 = vld [vmem:[%s4 + $0x28] sm:$0xf]
      %v1030 = vld [vmem:[%s4 + $0x2c] sm:$0xf]
      %v1031 = vld [vmem:[%s4 + $0x30] sm:$0xf]
      %v1032 = vld [vmem:[%s4 + $0x34] sm:$0xf]
      %v1033 = vld [vmem:[%s4 + $0x38] sm:$0xf]
      %v1034 = vld [vmem:[%s4 + $0x3c] sm:$0xf]
      %v1035 = vld [vmem:[%s4 + $0x40] sm:$0xf]
      %v1036 = vld [vmem:[%s4 + $0x44] sm:$0xf]
      %v1037 = vld [vmem:[%s4 + $0x48] sm:$0xf]
      %v1038 = vld [vmem:[%s4 + $0x4c] sm:$0xf]
      %v1039 = vld [vmem:[%s4 + $0x50] sm:$0xf]
      %v1040 = vld [vmem:[%s4 + $0x54] sm:$0xf]
      %v1041 = vld [vmem:[%s4 + $0x58] sm:$0xf]
      %v1042 = vld [vmem:[%s4 + $0x5c] sm:$0xf]
      %v1043 = vld [vmem:[%s4 + $0x60] sm:$0xf]
      %v1044 = vld [vmem:[%s4 + $0x64] sm:$0xf]
      %v1045 = vld [vmem:[%s4 + $0x68] sm:$0xf]
      %v1046 = vld [vmem:[%s4 + $0x6c] sm:$0xf]
      %v1047 = vld [vmem:[%s4 + $0x70] sm:$0xf]
      %v1048 = vld [vmem:[%s4 + $0x74] sm:$0xf]
      %v1049 = vld [vmem:[%s4 + $0x78] sm:$0xf]
      %v1050 = vld [vmem:[%s4 + $0x7c] sm:$0xf]
      %v1051 = vld [vmem:[%s4 + $0x80] sm:$0xf]
      %v1052 = vld [vmem:[%s4 + $0x84] sm:$0xf]
      %v1053 = vld [vmem:[%s4 + $0x88] sm:$0xf]
      %v1054 = vld [vmem:[%s4 + $0x8c] sm:$0xf]
      %v1055 = vld [vmem:[%s4 + $0x90] sm:$0xf]
      %v1056 = vld [vmem:[%s4 + $0x94] sm:$0xf]
      %v1057 = vld [vmem:[%s4 + $0x98] sm:$0xf]
      %v1058 = vld [vmem:[%s4 + $0x9c] sm:$0xf]
      %v1059 = vld [vmem:[%s4 + $0xa0] sm:$0xf]
      %v1060 = vld [vmem:[%s4 + $0xa4] sm:$0xf]
      %v1061 = vld [vmem:[%s4 + $0xa8] sm:$0xf]
      %v1062 = vld [vmem:[%s4 + $0xac] sm:$0xf]
      %v1063 = vld [vmem:[%s4 + $0xb0] sm:$0xf]
      %v1064 = vld [vmem:[%s4 + $0xb4] sm:$0xf]
      %v1065 = vld [vmem:[%s4 + $0xb8] sm:$0xf]
      %v1066 = vld [vmem:[%s4 + $0xbc] sm:$0xf]
      %s1067 = scalar_lea.vmem %s4, 192
      %v1068 = vld [vmem:[%s1067] sm:$0xf]
      %v1069 = vld [vmem:[%s1067 + $0x4] sm:$0xf]
      %v1070 = vld [vmem:[%s1067 + $0x8] sm:$0xf]
      %v1071 = vld [vmem:[%s1067 + $0xc] sm:$0xf]
      %v1072 = vld [vmem:[%s1067 + $0x10] sm:$0xf]
      %v1073 = vld [vmem:[%s1067 + $0x14] sm:$0xf]
      %v1074 = vld [vmem:[%s1067 + $0x18] sm:$0xf]
      %v1075 = vld [vmem:[%s1067 + $0x1c] sm:$0xf]
      %v1076 = vld [vmem:[%s1067 + $0x20] sm:$0xf]
      %v1077 = vld [vmem:[%s1067 + $0x24] sm:$0xf]
      %v1078 = vld [vmem:[%s1067 + $0x28] sm:$0xf]
      %v1079 = vld [vmem:[%s1067 + $0x2c] sm:$0xf]
      %v1080 = vld [vmem:[%s1067 + $0x30] sm:$0xf]
      %v1081 = vld [vmem:[%s1067 + $0x34] sm:$0xf]
      %v1082 = vld [vmem:[%s1067 + $0x38] sm:$0xf]
      %v1083 = vld [vmem:[%s1067 + $0x3c] sm:$0xf]
      %v1084 = vld [vmem:[%s1067 + $0x40] sm:$0xf]
      %v1085 = vld [vmem:[%s1067 + $0x44] sm:$0xf]
      %v1086 = vld [vmem:[%s1067 + $0x48] sm:$0xf]
      %v1087 = vld [vmem:[%s1067 + $0x4c] sm:$0xf]
      %v1088 = vld [vmem:[%s1067 + $0x50] sm:$0xf]
      %v1089 = vld [vmem:[%s1067 + $0x54] sm:$0xf]
      %v1090 = vld [vmem:[%s1067 + $0x58] sm:$0xf]
      %v1091 = vld [vmem:[%s1067 + $0x5c] sm:$0xf]
      %v1092 = vld [vmem:[%s1067 + $0x60] sm:$0xf]
      %v1093 = vld [vmem:[%s1067 + $0x64] sm:$0xf]
      %v1094 = vld [vmem:[%s1067 + $0x68] sm:$0xf]
      %v1095 = vld [vmem:[%s1067 + $0x6c] sm:$0xf]
      %v1096 = vld [vmem:[%s1067 + $0x70] sm:$0xf]
      %v1097 = vld [vmem:[%s1067 + $0x74] sm:$0xf]
      %v1098 = vld [vmem:[%s1067 + $0x78] sm:$0xf]
      %v1099 = vld [vmem:[%s1067 + $0x7c] sm:$0xf]
      %v1100 = vld [vmem:[%s1067 + $0x80] sm:$0xf]
      %v1101 = vld [vmem:[%s1067 + $0x84] sm:$0xf]
      %v1102 = vld [vmem:[%s1067 + $0x88] sm:$0xf]
      %v1103 = vld [vmem:[%s1067 + $0x8c] sm:$0xf]
      %v1104 = vld [vmem:[%s1067 + $0x90] sm:$0xf]
      %v1105 = vld [vmem:[%s1067 + $0x94] sm:$0xf]
      %v1106 = vld [vmem:[%s1067 + $0x98] sm:$0xf]
      %v1107 = vld [vmem:[%s1067 + $0x9c] sm:$0xf]
      %v1108 = vld [vmem:[%s1067 + $0xa0] sm:$0xf]
      %v1109 = vld [vmem:[%s1067 + $0xa4] sm:$0xf]
      %v1110 = vld [vmem:[%s1067 + $0xa8] sm:$0xf]
      %v1111 = vld [vmem:[%s1067 + $0xac] sm:$0xf]
      %v1112 = vld [vmem:[%s1067 + $0xb0] sm:$0xf]
      %v1113 = vld [vmem:[%s1067 + $0xb4] sm:$0xf]
      %v1114 = vld [vmem:[%s1067 + $0xb8] sm:$0xf]
      %v1115 = vld [vmem:[%s1067 + $0xbc] sm:$0xf]
      %v1164 = vunpack.c.l.b16 %v1068
      %v1165 = vunpack.c.l.b16 %v1069
      %v1166 = vunpack.c.l.b16 %v1070
      %v1167 = vunpack.c.l.b16 %v1071
      %v1168 = vunpack.c.l.b16 %v1072
      %v1169 = vunpack.c.l.b16 %v1073
      %v1170 = vunpack.c.l.b16 %v1074
      %v1171 = vunpack.c.l.b16 %v1075
      %v1172 = vunpack.c.l.b16 %v1076
      %v1173 = vunpack.c.l.b16 %v1077
      %v1174 = vunpack.c.l.b16 %v1078
      %v1175 = vunpack.c.l.b16 %v1079
      %v1176 = vunpack.c.l.b16 %v1080
      %v1177 = vunpack.c.l.b16 %v1081
      %v1178 = vunpack.c.l.b16 %v1082
      %v1179 = vunpack.c.l.b16 %v1083
      %v1180 = vunpack.c.l.b16 %v1084
      %v1181 = vunpack.c.l.b16 %v1085
      %v1182 = vunpack.c.l.b16 %v1086
      %v1183 = vunpack.c.l.b16 %v1087
      %v1184 = vunpack.c.l.b16 %v1088
      %v1185 = vunpack.c.l.b16 %v1089
      %v1186 = vunpack.c.l.b16 %v1090
      %v1187 = vunpack.c.l.b16 %v1091
      %v1188 = vunpack.c.l.b16 %v1092
      %v1189 = vunpack.c.l.b16 %v1093
      %v1190 = vunpack.c.l.b16 %v1094
      %v1191 = vunpack.c.l.b16 %v1095
      %v1192 = vunpack.c.l.b16 %v1096
      %v1193 = vunpack.c.l.b16 %v1097
      %v1194 = vunpack.c.l.b16 %v1098
      %v1195 = vunpack.c.l.b16 %v1099
      %v1196 = vunpack.c.l.b16 %v1100
      %v1197 = vunpack.c.l.b16 %v1101
      %v1198 = vunpack.c.l.b16 %v1102
      %v1199 = vunpack.c.l.b16 %v1103
      %v1200 = vunpack.c.l.b16 %v1104
      %v1201 = vunpack.c.l.b16 %v1105
      %v1202 = vunpack.c.l.b16 %v1106
      %v1203 = vunpack.c.l.b16 %v1107
      %v1204 = vunpack.c.l.b16 %v1108
      %v1205 = vunpack.c.l.b16 %v1109
      %v1206 = vunpack.c.l.b16 %v1110
      %v1207 = vunpack.c.l.b16 %v1111
      %v1208 = vunpack.c.l.b16 %v1112
      %v1209 = vunpack.c.l.b16 %v1113
      %v1210 = vunpack.c.l.b16 %v1114
      %v1211 = vunpack.c.l.b16 %v1115
      %v1212 = vpack.c.b16 %v1165, %v1164
      %v1213 = vpack.c.b16 %v1167, %v1166
      %v1214 = vpack.c.b16 %v1169, %v1168
      %v1215 = vpack.c.b16 %v1171, %v1170
      %v1216 = vpack.c.b16 %v1173, %v1172
      %v1217 = vpack.c.b16 %v1175, %v1174
      %v1218 = vpack.c.b16 %v1177, %v1176
      %v1219 = vpack.c.b16 %v1179, %v1178
      %v1220 = vpack.c.b16 %v1181, %v1180
      %v1221 = vpack.c.b16 %v1183, %v1182
      %v1222 = vpack.c.b16 %v1185, %v1184
      %v1223 = vpack.c.b16 %v1187, %v1186
      %v1224 = vpack.c.b16 %v1189, %v1188
      %v1225 = vpack.c.b16 %v1191, %v1190
      %v1226 = vpack.c.b16 %v1193, %v1192
      %v1227 = vpack.c.b16 %v1195, %v1194
      %v1228 = vpack.c.b16 %v1197, %v1196
      %v1229 = vpack.c.b16 %v1199, %v1198
      %v1230 = vpack.c.b16 %v1201, %v1200
      %v1231 = vpack.c.b16 %v1203, %v1202
      %v1232 = vpack.c.b16 %v1205, %v1204
      %v1233 = vpack.c.b16 %v1207, %v1206
      %v1234 = vpack.c.b16 %v1209, %v1208
      %v1235 = vpack.c.b16 %v1211, %v1210
      %1260 = vmatprep.subr.bf16.mxu0 0
      %1261 = vmatpush1.bf16.msra.mxu0 %v1212
      %1262 = vmatprep.subr.bf16.mxu0 0
      %1263 = vmatpush1.bf16.msra.mxu0 %v1213
      %1264 = vmatprep.subr.bf16.mxu0 0
      %1265 = vmatpush1.bf16.msra.mxu0 %v1214
      %1266 = vmatprep.subr.bf16.mxu0 0
      %1267 = vmatpush1.bf16.msra.mxu0 %v1215
      %1268 = vmatprep.subr.bf16.mxu0 0
      %1269 = vmatpush1.bf16.msra.mxu0 %v1216
      %1270 = vmatprep.subr.bf16.mxu0 0
      %1271 = vmatpush1.bf16.msra.mxu0 %v1217
      %1272 = vmatprep.subr.bf16.mxu0 0
      %1273 = vmatpush1.bf16.msra.mxu0 %v1218
      %1274 = vmatprep.subr.bf16.mxu0 0
      %1275 = vmatpush1.bf16.msra.mxu0 %v1219
      %1276 = vmatprep.subr.bf16.mxu0 0
      %1277 = vmatpush1.bf16.msra.mxu0 %v1220
      %1278 = vmatprep.subr.bf16.mxu0 0
      %1279 = vmatpush1.bf16.msra.mxu0 %v1221
      %1280 = vmatprep.subr.bf16.mxu0 0
      %1281 = vmatpush1.bf16.msra.mxu0 %v1222
      %1282 = vmatprep.subr.bf16.mxu0 0
      %1283 = vmatpush1.bf16.msra.mxu0 %v1223
      %1284 = vmatprep.subr.bf16.mxu0 0
      %1285 = vmatpush1.bf16.msra.mxu0 %v1224
      %1286 = vmatprep.subr.bf16.mxu0 0
      %1287 = vmatpush1.bf16.msra.mxu0 %v1225
      %1288 = vmatprep.subr.bf16.mxu0 0
      %1289 = vmatpush1.bf16.msra.mxu0 %v1226
      %1290 = vmatprep.subr.bf16.mxu0 0
      %1291 = vmatpush1.bf16.msra.mxu0 %v1227
      %1292 = vmatprep.mubr.bf16.mxu0 %v593
      %1293 = vmatmul.mubr.bf16.gmra.mrb[0].mxu0 %v897
      %v1294 = vpop.f32.mrb[0].mxu0
      %v1295 = vadd.f32 0.0, %v1294
      %v1296 = vpop.f32.mrb[0].mxu0
      %v1297 = vpop.f32.mrb[0].mxu0
      %v1298 = vadd.f32 0.0, %v1297
      %v1299 = vpop.f32.mrb[0].mxu0
      %1300 = vmatprep.mubr.bf16.mxu0 %v594
      %1301 = vmatmul.mubr.bf16.gmra.mrb[0].mxu0 %v898
      %v1302 = vpop.f32.mrb[0].mxu0
      %v1303 = vadd.f32 0.0, %v1302
      %v1304 = vpop.f32.mrb[0].mxu0
      %v1305 = vpop.f32.mrb[0].mxu0
      %v1306 = vadd.f32 0.0, %v1305
      %v1307 = vpop.f32.mrb[0].mxu0
      %1308 = vmatprep.mubr.bf16.mxu0 %v595
      %1309 = vmatmul.mubr.bf16.gmra.mrb[0].mxu0 %v899
      %v1310 = vpop.f32.mrb[0].mxu0
      %v1311 = vadd.f32 0.0, %v1310
      %v1312 = vpop.f32.mrb[0].mxu0
      %v1313 = vpop.f32.mrb[0].mxu0
      %v1314 = vadd.f32 0.0, %v1313
      %v1315 = vpop.f32.mrb[0].mxu0
      %1316 = vmatprep.mubr.bf16.mxu0 %v596
      %1317 = vmatmul.mubr.bf16.gmra.mrb[0].mxu0 %v900
      %v1318 = vpop.f32.mrb[0].mxu0
      %v1319 = vadd.f32 0.0, %v1318
      %v1320 = vpop.f32.mrb[0].mxu0
      %v1321 = vpop.f32.mrb[0].mxu0
      %v1322 = vadd.f32 0.0, %v1321
      %v1323 = vpop.f32.mrb[0].mxu0
      %1324 = vdwg.mxu0
      %1325 = vmatprep.subr.bf16.mxu0 0
      %1326 = vmatpush1.bf16.msra.mxu0 %v1228
      %1327 = vmatprep.subr.bf16.mxu0 0
      %1328 = vmatpush1.bf16.msra.mxu0 %v1229
      %1329 = vmatprep.subr.bf16.mxu0 0
      %1330 = vmatpush1.bf16.msra.mxu0 %v1230
      %1331 = vmatprep.subr.bf16.mxu0 0
      %1332 = vmatpush1.bf16.msra.mxu0 %v1231
      %1333 = vmatprep.subr.bf16.mxu0 0
      %1334 = vmatpush1.bf16.msra.mxu0 %v1232
      %1335 = vmatprep.subr.bf16.mxu0 0
      %1336 = vmatpush1.bf16.msra.mxu0 %v1233
      %1337 = vmatprep.subr.bf16.mxu0 0
      %1338 = vmatpush1.bf16.msra.mxu0 %v1234
      %1339 = vmatprep.subr.bf16.mxu0 0
      %1340 = vmatpush1.bf16.msra.mxu0 %v1235
      %1341 = vmatprep.subr.bf16.mxu0 0
      %1342 = vmatpush1.bf16.msra.mxu0 0
      %1343 = vmatprep.subr.bf16.mxu0 0
      %1344 = vmatpush1.bf16.msra.mxu0 0
      %1345 = vmatprep.subr.bf16.mxu0 0
      %1346 = vmatpush1.bf16.msra.mxu0 0
      %1347 = vmatprep.subr.bf16.mxu0 0
      %1348 = vmatpush1.bf16.msra.mxu0 0
      %1349 = vmatprep.subr.bf16.mxu0 0
      %1350 = vmatpush1.bf16.msra.mxu0 0
      %1351 = vmatprep.subr.bf16.mxu0 0
      %1352 = vmatpush1.bf16.msra.mxu0 0
      %1353 = vmatprep.subr.bf16.mxu0 0
      %1354 = vmatpush1.bf16.msra.mxu0 0
      %1355 = vmatprep.subr.bf16.mxu0 0
      %1356 = vmatpush1.bf16.msra.mxu0 0
      %1357 = vmatprep.mubr.bf16.mxu0 0
      %1358 = vmatmul.mubr.bf16.gmra.mrb[0].mxu0 %v1014
      %v1359 = vpop.f32.mrb[0].mxu0
      %v1360 = vadd.f32 %v1295, %v1359
      %v1361 = vpop.f32.mrb[0].mxu0
      %v1362 = vpop.f32.mrb[0].mxu0
      %v1363 = vadd.f32 %v1298, %v1362
      %v1364 = vpop.f32.mrb[0].mxu0
      %1365 = vmatprep.mubr.bf16.mxu0 0
      %1366 = vmatmul.mubr.bf16.gmra.mrb[0].mxu0 %v1015
      %v1367 = vpop.f32.mrb[0].mxu0
      %v1368 = vadd.f32 %v1303, %v1367
      %v1369 = vpop.f32.mrb[0].mxu0
      %v1370 = vpop.f32.mrb[0].mxu0
      %v1371 = vadd.f32 %v1306, %v1370
      %v1372 = vpop.f32.mrb[0].mxu0
      %1373 = vmatprep.mubr.bf16.mxu0 0
      %1374 = vmatmul.mubr.bf16.gmra.mrb[0].mxu0 %v1016
      %v1375 = vpop.f32.mrb[0].mxu0
      %v1376 = vadd.f32 %v1311, %v1375
      %v1377 = vpop.f32.mrb[0].mxu0
      %v1378 = vpop.f32.mrb[0].mxu0
      %v1379 = vadd.f32 %v1314, %v1378
      %v1380 = vpop.f32.mrb[0].mxu0
      %1381 = vmatprep.mubr.bf16.mxu0 0
      %1382 = vmatmul.mubr.bf16.gmra.mrb[0].mxu0 %v1017
      %v1383 = vpop.f32.mrb[0].mxu0
      %v1384 = vadd.f32 %v1319, %v1383
      %v1385 = vpop.f32.mrb[0].mxu0
      %v1386 = vpop.f32.mrb[0].mxu0
      %v1387 = vadd.f32 %v1322, %v1386
      %v1388 = vpop.f32.mrb[0].mxu0
      %1389 = vdwg.mxu0
      %v1438 = vunpack.c.l.b16 %v1019
      %v1439 = vunpack.c.l.b16 %v1020
      %v1440 = vunpack.c.l.b16 %v1021
      %v1441 = vunpack.c.l.b16 %v1022
      %v1442 = vunpack.c.l.b16 %v1023
      %v1443 = vunpack.c.l.b16 %v1024
      %v1444 = vunpack.c.l.b16 %v1025
      %v1445 = vunpack.c.l.b16 %v1026
      %v1446 = vunpack.c.l.b16 %v1027
      %v1447 = vunpack.c.l.b16 %v1028
      %v1448 = vunpack.c.l.b16 %v1029
      %v1449 = vunpack.c.l.b16 %v1030
      %v1450 = vunpack.c.l.b16 %v1031
      %v1451 = vunpack.c.l.b16 %v1032
      %v1452 = vunpack.c.l.b16 %v1033
      %v1453 = vunpack.c.l.b16 %v1034
      %v1454 = vunpack.c.l.b16 %v1035
      %v1455 = vunpack.c.l.b16 %v1036
      %v1456 = vunpack.c.l.b16 %v1037
      %v1457 = vunpack.c.l.b16 %v1038
      %v1458 = vunpack.c.l.b16 %v1039
      %v1459 = vunpack.c.l.b16 %v1040
      %v1460 = vunpack.c.l.b16 %v1041
      %v1461 = vunpack.c.l.b16 %v1042
      %v1462 = vunpack.c.l.b16 %v1043
      %v1463 = vunpack.c.l.b16 %v1044
      %v1464 = vunpack.c.l.b16 %v1045
      %v1465 = vunpack.c.l.b16 %v1046
      %v1466 = vunpack.c.l.b16 %v1047
      %v1467 = vunpack.c.l.b16 %v1048
      %v1468 = vunpack.c.l.b16 %v1049
      %v1469 = vunpack.c.l.b16 %v1050
      %v1470 = vunpack.c.l.b16 %v1051
      %v1471 = vunpack.c.l.b16 %v1052
      %v1472 = vunpack.c.l.b16 %v1053
      %v1473 = vunpack.c.l.b16 %v1054
      %v1474 = vunpack.c.l.b16 %v1055
      %v1475 = vunpack.c.l.b16 %v1056
      %v1476 = vunpack.c.l.b16 %v1057
      %v1477 = vunpack.c.l.b16 %v1058
      %v1478 = vunpack.c.l.b16 %v1059
      %v1479 = vunpack.c.l.b16 %v1060
      %v1480 = vunpack.c.l.b16 %v1061
      %v1481 = vunpack.c.l.b16 %v1062
      %v1482 = vunpack.c.l.b16 %v1063
      %v1483 = vunpack.c.l.b16 %v1064
      %v1484 = vunpack.c.l.b16 %v1065
      %v1485 = vunpack.c.l.b16 %v1066
      %v1486 = vpack.c.b16 %v1439, %v1438
      %v1487 = vpack.c.b16 %v1441, %v1440
      %v1488 = vpack.c.b16 %v1443, %v1442
      %v1489 = vpack.c.b16 %v1445, %v1444
      %v1490 = vpack.c.b16 %v1447, %v1446
      %v1491 = vpack.c.b16 %v1449, %v1448
      %v1492 = vpack.c.b16 %v1451, %v1450
      %v1493 = vpack.c.b16 %v1453, %v1452
      %v1494 = vpack.c.b16 %v1455, %v1454
      %v1495 = vpack.c.b16 %v1457, %v1456
      %v1496 = vpack.c.b16 %v1459, %v1458
      %v1497 = vpack.c.b16 %v1461, %v1460
      %v1498 = vpack.c.b16 %v1463, %v1462
      %v1499 = vpack.c.b16 %v1465, %v1464
      %v1500 = vpack.c.b16 %v1467, %v1466
      %v1501 = vpack.c.b16 %v1469, %v1468
      %v1502 = vpack.c.b16 %v1471, %v1470
      %v1503 = vpack.c.b16 %v1473, %v1472
      %v1504 = vpack.c.b16 %v1475, %v1474
      %v1505 = vpack.c.b16 %v1477, %v1476
      %v1506 = vpack.c.b16 %v1479, %v1478
      %v1507 = vpack.c.b16 %v1481, %v1480
      %v1508 = vpack.c.b16 %v1483, %v1482
      %v1509 = vpack.c.b16 %v1485, %v1484
      %1534 = vmatprep.subr.bf16.mxu0 0
      %1535 = vmatpush1.bf16.msra.mxu0 %v1486
      %1536 = vmatprep.subr.bf16.mxu0 0
      %1537 = vmatpush1.bf16.msra.mxu0 %v1487
      %1538 = vmatprep.subr.bf16.mxu0 0
      %1539 = vmatpush1.bf16.msra.mxu0 %v1488
      %1540 = vmatprep.subr.bf16.mxu0 0
      %1541 = vmatpush1.bf16.msra.mxu0 %v1489
      %1542 = vmatprep.subr.bf16.mxu0 0
      %1543 = vmatpush1.bf16.msra.mxu0 %v1490
      %1544 = vmatprep.subr.bf16.mxu0 0
      %1545 = vmatpush1.bf16.msra.mxu0 %v1491
      %1546 = vmatprep.subr.bf16.mxu0 0
      %1547 = vmatpush1.bf16.msra.mxu0 %v1492
      %1548 = vmatprep.subr.bf16.mxu0 0
      %1549 = vmatpush1.bf16.msra.mxu0 %v1493
      %1550 = vmatprep.subr.bf16.mxu0 0
      %1551 = vmatpush1.bf16.msra.mxu0 %v1494
      %1552 = vmatprep.subr.bf16.mxu0 0
      %1553 = vmatpush1.bf16.msra.mxu0 %v1495
      %1554 = vmatprep.subr.bf16.mxu0 0
      %1555 = vmatpush1.bf16.msra.mxu0 %v1496
      %1556 = vmatprep.subr.bf16.mxu0 0
      %1557 = vmatpush1.bf16.msra.mxu0 %v1497
      %1558 = vmatprep.subr.bf16.mxu0 0
      %1559 = vmatpush1.bf16.msra.mxu0 %v1498
      %1560 = vmatprep.subr.bf16.mxu0 0
      %1561 = vmatpush1.bf16.msra.mxu0 %v1499
      %1562 = vmatprep.subr.bf16.mxu0 0
      %1563 = vmatpush1.bf16.msra.mxu0 %v1500
      %1564 = vmatprep.subr.bf16.mxu0 0
      %1565 = vmatpush1.bf16.msra.mxu0 %v1501
      %1566 = vmatprep.mubr.bf16.mxu0 %v592
      %1567 = vmatmul.mubr.bf16.gmra.mrb[0].mxu0 %v896
      %v1568 = vpop.f32.mrb[0].mxu0
      %v1569 = vadd.f32 %v1360, %v1568
      %v1570 = vpop.f32.mrb[0].mxu0
      %v1571 = vpop.f32.mrb[0].mxu0
      %v1572 = vadd.f32 %v1363, %v1571
      %v1573 = vpop.f32.mrb[0].mxu0
      %1574 = vmatprep.mubr.bf16.mxu0 %v593
      %1575 = vmatmul.mubr.bf16.gmra.mrb[0].mxu0 %v897
      %v1576 = vpop.f32.mrb[0].mxu0
      %v1577 = vadd.f32 %v1368, %v1576
      %v1578 = vpop.f32.mrb[0].mxu0
      %v1579 = vpop.f32.mrb[0].mxu0
      %v1580 = vadd.f32 %v1371, %v1579
      %v1581 = vpop.f32.mrb[0].mxu0
      %1582 = vmatprep.mubr.bf16.mxu0 %v594
      %1583 = vmatmul.mubr.bf16.gmra.mrb[0].mxu0 %v898
      %v1584 = vpop.f32.mrb[0].mxu0
      %v1585 = vadd.f32 %v1376, %v1584
      %v1586 = vpop.f32.mrb[0].mxu0
      %v1587 = vpop.f32.mrb[0].mxu0
      %v1588 = vadd.f32 %v1379, %v1587
      %v1589 = vpop.f32.mrb[0].mxu0
      %1590 = vmatprep.mubr.bf16.mxu0 %v595
      %1591 = vmatmul.mubr.bf16.gmra.mrb[0].mxu0 %v899
      %v1592 = vpop.f32.mrb[0].mxu0
      %v1593 = vadd.f32 %v1384, %v1592
      %v1594 = vpop.f32.mrb[0].mxu0
      %v1595 = vpop.f32.mrb[0].mxu0
      %v1596 = vadd.f32 %v1387, %v1595
      %v1597 = vpop.f32.mrb[0].mxu0
      %1598 = vdwg.mxu0
      %1599 = vmatprep.subr.bf16.mxu0 0
      %1600 = vmatpush1.bf16.msra.mxu0 %v1502
      %1601 = vmatprep.subr.bf16.mxu0 0
      %1602 = vmatpush1.bf16.msra.mxu0 %v1503
      %1603 = vmatprep.subr.bf16.mxu0 0
      %1604 = vmatpush1.bf16.msra.mxu0 %v1504
      %1605 = vmatprep.subr.bf16.mxu0 0
      %1606 = vmatpush1.bf16.msra.mxu0 %v1505
      %1607 = vmatprep.subr.bf16.mxu0 0
      %1608 = vmatpush1.bf16.msra.mxu0 %v1506
      %1609 = vmatprep.subr.bf16.mxu0 0
      %1610 = vmatpush1.bf16.msra.mxu0 %v1507
      %1611 = vmatprep.subr.bf16.mxu0 0
      %1612 = vmatpush1.bf16.msra.mxu0 %v1508
      %1613 = vmatprep.subr.bf16.mxu0 0
      %1614 = vmatpush1.bf16.msra.mxu0 %v1509
      %1615 = vmatprep.subr.bf16.mxu0 0
      %1616 = vmatpush1.bf16.msra.mxu0 0
      %1617 = vmatprep.subr.bf16.mxu0 0
      %1618 = vmatpush1.bf16.msra.mxu0 0
      %1619 = vmatprep.subr.bf16.mxu0 0
      %1620 = vmatpush1.bf16.msra.mxu0 0
      %1621 = vmatprep.subr.bf16.mxu0 0
      %1622 = vmatpush1.bf16.msra.mxu0 0
      %1623 = vmatprep.subr.bf16.mxu0 0
      %1624 = vmatpush1.bf16.msra.mxu0 0
      %1625 = vmatprep.subr.bf16.mxu0 0
      %1626 = vmatpush1.bf16.msra.mxu0 0
      %1627 = vmatprep.subr.bf16.mxu0 0
      %1628 = vmatpush1.bf16.msra.mxu0 0
      %1629 = vmatprep.subr.bf16.mxu0 0
      %1630 = vmatpush1.bf16.msra.mxu0 0
      %1631 = vmatprep.mubr.bf16.mxu0 0
      %1632 = vmatmul.mubr.bf16.gmra.mrb[0].mxu0 %v1013
      %v1633 = vpop.f32.mrb[0].mxu0
      %v1634 = vadd.f32 %v1569, %v1633
      %v1635 = vpop.f32.mrb[0].mxu0
      %v1636 = vpop.f32.mrb[0].mxu0
      %v1637 = vadd.f32 %v1572, %v1636
      %v1638 = vpop.f32.mrb[0].mxu0
      %1639 = vmatprep.mubr.bf16.mxu0 0
      %1640 = vmatmul.mubr.bf16.gmra.mrb[0].mxu0 %v1014
      %v1641 = vpop.f32.mrb[0].mxu0
      %v1642 = vadd.f32 %v1577, %v1641
      %v1643 = vpop.f32.mrb[0].mxu0
      %v1644 = vpop.f32.mrb[0].mxu0
      %v1645 = vadd.f32 %v1580, %v1644
      %v1646 = vpop.f32.mrb[0].mxu0
      %1647 = vmatprep.mubr.bf16.mxu0 0
      %1648 = vmatmul.mubr.bf16.gmra.mrb[0].mxu0 %v1015
      %v1649 = vpop.f32.mrb[0].mxu0
      %v1650 = vadd.f32 %v1585, %v1649
      %v1651 = vpop.f32.mrb[0].mxu0
      %v1652 = vpop.f32.mrb[0].mxu0
      %v1653 = vadd.f32 %v1588, %v1652
      %v1654 = vpop.f32.mrb[0].mxu0
      %1655 = vmatprep.mubr.bf16.mxu0 0
      %1656 = vmatmul.mubr.bf16.gmra.mrb[0].mxu0 %v1016
      %v1657 = vpop.f32.mrb[0].mxu0
      %v1658 = vadd.f32 %v1593, %v1657
      %v1659 = vpop.f32.mrb[0].mxu0
      %v1660 = vpop.f32.mrb[0].mxu0
      %v1661 = vadd.f32 %v1596, %v1660
      %v1662 = vpop.f32.mrb[0].mxu0
      %1663 = vdwg.mxu0
      %s1664 = scalar_lea.vmem %s4, 384
      %v1665 = vld [vmem:[%s1664] sm:$0xf]
      %v1666 = vld [vmem:[%s1664 + $0x4] sm:$0xf]
      %v1667 = vld [vmem:[%s1664 + $0x8] sm:$0xf]
      %v1668 = vld [vmem:[%s1664 + $0xc] sm:$0xf]
      %v1669 = vld [vmem:[%s1664 + $0x10] sm:$0xf]
      %v1670 = vld [vmem:[%s1664 + $0x14] sm:$0xf]
      %v1671 = vld [vmem:[%s1664 + $0x18] sm:$0xf]
      %v1672 = vld [vmem:[%s1664 + $0x1c] sm:$0xf]
      %v1673 = vld [vmem:[%s1664 + $0x20] sm:$0xf]
      %v1674 = vld [vmem:[%s1664 + $0x24] sm:$0xf]
      %v1675 = vld [vmem:[%s1664 + $0x28] sm:$0xf]
      %v1676 = vld [vmem:[%s1664 + $0x2c] sm:$0xf]
      %v1677 = vld [vmem:[%s1664 + $0x30] sm:$0xf]
      %v1678 = vld [vmem:[%s1664 + $0x34] sm:$0xf]
      %v1679 = vld [vmem:[%s1664 + $0x38] sm:$0xf]
      %v1680 = vld [vmem:[%s1664 + $0x3c] sm:$0xf]
      %v1681 = vld [vmem:[%s1664 + $0x40] sm:$0xf]
      %v1682 = vld [vmem:[%s1664 + $0x44] sm:$0xf]
      %v1683 = vld [vmem:[%s1664 + $0x48] sm:$0xf]
      %v1684 = vld [vmem:[%s1664 + $0x4c] sm:$0xf]
      %v1685 = vld [vmem:[%s1664 + $0x50] sm:$0xf]
      %v1686 = vld [vmem:[%s1664 + $0x54] sm:$0xf]
      %v1687 = vld [vmem:[%s1664 + $0x58] sm:$0xf]
      %v1688 = vld [vmem:[%s1664 + $0x5c] sm:$0xf]
      %v1689 = vld [vmem:[%s1664 + $0x60] sm:$0xf]
      %v1690 = vld [vmem:[%s1664 + $0x64] sm:$0xf]
      %v1691 = vld [vmem:[%s1664 + $0x68] sm:$0xf]
      %v1692 = vld [vmem:[%s1664 + $0x6c] sm:$0xf]
      %v1693 = vld [vmem:[%s1664 + $0x70] sm:$0xf]
      %v1694 = vld [vmem:[%s1664 + $0x74] sm:$0xf]
      %v1695 = vld [vmem:[%s1664 + $0x78] sm:$0xf]
      %v1696 = vld [vmem:[%s1664 + $0x7c] sm:$0xf]
      %v1697 = vld [vmem:[%s1664 + $0x80] sm:$0xf]
      %v1698 = vld [vmem:[%s1664 + $0x84] sm:$0xf]
      %v1699 = vld [vmem:[%s1664 + $0x88] sm:$0xf]
      %v1700 = vld [vmem:[%s1664 + $0x8c] sm:$0xf]
      %v1701 = vld [vmem:[%s1664 + $0x90] sm:$0xf]
      %v1702 = vld [vmem:[%s1664 + $0x94] sm:$0xf]
      %v1703 = vld [vmem:[%s1664 + $0x98] sm:$0xf]
      %v1704 = vld [vmem:[%s1664 + $0x9c] sm:$0xf]
      %v1705 = vld [vmem:[%s1664 + $0xa0] sm:$0xf]
      %v1706 = vld [vmem:[%s1664 + $0xa4] sm:$0xf]
      %v1707 = vld [vmem:[%s1664 + $0xa8] sm:$0xf]
      %v1708 = vld [vmem:[%s1664 + $0xac] sm:$0xf]
      %v1709 = vld [vmem:[%s1664 + $0xb0] sm:$0xf]
      %v1710 = vld [vmem:[%s1664 + $0xb4] sm:$0xf]
      %v1711 = vld [vmem:[%s1664 + $0xb8] sm:$0xf]
      %v1712 = vld [vmem:[%s1664 + $0xbc] sm:$0xf]
      %v1761 = vunpack.c.l.b16 %v1665
      %v1762 = vunpack.c.l.b16 %v1666
      %v1763 = vunpack.c.l.b16 %v1667
      %v1764 = vunpack.c.l.b16 %v1668
      %v1765 = vunpack.c.l.b16 %v1669
      %v1766 = vunpack.c.l.b16 %v1670
      %v1767 = vunpack.c.l.b16 %v1671
      %v1768 = vunpack.c.l.b16 %v1672
      %v1769 = vunpack.c.l.b16 %v1673
      %v1770 = vunpack.c.l.b16 %v1674
      %v1771 = vunpack.c.l.b16 %v1675
      %v1772 = vunpack.c.l.b16 %v1676
      %v1773 = vunpack.c.l.b16 %v1677
      %v1774 = vunpack.c.l.b16 %v1678
      %v1775 = vunpack.c.l.b16 %v1679
      %v1776 = vunpack.c.l.b16 %v1680
      %v1777 = vunpack.c.l.b16 %v1681
      %v1778 = vunpack.c.l.b16 %v1682
      %v1779 = vunpack.c.l.b16 %v1683
      %v1780 = vunpack.c.l.b16 %v1684
      %v1781 = vunpack.c.l.b16 %v1685
      %v1782 = vunpack.c.l.b16 %v1686
      %v1783 = vunpack.c.l.b16 %v1687
      %v1784 = vunpack.c.l.b16 %v1688
      %v1785 = vunpack.c.l.b16 %v1689
      %v1786 = vunpack.c.l.b16 %v1690
      %v1787 = vunpack.c.l.b16 %v1691
      %v1788 = vunpack.c.l.b16 %v1692
      %v1789 = vunpack.c.l.b16 %v1693
      %v1790 = vunpack.c.l.b16 %v1694
      %v1791 = vunpack.c.l.b16 %v1695
      %v1792 = vunpack.c.l.b16 %v1696
      %v1793 = vunpack.c.l.b16 %v1697
      %v1794 = vunpack.c.l.b16 %v1698
      %v1795 = vunpack.c.l.b16 %v1699
      %v1796 = vunpack.c.l.b16 %v1700
      %v1797 = vunpack.c.l.b16 %v1701
      %v1798 = vunpack.c.l.b16 %v1702
      %v1799 = vunpack.c.l.b16 %v1703
      %v1800 = vunpack.c.l.b16 %v1704
      %v1801 = vunpack.c.l.b16 %v1705
      %v1802 = vunpack.c.l.b16 %v1706
      %v1803 = vunpack.c.l.b16 %v1707
      %v1804 = vunpack.c.l.b16 %v1708
      %v1805 = vunpack.c.l.b16 %v1709
      %v1806 = vunpack.c.l.b16 %v1710
      %v1807 = vunpack.c.l.b16 %v1711
      %v1808 = vunpack.c.l.b16 %v1712
      %v1809 = vpack.c.b16 %v1762, %v1761
      %v1810 = vpack.c.b16 %v1764, %v1763
      %v1811 = vpack.c.b16 %v1766, %v1765
      %v1812 = vpack.c.b16 %v1768, %v1767
      %v1813 = vpack.c.b16 %v1770, %v1769
      %v1814 = vpack.c.b16 %v1772, %v1771
      %v1815 = vpack.c.b16 %v1774, %v1773
      %v1816 = vpack.c.b16 %v1776, %v1775
      %v1817 = vpack.c.b16 %v1778, %v1777
      %v1818 = vpack.c.b16 %v1780, %v1779
      %v1819 = vpack.c.b16 %v1782, %v1781
      %v1820 = vpack.c.b16 %v1784, %v1783
      %v1821 = vpack.c.b16 %v1786, %v1785
      %v1822 = vpack.c.b16 %v1788, %v1787
      %v1823 = vpack.c.b16 %v1790, %v1789
      %v1824 = vpack.c.b16 %v1792, %v1791
      %v1825 = vpack.c.b16 %v1794, %v1793
      %v1826 = vpack.c.b16 %v1796, %v1795
      %v1827 = vpack.c.b16 %v1798, %v1797
      %v1828 = vpack.c.b16 %v1800, %v1799
      %v1829 = vpack.c.b16 %v1802, %v1801
      %v1830 = vpack.c.b16 %v1804, %v1803
      %v1831 = vpack.c.b16 %v1806, %v1805
      %v1832 = vpack.c.b16 %v1808, %v1807
      %1857 = vmatprep.subr.bf16.mxu0 0
      %1858 = vmatpush1.bf16.msra.mxu0 %v1809
      %1859 = vmatprep.subr.bf16.mxu0 0
      %1860 = vmatpush1.bf16.msra.mxu0 %v1810
      %1861 = vmatprep.subr.bf16.mxu0 0
      %1862 = vmatpush1.bf16.msra.mxu0 %v1811
      %1863 = vmatprep.subr.bf16.mxu0 0
      %1864 = vmatpush1.bf16.msra.mxu0 %v1812
      %1865 = vmatprep.subr.bf16.mxu0 0
      %1866 = vmatpush1.bf16.msra.mxu0 %v1813
      %1867 = vmatprep.subr.bf16.mxu0 0
      %1868 = vmatpush1.bf16.msra.mxu0 %v1814
      %1869 = vmatprep.subr.bf16.mxu0 0
      %1870 = vmatpush1.bf16.msra.mxu0 %v1815
      %1871 = vmatprep.subr.bf16.mxu0 0
      %1872 = vmatpush1.bf16.msra.mxu0 %v1816
      %1873 = vmatprep.subr.bf16.mxu0 0
      %1874 = vmatpush1.bf16.msra.mxu0 %v1817
      %1875 = vmatprep.subr.bf16.mxu0 0
      %1876 = vmatpush1.bf16.msra.mxu0 %v1818
      %1877 = vmatprep.subr.bf16.mxu0 0
      %1878 = vmatpush1.bf16.msra.mxu0 %v1819
      %1879 = vmatprep.subr.bf16.mxu0 0
      %1880 = vmatpush1.bf16.msra.mxu0 %v1820
      %1881 = vmatprep.subr.bf16.mxu0 0
      %1882 = vmatpush1.bf16.msra.mxu0 %v1821
      %1883 = vmatprep.subr.bf16.mxu0 0
      %1884 = vmatpush1.bf16.msra.mxu0 %v1822
      %1885 = vmatprep.subr.bf16.mxu0 0
      %1886 = vmatpush1.bf16.msra.mxu0 %v1823
      %1887 = vmatprep.subr.bf16.mxu0 0
      %1888 = vmatpush1.bf16.msra.mxu0 %v1824
      %1889 = vmatprep.mubr.bf16.mxu0 %v594
      %1890 = vmatmul.mubr.bf16.gmra.mrb[0].mxu0 %v898
      %v1891 = vpop.f32.mrb[0].mxu0
      %v1892 = vadd.f32 0.0, %v1891
      %v1893 = vpop.f32.mrb[0].mxu0
      %v1894 = vpop.f32.mrb[0].mxu0
      %v1895 = vadd.f32 0.0, %v1894
      %v1896 = vpop.f32.mrb[0].mxu0
      %1897 = vmatprep.mubr.bf16.mxu0 %v595
      %1898 = vmatmul.mubr.bf16.gmra.mrb[0].mxu0 %v899
      %v1899 = vpop.f32.mrb[0].mxu0
      %v1900 = vadd.f32 0.0, %v1899
      %v1901 = vpop.f32.mrb[0].mxu0
      %v1902 = vpop.f32.mrb[0].mxu0
      %v1903 = vadd.f32 0.0, %v1902
      %v1904 = vpop.f32.mrb[0].mxu0
      %1905 = vmatprep.mubr.bf16.mxu0 %v596
      %1906 = vmatmul.mubr.bf16.gmra.mrb[0].mxu0 %v900
      %v1907 = vpop.f32.mrb[0].mxu0
      %v1908 = vadd.f32 0.0, %v1907
      %v1909 = vpop.f32.mrb[0].mxu0
      %v1910 = vpop.f32.mrb[0].mxu0
      %v1911 = vadd.f32 0.0, %v1910
      %v1912 = vpop.f32.mrb[0].mxu0
      %1913 = vmatprep.mubr.bf16.mxu0 %v597
      %1914 = vmatmul.mubr.bf16.gmra.mrb[0].mxu0 %v901
      %v1915 = vpop.f32.mrb[0].mxu0
      %v1916 = vadd.f32 0.0, %v1915
      %v1917 = vpop.f32.mrb[0].mxu0
      %v1918 = vpop.f32.mrb[0].mxu0
      %v1919 = vadd.f32 0.0, %v1918
      %v1920 = vpop.f32.mrb[0].mxu0
      %1921 = vdwg.mxu0
      %1922 = vmatprep.subr.bf16.mxu0 0
      %1923 = vmatpush1.bf16.msra.mxu0 %v1825
      %1924 = vmatprep.subr.bf16.mxu0 0
      %1925 = vmatpush1.bf16.msra.mxu0 %v1826
      %1926 = vmatprep.subr.bf16.mxu0 0
      %1927 = vmatpush1.bf16.msra.mxu0 %v1827
      %1928 = vmatprep.subr.bf16.mxu0 0
      %1929 = vmatpush1.bf16.msra.mxu0 %v1828
      %1930 = vmatprep.subr.bf16.mxu0 0
      %1931 = vmatpush1.bf16.msra.mxu0 %v1829
      %1932 = vmatprep.subr.bf16.mxu0 0
      %1933 = vmatpush1.bf16.msra.mxu0 %v1830
      %1934 = vmatprep.subr.bf16.mxu0 0
      %1935 = vmatpush1.bf16.msra.mxu0 %v1831
      %1936 = vmatprep.subr.bf16.mxu0 0
      %1937 = vmatpush1.bf16.msra.mxu0 %v1832
      %1938 = vmatprep.subr.bf16.mxu0 0
      %1939 = vmatpush1.bf16.msra.mxu0 0
      %1940 = vmatprep.subr.bf16.mxu0 0
      %1941 = vmatpush1.bf16.msra.mxu0 0
      %1942 = vmatprep.subr.bf16.mxu0 0
      %1943 = vmatpush1.bf16.msra.mxu0 0
      %1944 = vmatprep.subr.bf16.mxu0 0
      %1945 = vmatpush1.bf16.msra.mxu0 0
      %1946 = vmatprep.subr.bf16.mxu0 0
      %1947 = vmatpush1.bf16.msra.mxu0 0
      %1948 = vmatprep.subr.bf16.mxu0 0
      %1949 = vmatpush1.bf16.msra.mxu0 0
      %1950 = vmatprep.subr.bf16.mxu0 0
      %1951 = vmatpush1.bf16.msra.mxu0 0
      %1952 = vmatprep.subr.bf16.mxu0 0
      %1953 = vmatpush1.bf16.msra.mxu0 0
      %1954 = vmatprep.mubr.bf16.mxu0 0
      %1955 = vmatmul.mubr.bf16.gmra.mrb[0].mxu0 %v1015
      %v1956 = vpop.f32.mrb[0].mxu0
      %v1957 = vadd.f32 %v1892, %v1956
      %v1958 = vpop.f32.mrb[0].mxu0
      %v1959 = vpop.f32.mrb[0].mxu0
      %v1960 = vadd.f32 %v1895, %v1959
      %v1961 = vpop.f32.mrb[0].mxu0
      %1962 = vmatprep.mubr.bf16.mxu0 0
      %1963 = vmatmul.mubr.bf16.gmra.mrb[0].mxu0 %v1016
      %v1964 = vpop.f32.mrb[0].mxu0
      %v1965 = vadd.f32 %v1900, %v1964
      %v1966 = vpop.f32.mrb[0].mxu0
      %v1967 = vpop.f32.mrb[0].mxu0
      %v1968 = vadd.f32 %v1903, %v1967
      %v1969 = vpop.f32.mrb[0].mxu0
      %1970 = vmatprep.mubr.bf16.mxu0 0
      %1971 = vmatmul.mubr.bf16.gmra.mrb[0].mxu0 %v1017
      %v1972 = vpop.f32.mrb[0].mxu0
      %v1973 = vadd.f32 %v1908, %v1972
      %v1974 = vpop.f32.mrb[0].mxu0
      %v1975 = vpop.f32.mrb[0].mxu0
      %v1976 = vadd.f32 %v1911, %v1975
      %v1977 = vpop.f32.mrb[0].mxu0
      %1978 = vmatprep.mubr.bf16.mxu0 0
      %1979 = vmatmul.mubr.bf16.gmra.mrb[0].mxu0 %v1018
      %v1980 = vpop.f32.mrb[0].mxu0
      %v1981 = vadd.f32 %v1916, %v1980
      %v1982 = vpop.f32.mrb[0].mxu0
      %v1983 = vpop.f32.mrb[0].mxu0
      %v1984 = vadd.f32 %v1919, %v1983
      %v1985 = vpop.f32.mrb[0].mxu0
      %1986 = vdwg.mxu0
      %v1987 = vadd.f32 %v1634, %v1957
      %v1988 = vadd.f32 %v1637, %v1960
      %v1989 = vadd.f32 %v1642, %v1965
      %v1990 = vadd.f32 %v1645, %v1968
      %v1991 = vadd.f32 %v1650, %v1973
      %v1992 = vadd.f32 %v1653, %v1976
      %v1993 = vadd.f32 %v1658, %v1981
      %v1994 = vadd.f32 %v1661, %v1984
      %v1995 = vld [vmem:[%s439] sm:$0x1]
      %v1997 = vlaneseq
      %v1998 = vshrl.u32 %v1997, 7
      %v1999 = vsub.s32 0, %v1998
      %v2000 = vrot.slane %v1995, %v1999
      %v2002 = vadd.f32 %v1987, %v2000
      %v2003 = vadd.f32 %v1988, %v2000
      %v2004 = vadd.f32 %v1989, %v2000
      %v2005 = vadd.f32 %v1990, %v2000
      %v2006 = vadd.f32 %v1991, %v2000
      %v2007 = vadd.f32 %v1992, %v2000
      %v2008 = vadd.f32 %v1993, %v2000
      %v2009 = vadd.f32 %v1994, %v2000
      %v2010 = vpack.c.bf16 %v2003, %v2002
      %v2011 = vpack.c.bf16 %v2005, %v2004
      %v2012 = vpack.c.bf16 %v2007, %v2006
      %v2013 = vpack.c.bf16 %v2009, %v2008
      %v2018 = vunpack.c.l.b16 %v2010
      %v2019 = vunpack.c.h.b16 %v2010
      %v2020 = vunpack.c.l.b16 %v2011
      %v2021 = vunpack.c.h.b16 %v2011
      %v2022 = vunpack.c.l.b16 %v2012
      %v2023 = vunpack.c.h.b16 %v2012
      %v2024 = vunpack.c.l.b16 %v2013
      %v2025 = vunpack.c.h.b16 %v2013
      %v2026 = vpack.c.b16 %v2018, %v2018
      %v2027 = vpack.c.b16 %v2019, %v2019
      %v2028 = vpack.c.b16 %v2020, %v2020
      %v2029 = vpack.c.b16 %v2021, %v2021
      %v2030 = vpack.c.b16 %v2022, %v2022
      %v2031 = vpack.c.b16 %v2023, %v2023
      %v2032 = vpack.c.b16 %v2024, %v2024
      %v2033 = vpack.c.b16 %v2025, %v2025
      %2042 = vst [vmem:[%s448] sm:$0xf] %v2026
      %2043 = vst [vmem:[%s448 + $0x4] sm:$0xf] %v2027
      %2044 = vst [vmem:[%s448 + $0x8] sm:$0xf] %v2028
      %2045 = vst [vmem:[%s448 + $0xc] sm:$0xf] %v2029
      %2046 = vst [vmem:[%s448 + $0x10] sm:$0xf] %v2030
      %2047 = vst [vmem:[%s448 + $0x14] sm:$0xf] %v2031
      %2048 = vst [vmem:[%s448 + $0x18] sm:$0xf] %v2032
      %2049 = vst [vmem:[%s448 + $0x1c] sm:$0xf] %v2033
      %s2050 = smul.u32 8, %s22
      %p2051 = scmp.lt.s32.totalorder %s21, 1
      %s2052 = scalar_select %p2051, %s21, 1
      %p2053 = scmp.lt.s32.totalorder %s2050, 31
      %s2054 = scalar_select %p2053, %s2050, 31
      %s2055 = smul.addr %s2052, 32
      %s2056 = sadd.s32 %s2054, %s2055
      %s2057 = smul.addr %s2056, 4
      %s2058 = scalar_lea.vmem %s6, %s2057
      // Predicated region
      $region45: #{resnet_block_forward.5} parent=43 // pred_check
        %p2059 = pneg %p222
      $region46: #{resnet_block_forward.5} parent=43 // pred_check_branch
        %2061 = sbr.rel (%p2059) target = $region48
      $region47: #{resnet_block_forward.5} parent=43 // pred_region
        %s2062 = smul.u32 8, %s22
      $region48: #{resnet_block_forward.5} parent=43 // pred_fallthru
        _
    $region44: #{resnet_block_forward.5} parent=5 // pred_fallthru
      _
    %p2063 = scmp.le.s32.totalorder 2, %s12
    // Predicated region
    $region49: #{resnet_block_forward.5} parent=5 // pred_check
      %p2064 = pneg %p2063
    $region50: #{resnet_block_forward.5} parent=5 // pred_check_branch
      %2066 = sbr.rel (%p2064) target = $region52
    $region51: #{resnet_block_forward.5} parent=5 // pred_region
      %s2067 = ssub.s32 %s12, 2
      // Predicated region
      $region53: #{resnet_block_forward.5} parent=51 // pred_check
        %p2068 = pneg %p228
      $region54: #{resnet_block_forward.5} parent=51 // pred_check_branch
        %2070 = sbr.rel (%p2068) target = $region56
      $region55: #{resnet_block_forward.5} parent=51 // pred_region
        %s2071 = smul.u32 8, %s24
        %p2072 = scmp.lt.s32.totalorder %s23, 1
        %s2073 = scalar_select %p2072, %s23, 1
        %p2074 = scmp.lt.s32.totalorder %s2071, 31
        %s2075 = scalar_select %p2074, %s2071, 31
        %s2076 = smul.addr %s2073, 32
        %s2077 = sadd.s32 %s2075, %s2076
        %s2078 = smul.addr %s2077, 4
        %s2079 = scalar_lea.vmem %s6, %s2078
      $region56: #{resnet_block_forward.5} parent=51 // pred_fallthru
        _
    $region52: #{resnet_block_forward.5} parent=5 // pred_fallthru
      _
  $region6: #{resnet_block_forward.5} parent=0 // loop_footer
    %s16 = sadd.s32 1, %s12
  $region7: #{resnet_block_forward.5} parent=0 // loop_footer_branch
    %11 = sbr.rel target = $region3
  $region8: #{resnet_block_forward.5} parent=0 // loop_exit
    _

// kernel: resnet_block_forward.7
$region0: #{resnet_block_forward.7}
  #allocation0 [shape = 'u32[]', space=smem, size = 0x4, offset = 0x4, fixed_abs, tag = 'smem constant byte address 0x4 - core index']
  #allocation1 [shape = 'u32[144,128]{1,0:T(1,128)}', space=vmem, size = 0x12000, scoped, tag = 'internal scratch']
  %s0 = inlined_call_operand.vmem [shape: bf16[2,256,128], index: 0, kind: input, shape index: {}, may-alias: {0,1,2}]
  %s1 = inlined_call_operand.vmem [shape: bf16[2,256,128], index: 1, kind: input, shape index: {}, may-alias: {0,1,2}]
  %s2 = inlined_call_operand.vmem [shape: bf16[2,256,128], index: 2, kind: input, shape index: {}, may-alias: {0,1,2}]
  %s3 = inlined_call_operand.vmem [shape: f32[2,2,128], index: 3, kind: input, shape index: {}]
  %s4 = inlined_call_operand.vmem [shape: bf16[3,384,128], index: 4, kind: input, shape index: {}]
  %s5 = inlined_call_operand.vmem [shape: f32[1,1,128], index: 5, kind: input, shape index: {}]
  %s6 = inlined_call_operand.vmem [shape: f32[2,256,128], index: 6, kind: input, shape index: {}]
  %s7 = inlined_call_operand.hbm [shape: f32[2,256,128], index: 7, kind: output, shape index: {}]
  %s8 = sld [smem:[#allocation0]]
  $region61: #{resnet_block_forward.7} parent=0
    _
  %s10 = ssub.s32 1, %s8
  %s11 = scalar_select 0, %s10, %s8
  $region1: #{resnet_block_forward.7} parent=0
    #allocation2 [shape = 'u8[65536]{0}', space=vmem, size = 0x10000, scoped, tag = 'output window, operand 0']
    #allocation3 [shape = 's32[2]{0}', space=sflag, size = 0x8, scoped, tag = 'scoped memory for resnet_block_forward.7']
    %12 = vsyncpa [#allocation3], 0
    %s13 = scalar_lea.sflag [#allocation3], 1
    %14 = vsyncpa %s13, 0
    loop: start=0, step=1, limit=10
    $region2: #{resnet_block_forward.7} parent=1 // loop_pre_header
      _
    $region3: #{resnet_block_forward.7} parent=1 // loop_header
      %s16 = sphi 0, %s20
      %p17 = scmp.ge.s32.totalorder %s16, 10
      %s23 = sphi 0, %s35
      %s24 = sphi 0, %s31
      %s25 = sphi 0, %s23
      %s26 = sphi 0, %s24
      %s27 = sphi 0, %s25
      %s28 = sphi 0, %s26
      %s40 = sphi 0, %s42
      %s43 = sphi 0, %s40
      %s44 = sphi 0, %s43
      %s60 = sphi 0, %s44
      %s76 = sphi 0, %s78
      %s79 = sphi 0, %s76
      %s80 = sphi 0, %s79
      %s96 = sphi 0, %s80
      %s112 = sphi 0, %s114
      %s115 = sphi 0, %s112
      %s116 = sphi 0, %s115
      %s132 = sphi 0, %s116
      %s138 = sphi 0, %s140
      %s141 = sphi 0, %s138
      %s142 = sphi 0, %s141
      %s158 = sphi 0, %s142
      %s162 = sphi 0, %s162
      %s164 = sphi 0, %s162
      %s165 = sphi 0, %s164
      %s179 = sphi 0, %s165
      %s183 = sphi 0, %s183
      %s185 = sphi 0, %s183
      %s186 = sphi 0, %s185
      %s200 = sphi 0, %s186
      %s208 = sphi 0, %s210
      %s211 = sphi 0, %s208
      %s212 = sphi 0, %s211
      %s228 = sphi 0, %s212
      %s236 = sphi 0, %s238
      %s239 = sphi 0, %s236
      %s240 = sphi 0, %s239
      %s256 = sphi 0, %s240
    $region4: #{resnet_block_forward.7} parent=1 // loop_header_branch
      %19 = sbr.rel (%p17) target = $region8
    $region5: #{resnet_block_forward.7} parent=1 // loop_body
      %s21 = ssub.s32 %s16, 1
      %s22 = ssub.s32 %s16, 2
      %s29 = sadd.s32 1, %s24
      %p30 = scmp.ge.s32.totalorder %s29, 4
      %s31 = scalar_select %p30, 0, %s29
      %s32 = sadd.s32 1, %s23
      %s33 = scalar_select %p30, %s32, %s23
      %p34 = scmp.ge.s32.totalorder %s33, 2
      %s35 = scalar_select %p34, 0, %s33
      %s36 = ssub.s32 %s23, %s35
      %s37 = ssub.s32 %s24, %s31
      %s38 = sor.u32 %s36, %s37
      %p39 = scmp.eq.s32.totalorder %s38, 0
      %s41 = sadd.s32 %s40, 1
      %s42 = scalar_select %p39, %s40, %s41
      %p45 = pneg %p39
      %p46 = scmp.eq.s32.totalorder %s16, 7
      %p47 = por %p45, %p46
      %p48 = scmp.ne.s32.totalorder %s40, %s43
      %p49 = scmp.eq.s32.totalorder %s16, 0
      %p50 = por %p48, %p49
      %p51 = scmp.ne.s32.totalorder %s40, %s43
      %p52 = scmp.eq.s32.totalorder %s21, 7
      %p53 = por %p51, %p52
      %p54 = scmp.ne.s32.totalorder %s43, %s44
      %p55 = scmp.eq.s32.totalorder %s21, 0
      %p56 = por %p54, %p55
      %p57 = scmp.ne.s32.totalorder %s43, %s44
      %p58 = scmp.eq.s32.totalorder %s22, 7
      %p59 = por %p57, %p58
      %p61 = scmp.ne.s32.totalorder %s44, %s60
      %p62 = scmp.eq.s32.totalorder %s22, 0
      %p63 = por %p61, %p62
      %s64 = smul.u32 %s24, 4
      %s65 = ssub.s32 %s64, 1
      %p66 = scmp.gt.s32.totalorder %s65, 0
      %s67 = scalar_select %p66, %s65, 0
      %s68 = smul.u32 %s31, 4
      %s69 = ssub.s32 %s68, 1
      %p70 = scmp.gt.s32.totalorder %s69, 0
      %s71 = scalar_select %p70, %s69, 0
      %s72 = ssub.s32 %s23, %s35
      %s73 = ssub.s32 %s67, %s71
      %s74 = sor.u32 %s72, %s73
      %p75 = scmp.eq.s32.totalorder %s74, 0
      %s77 = sadd.s32 %s76, 1
      %s78 = scalar_select %p75, %s76, %s77
      %p81 = pneg %p75
      %p82 = scmp.eq.s32.totalorder %s16, 7
      %p83 = por %p81, %p82
      %p84 = scmp.ne.s32.totalorder %s76, %s79
      %p85 = scmp.eq.s32.totalorder %s16, 0
      %p86 = por %p84, %p85
      %p87 = scmp.ne.s32.totalorder %s76, %s79
      %p88 = scmp.eq.s32.totalorder %s21, 7
      %p89 = por %p87, %p88
      %p90 = scmp.ne.s32.totalorder %s79, %s80
      %p91 = scmp.eq.s32.totalorder %s21, 0
      %p92 = por %p90, %p91
      %p93 = scmp.ne.s32.totalorder %s79, %s80
      %p94 = scmp.eq.s32.totalorder %s22, 7
      %p95 = por %p93, %p94
      %p97 = scmp.ne.s32.totalorder %s80, %s96
      %p98 = scmp.eq.s32.totalorder %s22, 0
      %p99 = por %p97, %p98
      %s100 = sadd.s32 %s24, 1
      %s101 = smul.u32 %s100, 4
      %p102 = scmp.lt.s32.totalorder %s101, 15
      %s103 = scalar_select %p102, %s101, 15
      %s104 = sadd.s32 %s31, 1
      %s105 = smul.u32 %s104, 4
      %p106 = scmp.lt.s32.totalorder %s105, 15
      %s107 = scalar_select %p106, %s105, 15
      %s108 = ssub.s32 %s23, %s35
      %s109 = ssub.s32 %s103, %s107
      %s110 = sor.u32 %s108, %s109
      %p111 = scmp.eq.s32.totalorder %s110, 0
      %s113 = sadd.s32 %s112, 1
      %s114 = scalar_select %p111, %s112, %s113
      %p117 = pneg %p111
      %p118 = scmp.eq.s32.totalorder %s16, 7
      %p119 = por %p117, %p118
      %p120 = scmp.ne.s32.totalorder %s112, %s115
      %p121 = scmp.eq.s32.totalorder %s16, 0
      %p122 = por %p120, %p121
      %p123 = scmp.ne.s32.totalorder %s112, %s115
      %p124 = scmp.eq.s32.totalorder %s21, 7
      %p125 = por %p123, %p124
      %p126 = scmp.ne.s32.totalorder %s115, %s116
      %p127 = scmp.eq.s32.totalorder %s21, 0
      %p128 = por %p126, %p127
      %p129 = scmp.ne.s32.totalorder %s115, %s116
      %p130 = scmp.eq.s32.totalorder %s22, 7
      %p131 = por %p129, %p130
      %p133 = scmp.ne.s32.totalorder %s116, %s132
      %p134 = scmp.eq.s32.totalorder %s22, 0
      %p135 = por %p133, %p134
      %s136 = ssub.s32 %s23, %s35
      %p137 = scmp.eq.s32.totalorder %s136, 0
      %s139 = sadd.s32 %s138, 1
      %s140 = scalar_select %p137, %s138, %s139
      %p143 = pneg %p137
      %p144 = scmp.eq.s32.totalorder %s16, 7
      %p145 = por %p143, %p144
      %p146 = scmp.ne.s32.totalorder %s138, %s141
      %p147 = scmp.eq.s32.totalorder %s16, 0
      %p148 = por %p146, %p147
      %p149 = scmp.ne.s32.totalorder %s138, %s141
      %p150 = scmp.eq.s32.totalorder %s21, 7
      %p151 = por %p149, %p150
      %p152 = scmp.ne.s32.totalorder %s141, %s142
      %p153 = scmp.eq.s32.totalorder %s21, 0
      %p154 = por %p152, %p153
      %p155 = scmp.ne.s32.totalorder %s141, %s142
      %p156 = scmp.eq.s32.totalorder %s22, 7
      %p157 = por %p155, %p156
      %p159 = scmp.ne.s32.totalorder %s142, %s158
      %p160 = scmp.eq.s32.totalorder %s22, 0
      %p161 = por %p159, %p160
      %s163 = sadd.s32 %s162, 1
      %p166 = scmp.eq.s32.totalorder %s16, 7
      %p167 = scmp.ne.s32.totalorder %s162, %s164
      %p168 = scmp.eq.s32.totalorder %s16, 0
      %p169 = por %p167, %p168
      %p170 = scmp.ne.s32.totalorder %s162, %s164
      %p171 = scmp.eq.s32.totalorder %s21, 7
      %p172 = por %p170, %p171
      %p173 = scmp.ne.s32.totalorder %s164, %s165
      %p174 = scmp.eq.s32.totalorder %s21, 0
      %p175 = por %p173, %p174
      %p176 = scmp.ne.s32.totalorder %s164, %s165
      %p177 = scmp.eq.s32.totalorder %s22, 7
      %p178 = por %p176, %p177
      %p180 = scmp.ne.s32.totalorder %s165, %s179
      %p181 = scmp.eq.s32.totalorder %s22, 0
      %p182 = por %p180, %p181
      %s184 = sadd.s32 %s183, 1
      %p187 = scmp.eq.s32.totalorder %s16, 7
      %p188 = scmp.ne.s32.totalorder %s183, %s185
      %p189 = scmp.eq.s32.totalorder %s16, 0
      %p190 = por %p188, %p189
      %p191 = scmp.ne.s32.totalorder %s183, %s185
      %p192 = scmp.eq.s32.totalorder %s21, 7
      %p193 = por %p191, %p192
      %p194 = scmp.ne.s32.totalorder %s185, %s186
      %p195 = scmp.eq.s32.totalorder %s21, 0
      %p196 = por %p194, %p195
      %p197 = scmp.ne.s32.totalorder %s185, %s186
      %p198 = scmp.eq.s32.totalorder %s22, 7
      %p199 = por %p197, %p198
      %p201 = scmp.ne.s32.totalorder %s186, %s200
      %p202 = scmp.eq.s32.totalorder %s22, 0
      %p203 = por %p201, %p202
      %s204 = ssub.s32 %s23, %s35
      %s205 = ssub.s32 %s24, %s31
      %s206 = sor.u32 %s204, %s205
      %p207 = scmp.eq.s32.totalorder %s206, 0
      %s209 = sadd.s32 %s208, 1
      %s210 = scalar_select %p207, %s208, %s209
      %p213 = pneg %p207
      %p214 = scmp.eq.s32.totalorder %s16, 7
      %p215 = por %p213, %p214
      %p216 = scmp.ne.s32.totalorder %s208, %s211
      %p217 = scmp.eq.s32.totalorder %s16, 0
      %p218 = por %p216, %p217
      %p219 = scmp.ne.s32.totalorder %s208, %s211
      %p220 = scmp.eq.s32.totalorder %s21, 7
      %p221 = por %p219, %p220
      %p222 = scmp.ne.s32.totalorder %s211, %s212
      %p223 = scmp.eq.s32.totalorder %s21, 0
      %p224 = por %p222, %p223
      %p225 = scmp.ne.s32.totalorder %s211, %s212
      %p226 = scmp.eq.s32.totalorder %s22, 7
      %p227 = por %p225, %p226
      %p229 = scmp.ne.s32.totalorder %s212, %s228
      %p230 = scmp.eq.s32.totalorder %s22, 0
      %p231 = por %p229, %p230
      %s232 = ssub.s32 %s23, %s35
      %s233 = ssub.s32 %s24, %s31
      %s234 = sor.u32 %s232, %s233
      %p235 = scmp.eq.s32.totalorder %s234, 0
      %s237 = sadd.s32 %s236, 1
      %s238 = scalar_select %p235, %s236, %s237
      %p241 = pneg %p235
      %p242 = scmp.eq.s32.totalorder %s16, 7
      %p243 = por %p241, %p242
      %p244 = scmp.ne.s32.totalorder %s236, %s239
      %p245 = scmp.eq.s32.totalorder %s16, 0
      %p246 = por %p244, %p245
      %p247 = scmp.ne.s32.totalorder %s236, %s239
      %p248 = scmp.eq.s32.totalorder %s21, 7
      %p249 = por %p247, %p248
      %p250 = scmp.ne.s32.totalorder %s239, %s240
      %p251 = scmp.eq.s32.totalorder %s21, 0
      %p252 = por %p250, %p251
      %p253 = scmp.ne.s32.totalorder %s239, %s240
      %p254 = scmp.eq.s32.totalorder %s22, 7
      %p255 = por %p253, %p254
      %p257 = scmp.ne.s32.totalorder %s240, %s256
      %p258 = scmp.eq.s32.totalorder %s22, 0
      %p259 = por %p257, %p258
      %p260 = scmp.le.s32.totalorder 1, %s16
      %p261 = scmp.lt.s32.totalorder %s16, 9
      %p262 = pnand %p260, %p261
      %p263 = pneg %p262
      // Predicated region
      $region9: #{resnet_block_forward.7} parent=5 // pred_check
        _
      $region10: #{resnet_block_forward.7} parent=5 // pred_check_branch
        %265 = sbr.rel (%p262) target = $region12
      $region11: #{resnet_block_forward.7} parent=5 // pred_region
        %s266 = ssub.s32 %s16, 1
        // Predicated region
        $region13: #{resnet_block_forward.7} parent=11 // pred_check
          %p267 = pneg %p175
        $region14: #{resnet_block_forward.7} parent=11 // pred_check_branch
          %269 = sbr.rel (%p267) target = $region16
        $region15: #{resnet_block_forward.7} parent=11 // pred_region
          _
        $region16: #{resnet_block_forward.7} parent=11 // pred_fallthru
          _
        // Predicated region
        $region17: #{resnet_block_forward.7} parent=11 // pred_check
          %p270 = pneg %p196
        $region18: #{resnet_block_forward.7} parent=11 // pred_check_branch
          %272 = sbr.rel (%p270) target = $region20
        $region19: #{resnet_block_forward.7} parent=11 // pred_region
          _
        $region20: #{resnet_block_forward.7} parent=11 // pred_fallthru
          _
      $region12: #{resnet_block_forward.7} parent=5 // pred_fallthru
        _
      %p273 = scmp.lt.s32.totalorder %s16, 8
      // Predicated region
      $region21: #{resnet_block_forward.7} parent=5 // pred_check
        %p274 = pneg %p273
      $region22: #{resnet_block_forward.7} parent=5 // pred_check_branch
        %276 = sbr.rel (%p274) target = $region24
      $region23: #{resnet_block_forward.7} parent=5 // pred_region
        // Predicated region
        $region25: #{resnet_block_forward.7} parent=23 // pred_check
          %p277 = pneg %p50
        $region26: #{resnet_block_forward.7} parent=23 // pred_check_branch
          %279 = sbr.rel (%p277) target = $region28
        $region27: #{resnet_block_forward.7} parent=23 // pred_region
          %s280 = smul.u32 8, %s24
          %p281 = scmp.lt.s32.totalorder %s23, 1
          %s282 = scalar_select %p281, %s23, 1
          %p283 = scmp.lt.s32.totalorder %s280, 31
          %s284 = scalar_select %p283, %s280, 31
          %s285 = smul.addr %s282, 32
          %s286 = sadd.s32 %s284, %s285
          %s287 = smul.addr %s286, 4
          %s288 = scalar_lea.vmem %s0, %s287
          %s289 = smul.u32 8, %s24
        $region28: #{resnet_block_forward.7} parent=23 // pred_fallthru
          _
        // Predicated region
        $region29: #{resnet_block_forward.7} parent=23 // pred_check
          %p290 = pneg %p86
        $region30: #{resnet_block_forward.7} parent=23 // pred_check_branch
          %292 = sbr.rel (%p290) target = $region32
        $region31: #{resnet_block_forward.7} parent=23 // pred_region
          %s293 = smul.u32 %s24, 4
          %s294 = ssub.s32 %s293, 1
          %p295 = scmp.gt.s32.totalorder %s294, 0
          %s296 = scalar_select %p295, %s294, 0
          %s297 = smul.u32 2, %s296
          %p298 = scmp.lt.s32.totalorder %s23, 1
          %s299 = scalar_select %p298, %s23, 1
          %p300 = scmp.lt.s32.totalorder %s297, 31
          %s301 = scalar_select %p300, %s297, 31
          %s302 = smul.addr %s299, 32
          %s303 = sadd.s32 %s301, %s302
          %s304 = smul.addr %s303, 4
          %s305 = scalar_lea.vmem %s1, %s304
          %s306 = smul.u32 %s24, 4
          %s307 = ssub.s32 %s306, 1
          %p308 = scmp.gt.s32.totalorder %s307, 0
          %s309 = scalar_select %p308, %s307, 0
          %s310 = smul.u32 2, %s309
        $region32: #{resnet_block_forward.7} parent=23 // pred_fallthru
          _
        // Predicated region
        $region33: #{resnet_block_forward.7} parent=23 // pred_check
          %p311 = pneg %p122
        $region34: #{resnet_block_forward.7} parent=23 // pred_check_branch
          %313 = sbr.rel (%p311) target = $region36
        $region35: #{resnet_block_forward.7} parent=23 // pred_region
          %s314 = sadd.s32 %s24, 1
          %s315 = smul.u32 %s314, 4
          %p316 = scmp.lt.s32.totalorder %s315, 15
          %s317 = scalar_select %p316, %s315, 15
          %s318 = smul.u32 2, %s317
          %p319 = scmp.lt.s32.totalorder %s23, 1
          %s320 = scalar_select %p319, %s23, 1
          %p321 = scmp.lt.s32.totalorder %s318, 31
          %s322 = scalar_select %p321, %s318, 31
          %s323 = smul.addr %s320, 32
          %s324 = sadd.s32 %s322, %s323
          %s325 = smul.addr %s324, 4
          %s326 = scalar_lea.vmem %s2, %s325
          %s327 = sadd.s32 %s24, 1
          %s328 = smul.u32 %s327, 4
          %p329 = scmp.lt.s32.totalorder %s328, 15
          %s330 = scalar_select %p329, %s328, 15
          %s331 = smul.u32 2, %s330
        $region36: #{resnet_block_forward.7} parent=23 // pred_fallthru
          _
        // Predicated region
        $region37: #{resnet_block_forward.7} parent=23 // pred_check
          %p332 = pneg %p148
        $region38: #{resnet_block_forward.7} parent=23 // pred_check_branch
          %334 = sbr.rel (%p332) target = $region40
        $region39: #{resnet_block_forward.7} parent=23 // pred_region
          %p335 = scmp.lt.s32.totalorder %s23, 1
          %s336 = scalar_select %p335, %s23, 1
          %s337 = smul.addr %s336, 2
          %s338 = scalar_lea.vmem %s3, %s337
        $region40: #{resnet_block_forward.7} parent=23 // pred_fallthru
          _
        // Predicated region
        $region41: #{resnet_block_forward.7} parent=23 // pred_check
          %p339 = pneg %p218
        $region42: #{resnet_block_forward.7} parent=23 // pred_check_branch
          %341 = sbr.rel (%p339) target = $region44
        $region43: #{resnet_block_forward.7} parent=23 // pred_region
          %s342 = smul.u32 8, %s24
          %p343 = scmp.lt.s32.totalorder %s23, 1
          %s344 = scalar_select %p343, %s23, 1
          %p345 = scmp.lt.s32.totalorder %s342, 31
          %s346 = scalar_select %p345, %s342, 31
          %s347 = smul.addr %s344, 32
          %s348 = sadd.s32 %s346, %s347
          %s349 = smul.addr %s348, 8
          %s350 = scalar_lea.vmem %s6, %s349
          %s351 = smul.u32 8, %s24
        $region44: #{resnet_block_forward.7} parent=23 // pred_fallthru
          _
      $region24: #{resnet_block_forward.7} parent=5 // pred_fallthru
        _
      %p352 = scmp.le.s32.totalorder 1, %s16
      %p353 = scmp.lt.s32.totalorder %s16, 9
      %p354 = pnand %p352, %p353
      %p355 = pneg %p354
      // Predicated region
      $region45: #{resnet_block_forward.7} parent=5 // pred_check
        _
      $region46: #{resnet_block_forward.7} parent=5 // pred_check_branch
        %357 = sbr.rel (%p354) target = $region48
      $region47: #{resnet_block_forward.7} parent=5 // pred_region
        %s358 = ssub.s32 %s16, 1
        %s359 = smul.u32 8, %s26
        %p360 = scmp.lt.s32.totalorder %s25, 1
        %s361 = scalar_select %p360, %s25, 1
        %p362 = scmp.lt.s32.totalorder %s359, 31
        %s363 = scalar_select %p362, %s359, 31
        %s364 = smul.addr %s361, 32
        %s365 = sadd.s32 %s363, %s364
        %s366 = smul.addr %s365, 4
        %s367 = scalar_lea.vmem %s0, %s366
        %p368 = pneg %p56
        %p369 = pneg %p53
        %s370 = smul.u32 %s26, 4
        %s371 = ssub.s32 %s370, 1
        %p372 = scmp.gt.s32.totalorder %s371, 0
        %s373 = scalar_select %p372, %s371, 0
        %s374 = smul.u32 2, %s373
        %p375 = scmp.lt.s32.totalorder %s25, 1
        %s376 = scalar_select %p375, %s25, 1
        %p377 = scmp.lt.s32.totalorder %s374, 31
        %s378 = scalar_select %p377, %s374, 31
        %s379 = smul.addr %s376, 32
        %s380 = sadd.s32 %s378, %s379
        %s381 = smul.addr %s380, 4
        %s382 = scalar_lea.vmem %s1, %s381
        %p383 = pneg %p92
        %p384 = pneg %p89
        %s385 = sadd.s32 %s26, 1
        %s386 = smul.u32 %s385, 4
        %p387 = scmp.lt.s32.totalorder %s386, 15
        %s388 = scalar_select %p387, %s386, 15
        %s389 = smul.u32 2, %s388
        %p390 = scmp.lt.s32.totalorder %s25, 1
        %s391 = scalar_select %p390, %s25, 1
        %p392 = scmp.lt.s32.totalorder %s389, 31
        %s393 = scalar_select %p392, %s389, 31
        %s394 = smul.addr %s391, 32
        %s395 = sadd.s32 %s393, %s394
        %s396 = smul.addr %s395, 4
        %s397 = scalar_lea.vmem %s2, %s396
        %p398 = pneg %p128
        %p399 = pneg %p125
        %p400 = scmp.lt.s32.totalorder %s25, 1
        %s401 = scalar_select %p400, %s25, 1
        %s402 = smul.addr %s401, 2
        %s403 = scalar_lea.vmem %s3, %s402
        %p404 = pneg %p154
        %p405 = pneg %p151
        %p406 = pneg %p175
        %p407 = pneg %p172
        %p408 = pneg %p196
        %p409 = pneg %p193
        %s410 = smul.u32 8, %s26
        %p411 = scmp.lt.s32.totalorder %s25, 1
        %s412 = scalar_select %p411, %s25, 1
        %p413 = scmp.lt.s32.totalorder %s410, 31
        %s414 = scalar_select %p413, %s410, 31
        %s415 = smul.addr %s412, 32
        %s416 = sadd.s32 %s414, %s415
        %s417 = smul.addr %s416, 8
        %s418 = scalar_lea.vmem %s6, %s417
        %p419 = pneg %p224
        %p420 = pneg %p221
        %p421 = pneg %p252
        %p422 = pneg %p249
        %s423 = sand.u32 %s239, 1
        %s424 = scalar_lea.sflag [#allocation3], %s423
        %s425 = sand.u32 %s239, 1
        %s426 = smul.addr %s425, 64
        %s427 = scalar_lea.vmem [#allocation2], %s426
        %s428 = smul.u32 8, %s26
        %p429 = scmp.lt.s32.totalorder %s25, 1
        %s430 = scalar_select %p429, %s25, 1
        %p431 = scmp.lt.s32.totalorder %s428, 31
        %s432 = scalar_select %p431, %s428, 31
        %s433 = smul.addr %s430, 32
        %s434 = sadd.s32 %s432, %s433
        %s435 = smul.addr %s434, 4
        %s436 = scalar_lea.vmem %s0, %s435
        %s437 = smul.u32 8, %s26
        %s438 = smul.u32 %s26, 4
        %s439 = ssub.s32 %s438, 1
        %p440 = scmp.gt.s32.totalorder %s439, 0
        %s441 = scalar_select %p440, %s439, 0
        %s442 = smul.u32 2, %s441
        %p443 = scmp.lt.s32.totalorder %s25, 1
        %s444 = scalar_select %p443, %s25, 1
        %p445 = scmp.lt.s32.totalorder %s442, 31
        %s446 = scalar_select %p445, %s442, 31
        %s447 = smul.addr %s444, 32
        %s448 = sadd.s32 %s446, %s447
        %s449 = smul.addr %s448, 4
        %s450 = scalar_lea.vmem %s1, %s449
        %s451 = smul.u32 %s26, 4
        %s452 = ssub.s32 %s451, 1
        %p453 = scmp.gt.s32.totalorder %s452, 0
        %s454 = scalar_select %p453, %s452, 0
        %s455 = smul.u32 2, %s454
        %s456 = sadd.s32 %s26, 1
        %s457 = smul.u32 %s456, 4
        %p458 = scmp.lt.s32.totalorder %s457, 15
        %s459 = scalar_select %p458, %s457, 15
        %s460 = smul.u32 2, %s459
        %p461 = scmp.lt.s32.totalorder %s25, 1
        %s462 = scalar_select %p461, %s25, 1
        %p463 = scmp.lt.s32.totalorder %s460, 31
        %s464 = scalar_select %p463, %s460, 31
        %s465 = smul.addr %s462, 32
        %s466 = sadd.s32 %s464, %s465
        %s467 = smul.addr %s466, 4
        %s468 = scalar_lea.vmem %s2, %s467
        %s469 = sadd.s32 %s26, 1
        %s470 = smul.u32 %s469, 4
        %p471 = scmp.lt.s32.totalorder %s470, 15
        %s472 = scalar_select %p471, %s470, 15
        %s473 = smul.u32 2, %s472
        %p474 = scmp.lt.s32.totalorder %s25, 1
        %s475 = scalar_select %p474, %s25, 1
        %s476 = smul.addr %s475, 2
        %s477 = scalar_lea.vmem %s3, %s476
        %s478 = smul.u32 8, %s26
        %p479 = scmp.lt.s32.totalorder %s25, 1
        %s480 = scalar_select %p479, %s25, 1
        %p481 = scmp.lt.s32.totalorder %s478, 31
        %s482 = scalar_select %p481, %s478, 31
        %s483 = smul.addr %s480, 32
        %s484 = sadd.s32 %s482, %s483
        %s485 = smul.addr %s484, 8
        %s486 = scalar_lea.vmem %s6, %s485
        %s487 = smul.u32 8, %s26
        %s488 = smul.u32 8, %s26
        %v492 = vld [vmem:[%s477] sm:$0x3]
        %p493 = scmp.gt.s32.totalorder %s26, 0
        %s494 = scalar_select %p493, 1.0, 0.0
        %p495 = scmp.lt.s32.totalorder %s26, 3
        %s496 = scalar_select %p495, 1.0, 0.0
        %v497 = vld [vmem:[%s436] sm:$0xf]
        %v498 = vld [vmem:[%s436 + $0x4] sm:$0xf]
        %v499 = vld [vmem:[%s436 + $0x8] sm:$0xf]
        %v500 = vld [vmem:[%s436 + $0xc] sm:$0xf]
        %v501 = vld [vmem:[%s436 + $0x10] sm:$0xf]
        %v502 = vld [vmem:[%s436 + $0x14] sm:$0xf]
        %v503 = vld [vmem:[%s436 + $0x18] sm:$0xf]
        %v504 = vld [vmem:[%s436 + $0x1c] sm:$0xf]
        %v505 = vunpack.c.l.bf16 %v497
        %v506 = vunpack.c.l.bf16 %v498
        %v507 = vunpack.c.l.bf16 %v499
        %v508 = vunpack.c.l.bf16 %v500
        %v509 = vunpack.c.l.bf16 %v501
        %v510 = vunpack.c.l.bf16 %v502
        %v511 = vunpack.c.l.bf16 %v503
        %v512 = vunpack.c.l.bf16 %v504
        %v513 = vlaneseq
        %v514 = vshrl.u32 %v513, 7
        %v515 = vsub.s32 0, %v514
        %v516 = vrot.slane %v492, %v515
        %v517 = vmul.f32 %v505, %v516
        %v518 = vmul.f32 %v506, %v516
        %v519 = vmul.f32 %v507, %v516
        %v520 = vmul.f32 %v508, %v516
        %v521 = vmul.f32 %v509, %v516
        %v522 = vmul.f32 %v510, %v516
        %v523 = vmul.f32 %v511, %v516
        %v524 = vmul.f32 %v512, %v516
        %v525 = vlaneseq
        %v526 = vshrl.u32 %v525, 7
        %v527 = vsub.s32 1, %v526
        %v528 = vrot.slane %v492, %v527
        %v529 = vadd.f32 %v517, %v528
        %v530 = vadd.f32 %v518, %v528
        %v531 = vadd.f32 %v519, %v528
        %v532 = vadd.f32 %v520, %v528
        %v533 = vadd.f32 %v521, %v528
        %v534 = vadd.f32 %v522, %v528
        %v535 = vadd.f32 %v523, %v528
        %v536 = vadd.f32 %v524, %v528
        %v537 = vxor.u32 %v529, 2147483648
        %v538 = vxor.u32 %v530, 2147483648
        %v539 = vxor.u32 %v531, 2147483648
        %v540 = vxor.u32 %v532, 2147483648
        %v541 = vxor.u32 %v533, 2147483648
        %v542 = vxor.u32 %v534, 2147483648
        %v543 = vxor.u32 %v535, 2147483648
        %v544 = vxor.u32 %v536, 2147483648
        %v545 = vmul.f32 %v537, 1.442695
        %v546 = vpow.pop %v545
        %v547 = vmul.f32 %v538, 1.442695
        %v548 = vpow.pop %v547
        %v549 = vmul.f32 %v539, 1.442695
        %v550 = vpow.pop %v549
        %v551 = vmul.f32 %v540, 1.442695
        %v552 = vpow.pop %v551
        %v553 = vmul.f32 %v541, 1.442695
        %v554 = vpow.pop %v553
        %v555 = vmul.f32 %v542, 1.442695
        %v556 = vpow.pop %v555
        %v557 = vmul.f32 %v543, 1.442695
        %v558 = vpow.pop %v557
        %v559 = vmul.f32 %v544, 1.442695
        %v560 = vpow.pop %v559
        %v561 = vadd.f32 %v546, 1.0
        %v562 = vadd.f32 %v548, 1.0
        %v563 = vadd.f32 %v550, 1.0
        %v564 = vadd.f32 %v552, 1.0
        %v565 = vadd.f32 %v554, 1.0
        %v566 = vadd.f32 %v556, 1.0
        %v567 = vadd.f32 %v558, 1.0
        %v568 = vadd.f32 %v560, 1.0
        %v569 = vrcp.pop %v561
        %v570 = vmul.f32 1.0, %v569
        %v571 = vrcp.pop %v562
        %v572 = vmul.f32 1.0, %v571
        %v573 = vrcp.pop %v563
        %v574 = vmul.f32 1.0, %v573
        %v575 = vrcp.pop %v564
        %v576 = vmul.f32 1.0, %v575
        %v577 = vrcp.pop %v565
        %v578 = vmul.f32 1.0, %v577
        %v579 = vrcp.pop %v566
        %v580 = vmul.f32 1.0, %v579
        %v581 = vrcp.pop %v567
        %v582 = vmul.f32 1.0, %v581
        %v583 = vrcp.pop %v568
        %v584 = vmul.f32 1.0, %v583
        %v585 = vmul.f32 %v529, %v570
        %v586 = vmul.f32 %v530, %v572
        %v587 = vmul.f32 %v531, %v574
        %v588 = vmul.f32 %v532, %v576
        %v589 = vmul.f32 %v533, %v578
        %v590 = vmul.f32 %v534, %v580
        %v591 = vmul.f32 %v535, %v582
        %v592 = vmul.f32 %v536, %v584
        %v593 = vld [vmem:[%s450] sm:$0xf]
        %v594 = vld [vmem:[%s450 + $0x4] sm:$0xf]
        %v595 = vunpack.c.l.bf16 %v593
        %v596 = vunpack.c.l.bf16 %v594
        %v597 = vmul.f32 %v595, %v516
        %v598 = vmul.f32 %v596, %v516
        %v599 = vadd.f32 %v597, %v528
        %v600 = vadd.f32 %v598, %v528
        %v601 = vxor.u32 %v599, 2147483648
        %v602 = vxor.u32 %v600, 2147483648
        %v603 = vmul.f32 %v601, 1.442695
        %v604 = vpow.pop %v603
        %v605 = vmul.f32 %v602, 1.442695
        %v606 = vpow.pop %v605
        %v607 = vadd.f32 %v604, 1.0
        %v608 = vadd.f32 %v606, 1.0
        %v609 = vrcp.pop %v607
        %v610 = vmul.f32 1.0, %v609
        %v611 = vrcp.pop %v608
        %v612 = vmul.f32 1.0, %v611
        %v613 = vmul.f32 %v599, %v610
        %v614 = vmul.f32 %v600, %v612
        %v615 = vstv %s494
        %v616 = vmul.f32 %v613, %v615
        %v617 = vmul.f32 %v614, %v615
        %v618 = vld [vmem:[%s468] sm:$0xf]
        %v619 = vld [vmem:[%s468 + $0x4] sm:$0xf]
        %v620 = vunpack.c.l.bf16 %v618
        %v621 = vunpack.c.l.bf16 %v619
        %v622 = vmul.f32 %v620, %v516
        %v623 = vmul.f32 %v621, %v516
        %v624 = vadd.f32 %v622, %v528
        %v625 = vadd.f32 %v623, %v528
        %v626 = vxor.u32 %v624, 2147483648
        %v627 = vxor.u32 %v625, 2147483648
        %v628 = vmul.f32 %v626, 1.442695
        %v629 = vpow.pop %v628
        %v630 = vmul.f32 %v627, 1.442695
        %v631 = vpow.pop %v630
        %v632 = vadd.f32 %v629, 1.0
        %v633 = vadd.f32 %v631, 1.0
        %v634 = vrcp.pop %v632
        %v635 = vmul.f32 1.0, %v634
        %v636 = vrcp.pop %v633
        %v637 = vmul.f32 1.0, %v636
        %v638 = vmul.f32 %v624, %v635
        %v639 = vmul.f32 %v625, %v637
        %v640 = vstv %s496
        %v641 = vmul.f32 %v638, %v640
        %v642 = vmul.f32 %v639, %v640
        %v643 = vpack.c.bf16 %v617, %v616
        %v644 = vpack.c.bf16 %v586, %v585
        %v645 = vpack.c.bf16 %v588, %v587
        %v646 = vpack.c.bf16 %v590, %v589
        %v647 = vpack.c.bf16 %v592, %v591
        %v648 = vpack.c.bf16 %v642, %v641
        %v649 = vlaneseq
        %v650 = vshrl.u32 %v649, 7
        %v651 = vadd.s32 %v650, 8
        %v652 = vadd.s32 %v650, 16
        %v653 = vadd.s32 %v650, 24
        %v654 = vadd.s32 %v650, 32
        %v655 = vadd.s32 %v650, 40
        %v656 = vadd.s32 %v650, 48
        %v657 = vadd.s32 %v650, 56
        %v658 = vadd.s32 %v650, 64
        %v659 = vadd.s32 %v650, 72
        %v660 = vadd.s32 %v650, 80
        %v661 = vadd.s32 %v650, 88
        %vm662 = vcmp.lt.s32.totalorder %v650, 0
        %v663 = vsub.s32 0, %v650
        %v664 = vsel %vm662, %v663, %v650
        %v665 = vshrl.u32 %v664, 4
        %v666 = vand.u32 %v664, 15
        %v667 = vsub.s32 0, %v666
        %v668 = vsel %vm662, %v667, %v666
        %vm669 = vcmp.lt.s32.totalorder %v651, 0
        %v670 = vsub.s32 0, %v651
        %v671 = vsel %vm669, %v670, %v651
        %v672 = vshrl.u32 %v671, 4
        %v673 = vand.u32 %v671, 15
        %v674 = vsub.s32 0, %v673
        %v675 = vsel %vm669, %v674, %v673
        %vm676 = vcmp.lt.s32.totalorder %v652, 0
        %v677 = vsub.s32 0, %v652
        %v678 = vsel %vm676, %v677, %v652
        %v679 = vshrl.u32 %v678, 4
        %v680 = vand.u32 %v678, 15
        %v681 = vsub.s32 0, %v680
        %v682 = vsel %vm676, %v681, %v680
        %vm683 = vcmp.lt.s32.totalorder %v653, 0
        %v684 = vsub.s32 0, %v653
        %v685 = vsel %vm683, %v684, %v653
        %v686 = vshrl.u32 %v685, 4
        %v687 = vand.u32 %v685, 15
        %v688 = vsub.s32 0, %v687
        %v689 = vsel %vm683, %v688, %v687
        %vm690 = vcmp.lt.s32.totalorder %v654, 0
        %v691 = vsub.s32 0, %v654
        %v692 = vsel %vm690, %v691, %v654
        %v693 = vshrl.u32 %v692, 4
        %v694 = vand.u32 %v692, 15
        %v695 = vsub.s32 0, %v694
        %v696 = vsel %vm690, %v695, %v694
        %vm697 = vcmp.lt.s32.totalorder %v655, 0
        %v698 = vsub.s32 0, %v655
        %v699 = vsel %vm697, %v698, %v655
        %v700 = vshrl.u32 %v699, 4
        %v701 = vand.u32 %v699, 15
        %v702 = vsub.s32 0, %v701
        %v703 = vsel %vm697, %v702, %v701
        %vm704 = vcmp.lt.s32.totalorder %v656, 0
        %v705 = vsub.s32 0, %v656
        %v706 = vsel %vm704, %v705, %v656
        %v707 = vshrl.u32 %v706, 4
        %v708 = vand.u32 %v706, 15
        %v709 = vsub.s32 0, %v708
        %v710 = vsel %vm704, %v709, %v708
        %vm711 = vcmp.lt.s32.totalorder %v657, 0
        %v712 = vsub.s32 0, %v657
        %v713 = vsel %vm711, %v712, %v657
        %v714 = vshrl.u32 %v713, 4
        %v715 = vand.u32 %v713, 15
        %v716 = vsub.s32 0, %v715
        %v717 = vsel %vm711, %v716, %v715
        %vm718 = vcmp.lt.s32.totalorder %v658, 0
        %v719 = vsub.s32 0, %v658
        %v720 = vsel %vm718, %v719, %v658
        %v721 = vshrl.u32 %v720, 4
        %v722 = vand.u32 %v720, 15
        %v723 = vsub.s32 0, %v722
        %v724 = vsel %vm718, %v723, %v722
        %vm725 = vcmp.lt.s32.totalorder %v659, 0
        %v726 = vsub.s32 0, %v659
        %v727 = vsel %vm725, %v726, %v659
        %v728 = vshrl.u32 %v727, 4
        %v729 = vand.u32 %v727, 15
        %v730 = vsub.s32 0, %v729
        %v731 = vsel %vm725, %v730, %v729
        %vm732 = vcmp.lt.s32.totalorder %v660, 0
        %v733 = vsub.s32 0, %v660
        %v734 = vsel %vm732, %v733, %v660
        %v735 = vshrl.u32 %v734, 4
        %v736 = vand.u32 %v734, 15
        %v737 = vsub.s32 0, %v736
        %v738 = vsel %vm732, %v737, %v736
        %vm739 = vcmp.lt.s32.totalorder %v661, 0
        %v740 = vsub.s32 0, %v661
        %v741 = vsel %vm739, %v740, %v661
        %v742 = vshrl.u32 %v741, 4
        %v743 = vand.u32 %v741, 15
        %v744 = vsub.s32 0, %v743
        %v745 = vsel %vm739, %v744, %v743
        %vm746 = vcmp.ne.s32.totalorder %v668, 0
        %vm747 = vcmp.ne.s32.totalorder %v675, 0
        %vm748 = vcmp.ne.s32.totalorder %v682, 0
        %vm749 = vcmp.ne.s32.totalorder %v689, 0
        %vm750 = vcmp.ne.s32.totalorder %v696, 0
        %vm751 = vcmp.ne.s32.totalorder %v703, 0
        %vm752 = vcmp.ne.s32.totalorder %v710, 0
        %vm753 = vcmp.ne.s32.totalorder %v717, 0
        %vm754 = vcmp.ne.s32.totalorder %v724, 0
        %vm755 = vcmp.ne.s32.totalorder %v731, 0
        %vm756 = vcmp.ne.s32.totalorder %v738, 0
        %vm757 = vcmp.ne.s32.totalorder %v745, 0
        %vm758 = vcmp.lt.s32.totalorder %v668, 0
        %vm759 = vcmp.lt.s32.totalorder %v675, 0
        %vm760 = vcmp.lt.s32.totalorder %v682, 0
        %vm761 = vcmp.lt.s32.totalorder %v689, 0
        %vm762 = vcmp.lt.s32.totalorder %v696, 0
        %vm763 = vcmp.lt.s32.totalorder %v703, 0
        %vm764 = vcmp.lt.s32.totalorder %v710, 0
        %vm765 = vcmp.lt.s32.totalorder %v717, 0
        %vm766 = vcmp.lt.s32.totalorder %v724, 0
        %vm767 = vcmp.lt.s32.totalorder %v731, 0
        %vm768 = vcmp.lt.s32.totalorder %v738, 0
        %vm769 = vcmp.lt.s32.totalorder %v745, 0
        %vm770 = vmand %vm758, %vm746
        %vm771 = vmand %vm759, %vm747
        %vm772 = vmand %vm760, %vm748
        %vm773 = vmand %vm761, %vm749
        %vm774 = vmand %vm762, %vm750
        %vm775 = vmand %vm763, %vm751
        %vm776 = vmand %vm764, %vm752
        %vm777 = vmand %vm765, %vm753
        %vm778 = vmand %vm766, %vm754
        %vm779 = vmand %vm767, %vm755
        %vm780 = vmand %vm768, %vm756
        %vm781 = vmand %vm769, %vm757
        %v782 = vadd.s32 %v668, 16
        %v783 = vadd.s32 %v675, 16
        %v784 = vadd.s32 %v682, 16
        %v785 = vadd.s32 %v689, 16
        %v786 = vadd.s32 %v696, 16
        %v787 = vadd.s32 %v703, 16
        %v788 = vadd.s32 %v710, 16
        %v789 = vadd.s32 %v717, 16
        %v790 = vadd.s32 %v724, 16
        %v791 = vadd.s32 %v731, 16
        %v792 = vadd.s32 %v738, 16
        %v793 = vadd.s32 %v745, 16
        %v794 = vsel %vm770, %v782, %v668
        %v795 = vsel %vm771, %v783, %v675
        %v796 = vsel %vm772, %v784, %v682
        %v797 = vsel %vm773, %v785, %v689
        %v798 = vsel %vm774, %v786, %v696
        %v799 = vsel %vm775, %v787, %v703
        %v800 = vsel %vm776, %v788, %v710
        %v801 = vsel %vm777, %v789, %v717
        %v802 = vsel %vm778, %v790, %v724
        %v803 = vsel %vm779, %v791, %v731
        %v804 = vsel %vm780, %v792, %v738
        %v805 = vsel %vm781, %v793, %v745
        %vm806 = vcmp.gt.s32.totalorder %v794, 0
        %vm807 = vcmp.gt.s32.totalorder %v795, 0
        %vm808 = vcmp.gt.s32.totalorder %v796, 0
        %vm809 = vcmp.gt.s32.totalorder %v797, 0
        %vm810 = vcmp.gt.s32.totalorder %v798, 0
        %vm811 = vcmp.gt.s32.totalorder %v799, 0
        %vm812 = vcmp.gt.s32.totalorder %v800, 0
        %vm813 = vcmp.gt.s32.totalorder %v801, 0
        %vm814 = vcmp.gt.s32.totalorder %v802, 0
        %vm815 = vcmp.gt.s32.totalorder %v803, 0
        %vm816 = vcmp.gt.s32.totalorder %v804, 0
        %vm817 = vcmp.gt.s32.totalorder %v805, 0
        %vm818 = vsmask.f32 256
        %v820 = vshrl.u32 %v643, 16
        %v822 = vrot.slane %v820, 7
        %v823 = vshll.u32 %v643, 16
        %v825 = vor.u32 %v822, %v823
        %v827 = vshrl.u32 %v644, 16
        %v829 = vrot.slane %v827, 7
        %v830 = vshll.u32 %v644, 16
        %v832 = vor.u32 %v829, %v830
        %v833 = vsel %vm818, %v822, %v832
        %v835 = vshrl.u32 %v645, 16
        %v837 = vrot.slane %v835, 7
        %v838 = vshll.u32 %v645, 16
        %v840 = vor.u32 %v837, %v838
        %v841 = vsel %vm818, %v829, %v840
        %v843 = vshrl.u32 %v646, 16
        %v845 = vrot.slane %v843, 7
        %v846 = vshll.u32 %v646, 16
        %v848 = vor.u32 %v845, %v846
        %v849 = vsel %vm818, %v837, %v848
        %v851 = vshrl.u32 %v647, 16
        %v853 = vrot.slane %v851, 7
        %v854 = vshll.u32 %v647, 16
        %v856 = vor.u32 %v853, %v854
        %v857 = vsel %vm818, %v845, %v856
        %v859 = vshrl.u32 %v648, 16
        %v861 = vrot.slane %v859, 7
        %v862 = vshll.u32 %v648, 16
        %v864 = vor.u32 %v861, %v862
        %v865 = vsel %vm818, %v853, %v864
        %vm872 = vcmask 1040384
        %vm873 = vmand %vm872, %vm818
        %v874 = vsel %vm873, 0, %v825
        %v875 = vsel %vm806, 1, 0
        %v876 = vsel %vm807, 1, 0
        %v877 = vsel %vm808, 1, 0
        %v878 = vsel %vm809, 1, 0
        %v879 = vsel %vm810, 1, 0
        %v880 = vsel %vm811, 1, 0
        %v881 = vsel %vm812, 1, 0
        %v882 = vsel %vm813, 1, 0
        %v883 = vsel %vm814, 1, 0
        %v884 = vsel %vm815, 1, 0
        %v885 = vsel %vm816, 1, 0
        %v886 = vsel %vm817, 1, 0
        %vm887 = vcmp.eq.s32.totalorder %v875, 1
        %vm888 = vcmp.eq.s32.totalorder %v876, 1
        %vm889 = vcmp.eq.s32.totalorder %v877, 1
        %vm890 = vcmp.eq.s32.totalorder %v878, 1
        %vm891 = vcmp.eq.s32.totalorder %v879, 1
        %vm892 = vcmp.eq.s32.totalorder %v880, 1
        %vm893 = vcmp.eq.s32.totalorder %v881, 1
        %vm894 = vcmp.eq.s32.totalorder %v882, 1
        %vm895 = vcmp.eq.s32.totalorder %v883, 1
        %vm896 = vcmp.eq.s32.totalorder %v884, 1
        %vm897 = vcmp.eq.s32.totalorder %v885, 1
        %vm898 = vcmp.eq.s32.totalorder %v886, 1
        %vm899 = vmpackc.low %vm887, %vm887
        %vm900 = vmpackc.low %vm888, %vm888
        %vm901 = vmpackc.low %vm889, %vm889
        %vm902 = vmpackc.low %vm890, %vm890
        %vm903 = vmpackc.low %vm891, %vm891
        %vm904 = vmpackc.low %vm892, %vm892
        %vm905 = vmpackc.low %vm893, %vm893
        %vm906 = vmpackc.low %vm894, %vm894
        %vm907 = vmpackc.low %vm895, %vm895
        %vm908 = vmpackc.low %vm896, %vm896
        %vm909 = vmpackc.low %vm897, %vm897
        %vm910 = vmpackc.low %vm898, %vm898
        %v911 = vsel %vm899, 65537, 0
        %v912 = vsel %vm900, 65537, 0
        %v913 = vsel %vm901, 65537, 0
        %v914 = vsel %vm902, 65537, 0
        %v915 = vsel %vm903, 65537, 0
        %v916 = vsel %vm904, 65537, 0
        %v917 = vsel %vm905, 65537, 0
        %v918 = vsel %vm906, 65537, 0
        %v919 = vsel %vm907, 65537, 0
        %v920 = vsel %vm908, 65537, 0
        %v921 = vsel %vm909, 65537, 0
        %v922 = vsel %vm910, 65537, 0
        %v923 = vunpack.c.l.b16 %v911
        %v924 = vunpack.c.l.b16 %v912
        %v925 = vunpack.c.l.b16 %v913
        %v926 = vunpack.c.l.b16 %v914
        %v927 = vunpack.c.l.b16 %v915
        %v928 = vunpack.c.l.b16 %v916
        %v929 = vunpack.c.l.b16 %v917
        %v930 = vunpack.c.l.b16 %v918
        %v931 = vunpack.c.l.b16 %v919
        %v932 = vunpack.c.l.b16 %v920
        %v933 = vunpack.c.l.b16 %v921
        %v934 = vunpack.c.l.b16 %v922
        %v935 = vpack.c.b16 %v924, %v923
        %v936 = vpack.c.b16 %v926, %v925
        %v937 = vpack.c.b16 %v928, %v927
        %v938 = vpack.c.b16 %v930, %v929
        %v939 = vpack.c.b16 %v932, %v931
        %v940 = vpack.c.b16 %v934, %v933
        %vm941 = vcmp.ne.s16.totalorder %v935, 0
        %vm942 = vcmp.ne.s16.totalorder %v936, 0
        %vm943 = vcmp.ne.s16.totalorder %v937, 0
        %vm944 = vcmp.ne.s16.totalorder %v938, 0
        %vm945 = vcmp.ne.s16.totalorder %v939, 0
        %vm946 = vcmp.ne.s16.totalorder %v940, 0
        %v947 = vsel %vm941, %v874, 0
        %v948 = vsel %vm942, %v833, 0
        %v949 = vsel %vm943, %v841, 0
        %v950 = vsel %vm944, %v849, 0
        %v951 = vsel %vm945, %v857, 0
        %v952 = vsel %vm946, %v865, 0
        %vm953 = vcmp.lt.s32.totalorder %v794, 15
        %vm954 = vcmp.lt.s32.totalorder %v795, 15
        %vm955 = vcmp.lt.s32.totalorder %v796, 15
        %vm956 = vcmp.lt.s32.totalorder %v797, 15
        %vm957 = vcmp.lt.s32.totalorder %v798, 15
        %vm958 = vcmp.lt.s32.totalorder %v799, 15
        %vm959 = vcmp.lt.s32.totalorder %v800, 15
        %vm960 = vcmp.lt.s32.totalorder %v801, 15
        %vm961 = vcmp.lt.s32.totalorder %v802, 15
        %vm962 = vcmp.lt.s32.totalorder %v803, 15
        %vm963 = vcmp.lt.s32.totalorder %v804, 15
        %vm964 = vcmp.lt.s32.totalorder %v805, 15
        %vm965 = vsmask.f32 7424
        %v966 = vrot.slane %v823, 1
        %v967 = vor.u32 %v820, %v966
        %v968 = vrot.slane %v830, 1
        %v969 = vsel %vm965, %v967, %v968
        %v970 = vor.u32 %v827, %v968
        %v971 = vrot.slane %v838, 1
        %v972 = vsel %vm965, %v970, %v971
        %v973 = vor.u32 %v835, %v971
        %v974 = vrot.slane %v846, 1
        %v975 = vsel %vm965, %v973, %v974
        %v976 = vor.u32 %v843, %v974
        %v977 = vrot.slane %v854, 1
        %v978 = vsel %vm965, %v976, %v977
        %v979 = vor.u32 %v851, %v977
        %v980 = vrot.slane %v862, 1
        %v981 = vsel %vm965, %v979, %v980
        %v982 = vor.u32 %v859, %v980
        %vm989 = vcmask 1047552
        %vm990 = vmand %vm989, %vm965
        %v991 = vsel %vm990, %v982, 0
        %v992 = vsel %vm953, 1, 0
        %v993 = vsel %vm954, 1, 0
        %v994 = vsel %vm955, 1, 0
        %v995 = vsel %vm956, 1, 0
        %v996 = vsel %vm957, 1, 0
        %v997 = vsel %vm958, 1, 0
        %v998 = vsel %vm959, 1, 0
        %v999 = vsel %vm960, 1, 0
        %v1000 = vsel %vm961, 1, 0
        %v1001 = vsel %vm962, 1, 0
        %v1002 = vsel %vm963, 1, 0
        %v1003 = vsel %vm964, 1, 0
        %vm1004 = vcmp.eq.s32.totalorder %v992, 1
        %vm1005 = vcmp.eq.s32.totalorder %v993, 1
        %vm1006 = vcmp.eq.s32.totalorder %v994, 1
        %vm1007 = vcmp.eq.s32.totalorder %v995, 1
        %vm1008 = vcmp.eq.s32.totalorder %v996, 1
        %vm1009 = vcmp.eq.s32.totalorder %v997, 1
        %vm1010 = vcmp.eq.s32.totalorder %v998, 1
        %vm1011 = vcmp.eq.s32.totalorder %v999, 1
        %vm1012 = vcmp.eq.s32.totalorder %v1000, 1
        %vm1013 = vcmp.eq.s32.totalorder %v1001, 1
        %vm1014 = vcmp.eq.s32.totalorder %v1002, 1
        %vm1015 = vcmp.eq.s32.totalorder %v1003, 1
        %vm1016 = vmpackc.low %vm1004, %vm1004
        %vm1017 = vmpackc.low %vm1005, %vm1005
        %vm1018 = vmpackc.low %vm1006, %vm1006
        %vm1019 = vmpackc.low %vm1007, %vm1007
        %vm1020 = vmpackc.low %vm1008, %vm1008
        %vm1021 = vmpackc.low %vm1009, %vm1009
        %vm1022 = vmpackc.low %vm1010, %vm1010
        %vm1023 = vmpackc.low %vm1011, %vm1011
        %vm1024 = vmpackc.low %vm1012, %vm1012
        %vm1025 = vmpackc.low %vm1013, %vm1013
        %vm1026 = vmpackc.low %vm1014, %vm1014
        %vm1027 = vmpackc.low %vm1015, %vm1015
        %v1028 = vsel %vm1016, 65537, 0
        %v1029 = vsel %vm1017, 65537, 0
        %v1030 = vsel %vm1018, 65537, 0
        %v1031 = vsel %vm1019, 65537, 0
        %v1032 = vsel %vm1020, 65537, 0
        %v1033 = vsel %vm1021, 65537, 0
        %v1034 = vsel %vm1022, 65537, 0
        %v1035 = vsel %vm1023, 65537, 0
        %v1036 = vsel %vm1024, 65537, 0
        %v1037 = vsel %vm1025, 65537, 0
        %v1038 = vsel %vm1026, 65537, 0
        %v1039 = vsel %vm1027, 65537, 0
        %v1040 = vunpack.c.l.b16 %v1028
        %v1041 = vunpack.c.l.b16 %v1029
        %v1042 = vunpack.c.l.b16 %v1030
        %v1043 = vunpack.c.l.b16 %v1031
        %v1044 = vunpack.c.l.b16 %v1032
        %v1045 = vunpack.c.l.b16 %v1033
        %v1046 = vunpack.c.l.b16 %v1034
        %v1047 = vunpack.c.l.b16 %v1035
        %v1048 = vunpack.c.l.b16 %v1036
        %v1049 = vunpack.c.l.b16 %v1037
        %v1050 = vunpack.c.l.b16 %v1038
        %v1051 = vunpack.c.l.b16 %v1039
        %v1052 = vpack.c.b16 %v1041, %v1040
        %v1053 = vpack.c.b16 %v1043, %v1042
        %v1054 = vpack.c.b16 %v1045, %v1044
        %v1055 = vpack.c.b16 %v1047, %v1046
        %v1056 = vpack.c.b16 %v1049, %v1048
        %v1057 = vpack.c.b16 %v1051, %v1050
        %vm1058 = vcmp.ne.s16.totalorder %v1052, 0
        %vm1059 = vcmp.ne.s16.totalorder %v1053, 0
        %vm1060 = vcmp.ne.s16.totalorder %v1054, 0
        %vm1061 = vcmp.ne.s16.totalorder %v1055, 0
        %vm1062 = vcmp.ne.s16.totalorder %v1056, 0
        %vm1063 = vcmp.ne.s16.totalorder %v1057, 0
        %v1064 = vsel %vm1058, %v969, 0
        %v1065 = vsel %vm1059, %v972, 0
        %v1066 = vsel %vm1060, %v975, 0
        %v1067 = vsel %vm1061, %v978, 0
        %v1068 = vsel %vm1062, %v981, 0
        %v1069 = vsel %vm1063, %v991, 0
        %v1070 = vld [vmem:[%s4] sm:$0xf]
        %v1071 = vld [vmem:[%s4 + $0x4] sm:$0xf]
        %v1072 = vld [vmem:[%s4 + $0x8] sm:$0xf]
        %v1073 = vld [vmem:[%s4 + $0xc] sm:$0xf]
        %v1074 = vld [vmem:[%s4 + $0x10] sm:$0xf]
        %v1075 = vld [vmem:[%s4 + $0x14] sm:$0xf]
        %v1076 = vld [vmem:[%s4 + $0x18] sm:$0xf]
        %v1077 = vld [vmem:[%s4 + $0x1c] sm:$0xf]
        %v1078 = vld [vmem:[%s4 + $0x20] sm:$0xf]
        %v1079 = vld [vmem:[%s4 + $0x24] sm:$0xf]
        %v1080 = vld [vmem:[%s4 + $0x28] sm:$0xf]
        %v1081 = vld [vmem:[%s4 + $0x2c] sm:$0xf]
        %v1082 = vld [vmem:[%s4 + $0x30] sm:$0xf]
        %v1083 = vld [vmem:[%s4 + $0x34] sm:$0xf]
        %v1084 = vld [vmem:[%s4 + $0x38] sm:$0xf]
        %v1085 = vld [vmem:[%s4 + $0x3c] sm:$0xf]
        %v1086 = vld [vmem:[%s4 + $0x40] sm:$0xf]
        %v1087 = vld [vmem:[%s4 + $0x44] sm:$0xf]
        %v1088 = vld [vmem:[%s4 + $0x48] sm:$0xf]
        %v1089 = vld [vmem:[%s4 + $0x4c] sm:$0xf]
        %v1090 = vld [vmem:[%s4 + $0x50] sm:$0xf]
        %v1091 = vld [vmem:[%s4 + $0x54] sm:$0xf]
        %v1092 = vld [vmem:[%s4 + $0x58] sm:$0xf]
        %v1093 = vld [vmem:[%s4 + $0x5c] sm:$0xf]
        %v1094 = vld [vmem:[%s4 + $0x60] sm:$0xf]
        %v1095 = vld [vmem:[%s4 + $0x64] sm:$0xf]
        %v1096 = vld [vmem:[%s4 + $0x68] sm:$0xf]
        %v1097 = vld [vmem:[%s4 + $0x6c] sm:$0xf]
        %v1098 = vld [vmem:[%s4 + $0x70] sm:$0xf]
        %v1099 = vld [vmem:[%s4 + $0x74] sm:$0xf]
        %v1100 = vld [vmem:[%s4 + $0x78] sm:$0xf]
        %v1101 = vld [vmem:[%s4 + $0x7c] sm:$0xf]
        %v1102 = vld [vmem:[%s4 + $0x80] sm:$0xf]
        %v1103 = vld [vmem:[%s4 + $0x84] sm:$0xf]
        %v1104 = vld [vmem:[%s4 + $0x88] sm:$0xf]
        %v1105 = vld [vmem:[%s4 + $0x8c] sm:$0xf]
        %v1106 = vld [vmem:[%s4 + $0x90] sm:$0xf]
        %v1107 = vld [vmem:[%s4 + $0x94] sm:$0xf]
        %v1108 = vld [vmem:[%s4 + $0x98] sm:$0xf]
        %v1109 = vld [vmem:[%s4 + $0x9c] sm:$0xf]
        %v1110 = vld [vmem:[%s4 + $0xa0] sm:$0xf]
        %v1111 = vld [vmem:[%s4 + $0xa4] sm:$0xf]
        %v1112 = vld [vmem:[%s4 + $0xa8] sm:$0xf]
        %v1113 = vld [vmem:[%s4 + $0xac] sm:$0xf]
        %v1114 = vld [vmem:[%s4 + $0xb0] sm:$0xf]
        %v1115 = vld [vmem:[%s4 + $0xb4] sm:$0xf]
        %v1116 = vld [vmem:[%s4 + $0xb8] sm:$0xf]
        %v1117 = vld [vmem:[%s4 + $0xbc] sm:$0xf]
        %s1118 = scalar_lea.vmem %s4, 192
        %v1119 = vld [vmem:[%s1118] sm:$0xf]
        %v1120 = vld [vmem:[%s1118 + $0x4] sm:$0xf]
        %v1121 = vld [vmem:[%s1118 + $0x8] sm:$0xf]
        %v1122 = vld [vmem:[%s1118 + $0xc] sm:$0xf]
        %v1123 = vld [vmem:[%s1118 + $0x10] sm:$0xf]
        %v1124 = vld [vmem:[%s1118 + $0x14] sm:$0xf]
        %v1125 = vld [vmem:[%s1118 + $0x18] sm:$0xf]
        %v1126 = vld [vmem:[%s1118 + $0x1c] sm:$0xf]
        %v1127 = vld [vmem:[%s1118 + $0x20] sm:$0xf]
        %v1128 = vld [vmem:[%s1118 + $0x24] sm:$0xf]
        %v1129 = vld [vmem:[%s1118 + $0x28] sm:$0xf]
        %v1130 = vld [vmem:[%s1118 + $0x2c] sm:$0xf]
        %v1131 = vld [vmem:[%s1118 + $0x30] sm:$0xf]
        %v1132 = vld [vmem:[%s1118 + $0x34] sm:$0xf]
        %v1133 = vld [vmem:[%s1118 + $0x38] sm:$0xf]
        %v1134 = vld [vmem:[%s1118 + $0x3c] sm:$0xf]
        %v1135 = vld [vmem:[%s1118 + $0x40] sm:$0xf]
        %v1136 = vld [vmem:[%s1118 + $0x44] sm:$0xf]
        %v1137 = vld [vmem:[%s1118 + $0x48] sm:$0xf]
        %v1138 = vld [vmem:[%s1118 + $0x4c] sm:$0xf]
        %v1139 = vld [vmem:[%s1118 + $0x50] sm:$0xf]
        %v1140 = vld [vmem:[%s1118 + $0x54] sm:$0xf]
        %v1141 = vld [vmem:[%s1118 + $0x58] sm:$0xf]
        %v1142 = vld [vmem:[%s1118 + $0x5c] sm:$0xf]
        %v1143 = vld [vmem:[%s1118 + $0x60] sm:$0xf]
        %v1144 = vld [vmem:[%s1118 + $0x64] sm:$0xf]
        %v1145 = vld [vmem:[%s1118 + $0x68] sm:$0xf]
        %v1146 = vld [vmem:[%s1118 + $0x6c] sm:$0xf]
        %v1147 = vld [vmem:[%s1118 + $0x70] sm:$0xf]
        %v1148 = vld [vmem:[%s1118 + $0x74] sm:$0xf]
        %v1149 = vld [vmem:[%s1118 + $0x78] sm:$0xf]
        %v1150 = vld [vmem:[%s1118 + $0x7c] sm:$0xf]
        %v1151 = vld [vmem:[%s1118 + $0x80] sm:$0xf]
        %v1152 = vld [vmem:[%s1118 + $0x84] sm:$0xf]
        %v1153 = vld [vmem:[%s1118 + $0x88] sm:$0xf]
        %v1154 = vld [vmem:[%s1118 + $0x8c] sm:$0xf]
        %v1155 = vld [vmem:[%s1118 + $0x90] sm:$0xf]
        %v1156 = vld [vmem:[%s1118 + $0x94] sm:$0xf]
        %v1157 = vld [vmem:[%s1118 + $0x98] sm:$0xf]
        %v1158 = vld [vmem:[%s1118 + $0x9c] sm:$0xf]
        %v1159 = vld [vmem:[%s1118 + $0xa0] sm:$0xf]
        %v1160 = vld [vmem:[%s1118 + $0xa4] sm:$0xf]
        %v1161 = vld [vmem:[%s1118 + $0xa8] sm:$0xf]
        %v1162 = vld [vmem:[%s1118 + $0xac] sm:$0xf]
        %v1163 = vld [vmem:[%s1118 + $0xb0] sm:$0xf]
        %v1164 = vld [vmem:[%s1118 + $0xb4] sm:$0xf]
        %v1165 = vld [vmem:[%s1118 + $0xb8] sm:$0xf]
        %v1166 = vld [vmem:[%s1118 + $0xbc] sm:$0xf]
        %v1215 = vunpack.c.l.b16 %v1119
        %v1216 = vunpack.c.l.b16 %v1120
        %v1217 = vunpack.c.l.b16 %v1121
        %v1218 = vunpack.c.l.b16 %v1122
        %v1219 = vunpack.c.l.b16 %v1123
        %v1220 = vunpack.c.l.b16 %v1124
        %v1221 = vunpack.c.l.b16 %v1125
        %v1222 = vunpack.c.l.b16 %v1126
        %v1223 = vunpack.c.l.b16 %v1127
        %v1224 = vunpack.c.l.b16 %v1128
        %v1225 = vunpack.c.l.b16 %v1129
        %v1226 = vunpack.c.l.b16 %v1130
        %v1227 = vunpack.c.l.b16 %v1131
        %v1228 = vunpack.c.l.b16 %v1132
        %v1229 = vunpack.c.l.b16 %v1133
        %v1230 = vunpack.c.l.b16 %v1134
        %v1231 = vunpack.c.l.b16 %v1135
        %v1232 = vunpack.c.l.b16 %v1136
        %v1233 = vunpack.c.l.b16 %v1137
        %v1234 = vunpack.c.l.b16 %v1138
        %v1235 = vunpack.c.l.b16 %v1139
        %v1236 = vunpack.c.l.b16 %v1140
        %v1237 = vunpack.c.l.b16 %v1141
        %v1238 = vunpack.c.l.b16 %v1142
        %v1239 = vunpack.c.l.b16 %v1143
        %v1240 = vunpack.c.l.b16 %v1144
        %v1241 = vunpack.c.l.b16 %v1145
        %v1242 = vunpack.c.l.b16 %v1146
        %v1243 = vunpack.c.l.b16 %v1147
        %v1244 = vunpack.c.l.b16 %v1148
        %v1245 = vunpack.c.l.b16 %v1149
        %v1246 = vunpack.c.l.b16 %v1150
        %v1247 = vunpack.c.l.b16 %v1151
        %v1248 = vunpack.c.l.b16 %v1152
        %v1249 = vunpack.c.l.b16 %v1153
        %v1250 = vunpack.c.l.b16 %v1154
        %v1251 = vunpack.c.l.b16 %v1155
        %v1252 = vunpack.c.l.b16 %v1156
        %v1253 = vunpack.c.l.b16 %v1157
        %v1254 = vunpack.c.l.b16 %v1158
        %v1255 = vunpack.c.l.b16 %v1159
        %v1256 = vunpack.c.l.b16 %v1160
        %v1257 = vunpack.c.l.b16 %v1161
        %v1258 = vunpack.c.l.b16 %v1162
        %v1259 = vunpack.c.l.b16 %v1163
        %v1260 = vunpack.c.l.b16 %v1164
        %v1261 = vunpack.c.l.b16 %v1165
        %v1262 = vunpack.c.l.b16 %v1166
        %v1263 = vpack.c.b16 %v1216, %v1215
        %v1264 = vpack.c.b16 %v1218, %v1217
        %v1265 = vpack.c.b16 %v1220, %v1219
        %v1266 = vpack.c.b16 %v1222, %v1221
        %v1267 = vpack.c.b16 %v1224, %v1223
        %v1268 = vpack.c.b16 %v1226, %v1225
        %v1269 = vpack.c.b16 %v1228, %v1227
        %v1270 = vpack.c.b16 %v1230, %v1229
        %v1271 = vpack.c.b16 %v1232, %v1231
        %v1272 = vpack.c.b16 %v1234, %v1233
        %v1273 = vpack.c.b16 %v1236, %v1235
        %v1274 = vpack.c.b16 %v1238, %v1237
        %v1275 = vpack.c.b16 %v1240, %v1239
        %v1276 = vpack.c.b16 %v1242, %v1241
        %v1277 = vpack.c.b16 %v1244, %v1243
        %v1278 = vpack.c.b16 %v1246, %v1245
        %v1279 = vpack.c.b16 %v1248, %v1247
        %v1280 = vpack.c.b16 %v1250, %v1249
        %v1281 = vpack.c.b16 %v1252, %v1251
        %v1282 = vpack.c.b16 %v1254, %v1253
        %v1283 = vpack.c.b16 %v1256, %v1255
        %v1284 = vpack.c.b16 %v1258, %v1257
        %v1285 = vpack.c.b16 %v1260, %v1259
        %v1286 = vpack.c.b16 %v1262, %v1261
        %1311 = vmatprep.subr.bf16.mxu0 0
        %1312 = vmatpush1.bf16.msra.mxu0 %v1263
        %1313 = vmatprep.subr.bf16.mxu0 0
        %1314 = vmatpush1.bf16.msra.mxu0 %v1264
        %1315 = vmatprep.subr.bf16.mxu0 0
        %1316 = vmatpush1.bf16.msra.mxu0 %v1265
        %1317 = vmatprep.subr.bf16.mxu0 0
        %1318 = vmatpush1.bf16.msra.mxu0 %v1266
        %1319 = vmatprep.subr.bf16.mxu0 0
        %1320 = vmatpush1.bf16.msra.mxu0 %v1267
        %1321 = vmatprep.subr.bf16.mxu0 0
        %1322 = vmatpush1.bf16.msra.mxu0 %v1268
        %1323 = vmatprep.subr.bf16.mxu0 0
        %1324 = vmatpush1.bf16.msra.mxu0 %v1269
        %1325 = vmatprep.subr.bf16.mxu0 0
        %1326 = vmatpush1.bf16.msra.mxu0 %v1270
        %1327 = vmatprep.subr.bf16.mxu0 0
        %1328 = vmatpush1.bf16.msra.mxu0 %v1271
        %1329 = vmatprep.subr.bf16.mxu0 0
        %1330 = vmatpush1.bf16.msra.mxu0 %v1272
        %1331 = vmatprep.subr.bf16.mxu0 0
        %1332 = vmatpush1.bf16.msra.mxu0 %v1273
        %1333 = vmatprep.subr.bf16.mxu0 0
        %1334 = vmatpush1.bf16.msra.mxu0 %v1274
        %1335 = vmatprep.subr.bf16.mxu0 0
        %1336 = vmatpush1.bf16.msra.mxu0 %v1275
        %1337 = vmatprep.subr.bf16.mxu0 0
        %1338 = vmatpush1.bf16.msra.mxu0 %v1276
        %1339 = vmatprep.subr.bf16.mxu0 0
        %1340 = vmatpush1.bf16.msra.mxu0 %v1277
        %1341 = vmatprep.subr.bf16.mxu0 0
        %1342 = vmatpush1.bf16.msra.mxu0 %v1278
        %1343 = vmatprep.mubr.bf16.mxu0 %v644
        %1344 = vmatmul.mubr.bf16.gmra.mrb[0].mxu0 %v948
        %v1345 = vpop.f32.mrb[0].mxu0
        %v1346 = vadd.f32 0.0, %v1345
        %v1347 = vpop.f32.mrb[0].mxu0
        %v1348 = vpop.f32.mrb[0].mxu0
        %v1349 = vadd.f32 0.0, %v1348
        %v1350 = vpop.f32.mrb[0].mxu0
        %1351 = vmatprep.mubr.bf16.mxu0 %v645
        %1352 = vmatmul.mubr.bf16.gmra.mrb[0].mxu0 %v949
        %v1353 = vpop.f32.mrb[0].mxu0
        %v1354 = vadd.f32 0.0, %v1353
        %v1355 = vpop.f32.mrb[0].mxu0
        %v1356 = vpop.f32.mrb[0].mxu0
        %v1357 = vadd.f32 0.0, %v1356
        %v1358 = vpop.f32.mrb[0].mxu0
        %1359 = vmatprep.mubr.bf16.mxu0 %v646
        %1360 = vmatmul.mubr.bf16.gmra.mrb[0].mxu0 %v950
        %v1361 = vpop.f32.mrb[0].mxu0
        %v1362 = vadd.f32 0.0, %v1361
        %v1363 = vpop.f32.mrb[0].mxu0
        %v1364 = vpop.f32.mrb[0].mxu0
        %v1365 = vadd.f32 0.0, %v1364
        %v1366 = vpop.f32.mrb[0].mxu0
        %1367 = vmatprep.mubr.bf16.mxu0 %v647
        %1368 = vmatmul.mubr.bf16.gmra.mrb[0].mxu0 %v951
        %v1369 = vpop.f32.mrb[0].mxu0
        %v1370 = vadd.f32 0.0, %v1369
        %v1371 = vpop.f32.mrb[0].mxu0
        %v1372 = vpop.f32.mrb[0].mxu0
        %v1373 = vadd.f32 0.0, %v1372
        %v1374 = vpop.f32.mrb[0].mxu0
        %1375 = vdwg.mxu0
        %1376 = vmatprep.subr.bf16.mxu0 0
        %1377 = vmatpush1.bf16.msra.mxu0 %v1279
        %1378 = vmatprep.subr.bf16.mxu0 0
        %1379 = vmatpush1.bf16.msra.mxu0 %v1280
        %1380 = vmatprep.subr.bf16.mxu0 0
        %1381 = vmatpush1.bf16.msra.mxu0 %v1281
        %1382 = vmatprep.subr.bf16.mxu0 0
        %1383 = vmatpush1.bf16.msra.mxu0 %v1282
        %1384 = vmatprep.subr.bf16.mxu0 0
        %1385 = vmatpush1.bf16.msra.mxu0 %v1283
        %1386 = vmatprep.subr.bf16.mxu0 0
        %1387 = vmatpush1.bf16.msra.mxu0 %v1284
        %1388 = vmatprep.subr.bf16.mxu0 0
        %1389 = vmatpush1.bf16.msra.mxu0 %v1285
        %1390 = vmatprep.subr.bf16.mxu0 0
        %1391 = vmatpush1.bf16.msra.mxu0 %v1286
        %1392 = vmatprep.subr.bf16.mxu0 0
        %1393 = vmatpush1.bf16.msra.mxu0 0
        %1394 = vmatprep.subr.bf16.mxu0 0
        %1395 = vmatpush1.bf16.msra.mxu0 0
        %1396 = vmatprep.subr.bf16.mxu0 0
        %1397 = vmatpush1.bf16.msra.mxu0 0
        %1398 = vmatprep.subr.bf16.mxu0 0
        %1399 = vmatpush1.bf16.msra.mxu0 0
        %1400 = vmatprep.subr.bf16.mxu0 0
        %1401 = vmatpush1.bf16.msra.mxu0 0
        %1402 = vmatprep.subr.bf16.mxu0 0
        %1403 = vmatpush1.bf16.msra.mxu0 0
        %1404 = vmatprep.subr.bf16.mxu0 0
        %1405 = vmatpush1.bf16.msra.mxu0 0
        %1406 = vmatprep.subr.bf16.mxu0 0
        %1407 = vmatpush1.bf16.msra.mxu0 0
        %1408 = vmatprep.mubr.bf16.mxu0 0
        %1409 = vmatmul.mubr.bf16.gmra.mrb[0].mxu0 %v1065
        %v1410 = vpop.f32.mrb[0].mxu0
        %v1411 = vadd.f32 %v1346, %v1410
        %v1412 = vpop.f32.mrb[0].mxu0
        %v1413 = vpop.f32.mrb[0].mxu0
        %v1414 = vadd.f32 %v1349, %v1413
        %v1415 = vpop.f32.mrb[0].mxu0
        %1416 = vmatprep.mubr.bf16.mxu0 0
        %1417 = vmatmul.mubr.bf16.gmra.mrb[0].mxu0 %v1066
        %v1418 = vpop.f32.mrb[0].mxu0
        %v1419 = vadd.f32 %v1354, %v1418
        %v1420 = vpop.f32.mrb[0].mxu0
        %v1421 = vpop.f32.mrb[0].mxu0
        %v1422 = vadd.f32 %v1357, %v1421
        %v1423 = vpop.f32.mrb[0].mxu0
        %1424 = vmatprep.mubr.bf16.mxu0 0
        %1425 = vmatmul.mubr.bf16.gmra.mrb[0].mxu0 %v1067
        %v1426 = vpop.f32.mrb[0].mxu0
        %v1427 = vadd.f32 %v1362, %v1426
        %v1428 = vpop.f32.mrb[0].mxu0
        %v1429 = vpop.f32.mrb[0].mxu0
        %v1430 = vadd.f32 %v1365, %v1429
        %v1431 = vpop.f32.mrb[0].mxu0
        %1432 = vmatprep.mubr.bf16.mxu0 0
        %1433 = vmatmul.mubr.bf16.gmra.mrb[0].mxu0 %v1068
        %v1434 = vpop.f32.mrb[0].mxu0
        %v1435 = vadd.f32 %v1370, %v1434
        %v1436 = vpop.f32.mrb[0].mxu0
        %v1437 = vpop.f32.mrb[0].mxu0
        %v1438 = vadd.f32 %v1373, %v1437
        %v1439 = vpop.f32.mrb[0].mxu0
        %1440 = vdwg.mxu0
        %v1489 = vunpack.c.l.b16 %v1070
        %v1490 = vunpack.c.l.b16 %v1071
        %v1491 = vunpack.c.l.b16 %v1072
        %v1492 = vunpack.c.l.b16 %v1073
        %v1493 = vunpack.c.l.b16 %v1074
        %v1494 = vunpack.c.l.b16 %v1075
        %v1495 = vunpack.c.l.b16 %v1076
        %v1496 = vunpack.c.l.b16 %v1077
        %v1497 = vunpack.c.l.b16 %v1078
        %v1498 = vunpack.c.l.b16 %v1079
        %v1499 = vunpack.c.l.b16 %v1080
        %v1500 = vunpack.c.l.b16 %v1081
        %v1501 = vunpack.c.l.b16 %v1082
        %v1502 = vunpack.c.l.b16 %v1083
        %v1503 = vunpack.c.l.b16 %v1084
        %v1504 = vunpack.c.l.b16 %v1085
        %v1505 = vunpack.c.l.b16 %v1086
        %v1506 = vunpack.c.l.b16 %v1087
        %v1507 = vunpack.c.l.b16 %v1088
        %v1508 = vunpack.c.l.b16 %v1089
        %v1509 = vunpack.c.l.b16 %v1090
        %v1510 = vunpack.c.l.b16 %v1091
        %v1511 = vunpack.c.l.b16 %v1092
        %v1512 = vunpack.c.l.b16 %v1093
        %v1513 = vunpack.c.l.b16 %v1094
        %v1514 = vunpack.c.l.b16 %v1095
        %v1515 = vunpack.c.l.b16 %v1096
        %v1516 = vunpack.c.l.b16 %v1097
        %v1517 = vunpack.c.l.b16 %v1098
        %v1518 = vunpack.c.l.b16 %v1099
        %v1519 = vunpack.c.l.b16 %v1100
        %v1520 = vunpack.c.l.b16 %v1101
        %v1521 = vunpack.c.l.b16 %v1102
        %v1522 = vunpack.c.l.b16 %v1103
        %v1523 = vunpack.c.l.b16 %v1104
        %v1524 = vunpack.c.l.b16 %v1105
        %v1525 = vunpack.c.l.b16 %v1106
        %v1526 = vunpack.c.l.b16 %v1107
        %v1527 = vunpack.c.l.b16 %v1108
        %v1528 = vunpack.c.l.b16 %v1109
        %v1529 = vunpack.c.l.b16 %v1110
        %v1530 = vunpack.c.l.b16 %v1111
        %v1531 = vunpack.c.l.b16 %v1112
        %v1532 = vunpack.c.l.b16 %v1113
        %v1533 = vunpack.c.l.b16 %v1114
        %v1534 = vunpack.c.l.b16 %v1115
        %v1535 = vunpack.c.l.b16 %v1116
        %v1536 = vunpack.c.l.b16 %v1117
        %v1537 = vpack.c.b16 %v1490, %v1489
        %v1538 = vpack.c.b16 %v1492, %v1491
        %v1539 = vpack.c.b16 %v1494, %v1493
        %v1540 = vpack.c.b16 %v1496, %v1495
        %v1541 = vpack.c.b16 %v1498, %v1497
        %v1542 = vpack.c.b16 %v1500, %v1499
        %v1543 = vpack.c.b16 %v1502, %v1501
        %v1544 = vpack.c.b16 %v1504, %v1503
        %v1545 = vpack.c.b16 %v1506, %v1505
        %v1546 = vpack.c.b16 %v1508, %v1507
        %v1547 = vpack.c.b16 %v1510, %v1509
        %v1548 = vpack.c.b16 %v1512, %v1511
        %v1549 = vpack.c.b16 %v1514, %v1513
        %v1550 = vpack.c.b16 %v1516, %v1515
        %v1551 = vpack.c.b16 %v1518, %v1517
        %v1552 = vpack.c.b16 %v1520, %v1519
        %v1553 = vpack.c.b16 %v1522, %v1521
        %v1554 = vpack.c.b16 %v1524, %v1523
        %v1555 = vpack.c.b16 %v1526, %v1525
        %v1556 = vpack.c.b16 %v1528, %v1527
        %v1557 = vpack.c.b16 %v1530, %v1529
        %v1558 = vpack.c.b16 %v1532, %v1531
        %v1559 = vpack.c.b16 %v1534, %v1533
        %v1560 = vpack.c.b16 %v1536, %v1535
        %1585 = vmatprep.subr.bf16.mxu0 0
        %1586 = vmatpush1.bf16.msra.mxu0 %v1537
        %1587 = vmatprep.subr.bf16.mxu0 0
        %1588 = vmatpush1.bf16.msra.mxu0 %v1538
        %1589 = vmatprep.subr.bf16.mxu0 0
        %1590 = vmatpush1.bf16.msra.mxu0 %v1539
        %1591 = vmatprep.subr.bf16.mxu0 0
        %1592 = vmatpush1.bf16.msra.mxu0 %v1540
        %1593 = vmatprep.subr.bf16.mxu0 0
        %1594 = vmatpush1.bf16.msra.mxu0 %v1541
        %1595 = vmatprep.subr.bf16.mxu0 0
        %1596 = vmatpush1.bf16.msra.mxu0 %v1542
        %1597 = vmatprep.subr.bf16.mxu0 0
        %1598 = vmatpush1.bf16.msra.mxu0 %v1543
        %1599 = vmatprep.subr.bf16.mxu0 0
        %1600 = vmatpush1.bf16.msra.mxu0 %v1544
        %1601 = vmatprep.subr.bf16.mxu0 0
        %1602 = vmatpush1.bf16.msra.mxu0 %v1545
        %1603 = vmatprep.subr.bf16.mxu0 0
        %1604 = vmatpush1.bf16.msra.mxu0 %v1546
        %1605 = vmatprep.subr.bf16.mxu0 0
        %1606 = vmatpush1.bf16.msra.mxu0 %v1547
        %1607 = vmatprep.subr.bf16.mxu0 0
        %1608 = vmatpush1.bf16.msra.mxu0 %v1548
        %1609 = vmatprep.subr.bf16.mxu0 0
        %1610 = vmatpush1.bf16.msra.mxu0 %v1549
        %1611 = vmatprep.subr.bf16.mxu0 0
        %1612 = vmatpush1.bf16.msra.mxu0 %v1550
        %1613 = vmatprep.subr.bf16.mxu0 0
        %1614 = vmatpush1.bf16.msra.mxu0 %v1551
        %1615 = vmatprep.subr.bf16.mxu0 0
        %1616 = vmatpush1.bf16.msra.mxu0 %v1552
        %1617 = vmatprep.mubr.bf16.mxu0 %v643
        %1618 = vmatmul.mubr.bf16.gmra.mrb[0].mxu0 %v947
        %v1619 = vpop.f32.mrb[0].mxu0
        %v1620 = vadd.f32 %v1411, %v1619
        %v1621 = vpop.f32.mrb[0].mxu0
        %v1622 = vpop.f32.mrb[0].mxu0
        %v1623 = vadd.f32 %v1414, %v1622
        %v1624 = vpop.f32.mrb[0].mxu0
        %1625 = vmatprep.mubr.bf16.mxu0 %v644
        %1626 = vmatmul.mubr.bf16.gmra.mrb[0].mxu0 %v948
        %v1627 = vpop.f32.mrb[0].mxu0
        %v1628 = vadd.f32 %v1419, %v1627
        %v1629 = vpop.f32.mrb[0].mxu0
        %v1630 = vpop.f32.mrb[0].mxu0
        %v1631 = vadd.f32 %v1422, %v1630
        %v1632 = vpop.f32.mrb[0].mxu0
        %1633 = vmatprep.mubr.bf16.mxu0 %v645
        %1634 = vmatmul.mubr.bf16.gmra.mrb[0].mxu0 %v949
        %v1635 = vpop.f32.mrb[0].mxu0
        %v1636 = vadd.f32 %v1427, %v1635
        %v1637 = vpop.f32.mrb[0].mxu0
        %v1638 = vpop.f32.mrb[0].mxu0
        %v1639 = vadd.f32 %v1430, %v1638
        %v1640 = vpop.f32.mrb[0].mxu0
        %1641 = vmatprep.mubr.bf16.mxu0 %v646
        %1642 = vmatmul.mubr.bf16.gmra.mrb[0].mxu0 %v950
        %v1643 = vpop.f32.mrb[0].mxu0
        %v1644 = vadd.f32 %v1435, %v1643
        %v1645 = vpop.f32.mrb[0].mxu0
        %v1646 = vpop.f32.mrb[0].mxu0
        %v1647 = vadd.f32 %v1438, %v1646
        %v1648 = vpop.f32.mrb[0].mxu0
        %1649 = vdwg.mxu0
        %1650 = vmatprep.subr.bf16.mxu0 0
        %1651 = vmatpush1.bf16.msra.mxu0 %v1553
        %1652 = vmatprep.subr.bf16.mxu0 0
        %1653 = vmatpush1.bf16.msra.mxu0 %v1554
        %1654 = vmatprep.subr.bf16.mxu0 0
        %1655 = vmatpush1.bf16.msra.mxu0 %v1555
        %1656 = vmatprep.subr.bf16.mxu0 0
        %1657 = vmatpush1.bf16.msra.mxu0 %v1556
        %1658 = vmatprep.subr.bf16.mxu0 0
        %1659 = vmatpush1.bf16.msra.mxu0 %v1557
        %1660 = vmatprep.subr.bf16.mxu0 0
        %1661 = vmatpush1.bf16.msra.mxu0 %v1558
        %1662 = vmatprep.subr.bf16.mxu0 0
        %1663 = vmatpush1.bf16.msra.mxu0 %v1559
        %1664 = vmatprep.subr.bf16.mxu0 0
        %1665 = vmatpush1.bf16.msra.mxu0 %v1560
        %1666 = vmatprep.subr.bf16.mxu0 0
        %1667 = vmatpush1.bf16.msra.mxu0 0
        %1668 = vmatprep.subr.bf16.mxu0 0
        %1669 = vmatpush1.bf16.msra.mxu0 0
        %1670 = vmatprep.subr.bf16.mxu0 0
        %1671 = vmatpush1.bf16.msra.mxu0 0
        %1672 = vmatprep.subr.bf16.mxu0 0
        %1673 = vmatpush1.bf16.msra.mxu0 0
        %1674 = vmatprep.subr.bf16.mxu0 0
        %1675 = vmatpush1.bf16.msra.mxu0 0
        %1676 = vmatprep.subr.bf16.mxu0 0
        %1677 = vmatpush1.bf16.msra.mxu0 0
        %1678 = vmatprep.subr.bf16.mxu0 0
        %1679 = vmatpush1.bf16.msra.mxu0 0
        %1680 = vmatprep.subr.bf16.mxu0 0
        %1681 = vmatpush1.bf16.msra.mxu0 0
        %1682 = vmatprep.mubr.bf16.mxu0 0
        %1683 = vmatmul.mubr.bf16.gmra.mrb[0].mxu0 %v1064
        %v1684 = vpop.f32.mrb[0].mxu0
        %v1685 = vadd.f32 %v1620, %v1684
        %v1686 = vpop.f32.mrb[0].mxu0
        %v1687 = vpop.f32.mrb[0].mxu0
        %v1688 = vadd.f32 %v1623, %v1687
        %v1689 = vpop.f32.mrb[0].mxu0
        %1690 = vmatprep.mubr.bf16.mxu0 0
        %1691 = vmatmul.mubr.bf16.gmra.mrb[0].mxu0 %v1065
        %v1692 = vpop.f32.mrb[0].mxu0
        %v1693 = vadd.f32 %v1628, %v1692
        %v1694 = vpop.f32.mrb[0].mxu0
        %v1695 = vpop.f32.mrb[0].mxu0
        %v1696 = vadd.f32 %v1631, %v1695
        %v1697 = vpop.f32.mrb[0].mxu0
        %1698 = vmatprep.mubr.bf16.mxu0 0
        %1699 = vmatmul.mubr.bf16.gmra.mrb[0].mxu0 %v1066
        %v1700 = vpop.f32.mrb[0].mxu0
        %v1701 = vadd.f32 %v1636, %v1700
        %v1702 = vpop.f32.mrb[0].mxu0
        %v1703 = vpop.f32.mrb[0].mxu0
        %v1704 = vadd.f32 %v1639, %v1703
        %v1705 = vpop.f32.mrb[0].mxu0
        %1706 = vmatprep.mubr.bf16.mxu0 0
        %1707 = vmatmul.mubr.bf16.gmra.mrb[0].mxu0 %v1067
        %v1708 = vpop.f32.mrb[0].mxu0
        %v1709 = vadd.f32 %v1644, %v1708
        %v1710 = vpop.f32.mrb[0].mxu0
        %v1711 = vpop.f32.mrb[0].mxu0
        %v1712 = vadd.f32 %v1647, %v1711
        %v1713 = vpop.f32.mrb[0].mxu0
        %1714 = vdwg.mxu0
        %s1715 = scalar_lea.vmem %s4, 384
        %v1716 = vld [vmem:[%s1715] sm:$0xf]
        %v1717 = vld [vmem:[%s1715 + $0x4] sm:$0xf]
        %v1718 = vld [vmem:[%s1715 + $0x8] sm:$0xf]
        %v1719 = vld [vmem:[%s1715 + $0xc] sm:$0xf]
        %v1720 = vld [vmem:[%s1715 + $0x10] sm:$0xf]
        %v1721 = vld [vmem:[%s1715 + $0x14] sm:$0xf]
        %v1722 = vld [vmem:[%s1715 + $0x18] sm:$0xf]
        %v1723 = vld [vmem:[%s1715 + $0x1c] sm:$0xf]
        %v1724 = vld [vmem:[%s1715 + $0x20] sm:$0xf]
        %v1725 = vld [vmem:[%s1715 + $0x24] sm:$0xf]
        %v1726 = vld [vmem:[%s1715 + $0x28] sm:$0xf]
        %v1727 = vld [vmem:[%s1715 + $0x2c] sm:$0xf]
        %v1728 = vld [vmem:[%s1715 + $0x30] sm:$0xf]
        %v1729 = vld [vmem:[%s1715 + $0x34] sm:$0xf]
        %v1730 = vld [vmem:[%s1715 + $0x38] sm:$0xf]
        %v1731 = vld [vmem:[%s1715 + $0x3c] sm:$0xf]
        %v1732 = vld [vmem:[%s1715 + $0x40] sm:$0xf]
        %v1733 = vld [vmem:[%s1715 + $0x44] sm:$0xf]
        %v1734 = vld [vmem:[%s1715 + $0x48] sm:$0xf]
        %v1735 = vld [vmem:[%s1715 + $0x4c] sm:$0xf]
        %v1736 = vld [vmem:[%s1715 + $0x50] sm:$0xf]
        %v1737 = vld [vmem:[%s1715 + $0x54] sm:$0xf]
        %v1738 = vld [vmem:[%s1715 + $0x58] sm:$0xf]
        %v1739 = vld [vmem:[%s1715 + $0x5c] sm:$0xf]
        %v1740 = vld [vmem:[%s1715 + $0x60] sm:$0xf]
        %v1741 = vld [vmem:[%s1715 + $0x64] sm:$0xf]
        %v1742 = vld [vmem:[%s1715 + $0x68] sm:$0xf]
        %v1743 = vld [vmem:[%s1715 + $0x6c] sm:$0xf]
        %v1744 = vld [vmem:[%s1715 + $0x70] sm:$0xf]
        %v1745 = vld [vmem:[%s1715 + $0x74] sm:$0xf]
        %v1746 = vld [vmem:[%s1715 + $0x78] sm:$0xf]
        %v1747 = vld [vmem:[%s1715 + $0x7c] sm:$0xf]
        %v1748 = vld [vmem:[%s1715 + $0x80] sm:$0xf]
        %v1749 = vld [vmem:[%s1715 + $0x84] sm:$0xf]
        %v1750 = vld [vmem:[%s1715 + $0x88] sm:$0xf]
        %v1751 = vld [vmem:[%s1715 + $0x8c] sm:$0xf]
        %v1752 = vld [vmem:[%s1715 + $0x90] sm:$0xf]
        %v1753 = vld [vmem:[%s1715 + $0x94] sm:$0xf]
        %v1754 = vld [vmem:[%s1715 + $0x98] sm:$0xf]
        %v1755 = vld [vmem:[%s1715 + $0x9c] sm:$0xf]
        %v1756 = vld [vmem:[%s1715 + $0xa0] sm:$0xf]
        %v1757 = vld [vmem:[%s1715 + $0xa4] sm:$0xf]
        %v1758 = vld [vmem:[%s1715 + $0xa8] sm:$0xf]
        %v1759 = vld [vmem:[%s1715 + $0xac] sm:$0xf]
        %v1760 = vld [vmem:[%s1715 + $0xb0] sm:$0xf]
        %v1761 = vld [vmem:[%s1715 + $0xb4] sm:$0xf]
        %v1762 = vld [vmem:[%s1715 + $0xb8] sm:$0xf]
        %v1763 = vld [vmem:[%s1715 + $0xbc] sm:$0xf]
        %v1812 = vunpack.c.l.b16 %v1716
        %v1813 = vunpack.c.l.b16 %v1717
        %v1814 = vunpack.c.l.b16 %v1718
        %v1815 = vunpack.c.l.b16 %v1719
        %v1816 = vunpack.c.l.b16 %v1720
        %v1817 = vunpack.c.l.b16 %v1721
        %v1818 = vunpack.c.l.b16 %v1722
        %v1819 = vunpack.c.l.b16 %v1723
        %v1820 = vunpack.c.l.b16 %v1724
        %v1821 = vunpack.c.l.b16 %v1725
        %v1822 = vunpack.c.l.b16 %v1726
        %v1823 = vunpack.c.l.b16 %v1727
        %v1824 = vunpack.c.l.b16 %v1728
        %v1825 = vunpack.c.l.b16 %v1729
        %v1826 = vunpack.c.l.b16 %v1730
        %v1827 = vunpack.c.l.b16 %v1731
        %v1828 = vunpack.c.l.b16 %v1732
        %v1829 = vunpack.c.l.b16 %v1733
        %v1830 = vunpack.c.l.b16 %v1734
        %v1831 = vunpack.c.l.b16 %v1735
        %v1832 = vunpack.c.l.b16 %v1736
        %v1833 = vunpack.c.l.b16 %v1737
        %v1834 = vunpack.c.l.b16 %v1738
        %v1835 = vunpack.c.l.b16 %v1739
        %v1836 = vunpack.c.l.b16 %v1740
        %v1837 = vunpack.c.l.b16 %v1741
        %v1838 = vunpack.c.l.b16 %v1742
        %v1839 = vunpack.c.l.b16 %v1743
        %v1840 = vunpack.c.l.b16 %v1744
        %v1841 = vunpack.c.l.b16 %v1745
        %v1842 = vunpack.c.l.b16 %v1746
        %v1843 = vunpack.c.l.b16 %v1747
        %v1844 = vunpack.c.l.b16 %v1748
        %v1845 = vunpack.c.l.b16 %v1749
        %v1846 = vunpack.c.l.b16 %v1750
        %v1847 = vunpack.c.l.b16 %v1751
        %v1848 = vunpack.c.l.b16 %v1752
        %v1849 = vunpack.c.l.b16 %v1753
        %v1850 = vunpack.c.l.b16 %v1754
        %v1851 = vunpack.c.l.b16 %v1755
        %v1852 = vunpack.c.l.b16 %v1756
        %v1853 = vunpack.c.l.b16 %v1757
        %v1854 = vunpack.c.l.b16 %v1758
        %v1855 = vunpack.c.l.b16 %v1759
        %v1856 = vunpack.c.l.b16 %v1760
        %v1857 = vunpack.c.l.b16 %v1761
        %v1858 = vunpack.c.l.b16 %v1762
        %v1859 = vunpack.c.l.b16 %v1763
        %v1860 = vpack.c.b16 %v1813, %v1812
        %v1861 = vpack.c.b16 %v1815, %v1814
        %v1862 = vpack.c.b16 %v1817, %v1816
        %v1863 = vpack.c.b16 %v1819, %v1818
        %v1864 = vpack.c.b16 %v1821, %v1820
        %v1865 = vpack.c.b16 %v1823, %v1822
        %v1866 = vpack.c.b16 %v1825, %v1824
        %v1867 = vpack.c.b16 %v1827, %v1826
        %v1868 = vpack.c.b16 %v1829, %v1828
        %v1869 = vpack.c.b16 %v1831, %v1830
        %v1870 = vpack.c.b16 %v1833, %v1832
        %v1871 = vpack.c.b16 %v1835, %v1834
        %v1872 = vpack.c.b16 %v1837, %v1836
        %v1873 = vpack.c.b16 %v1839, %v1838
        %v1874 = vpack.c.b16 %v1841, %v1840
        %v1875 = vpack.c.b16 %v1843, %v1842
        %v1876 = vpack.c.b16 %v1845, %v1844
        %v1877 = vpack.c.b16 %v1847, %v1846
        %v1878 = vpack.c.b16 %v1849, %v1848
        %v1879 = vpack.c.b16 %v1851, %v1850
        %v1880 = vpack.c.b16 %v1853, %v1852
        %v1881 = vpack.c.b16 %v1855, %v1854
        %v1882 = vpack.c.b16 %v1857, %v1856
        %v1883 = vpack.c.b16 %v1859, %v1858
        %1908 = vmatprep.subr.bf16.mxu0 0
        %1909 = vmatpush1.bf16.msra.mxu0 %v1860
        %1910 = vmatprep.subr.bf16.mxu0 0
        %1911 = vmatpush1.bf16.msra.mxu0 %v1861
        %1912 = vmatprep.subr.bf16.mxu0 0
        %1913 = vmatpush1.bf16.msra.mxu0 %v1862
        %1914 = vmatprep.subr.bf16.mxu0 0
        %1915 = vmatpush1.bf16.msra.mxu0 %v1863
        %1916 = vmatprep.subr.bf16.mxu0 0
        %1917 = vmatpush1.bf16.msra.mxu0 %v1864
        %1918 = vmatprep.subr.bf16.mxu0 0
        %1919 = vmatpush1.bf16.msra.mxu0 %v1865
        %1920 = vmatprep.subr.bf16.mxu0 0
        %1921 = vmatpush1.bf16.msra.mxu0 %v1866
        %1922 = vmatprep.subr.bf16.mxu0 0
        %1923 = vmatpush1.bf16.msra.mxu0 %v1867
        %1924 = vmatprep.subr.bf16.mxu0 0
        %1925 = vmatpush1.bf16.msra.mxu0 %v1868
        %1926 = vmatprep.subr.bf16.mxu0 0
        %1927 = vmatpush1.bf16.msra.mxu0 %v1869
        %1928 = vmatprep.subr.bf16.mxu0 0
        %1929 = vmatpush1.bf16.msra.mxu0 %v1870
        %1930 = vmatprep.subr.bf16.mxu0 0
        %1931 = vmatpush1.bf16.msra.mxu0 %v1871
        %1932 = vmatprep.subr.bf16.mxu0 0
        %1933 = vmatpush1.bf16.msra.mxu0 %v1872
        %1934 = vmatprep.subr.bf16.mxu0 0
        %1935 = vmatpush1.bf16.msra.mxu0 %v1873
        %1936 = vmatprep.subr.bf16.mxu0 0
        %1937 = vmatpush1.bf16.msra.mxu0 %v1874
        %1938 = vmatprep.subr.bf16.mxu0 0
        %1939 = vmatpush1.bf16.msra.mxu0 %v1875
        %1940 = vmatprep.mubr.bf16.mxu0 %v645
        %1941 = vmatmul.mubr.bf16.gmra.mrb[0].mxu0 %v949
        %v1942 = vpop.f32.mrb[0].mxu0
        %v1943 = vadd.f32 0.0, %v1942
        %v1944 = vpop.f32.mrb[0].mxu0
        %v1945 = vpop.f32.mrb[0].mxu0
        %v1946 = vadd.f32 0.0, %v1945
        %v1947 = vpop.f32.mrb[0].mxu0
        %1948 = vmatprep.mubr.bf16.mxu0 %v646
        %1949 = vmatmul.mubr.bf16.gmra.mrb[0].mxu0 %v950
        %v1950 = vpop.f32.mrb[0].mxu0
        %v1951 = vadd.f32 0.0, %v1950
        %v1952 = vpop.f32.mrb[0].mxu0
        %v1953 = vpop.f32.mrb[0].mxu0
        %v1954 = vadd.f32 0.0, %v1953
        %v1955 = vpop.f32.mrb[0].mxu0
        %1956 = vmatprep.mubr.bf16.mxu0 %v647
        %1957 = vmatmul.mubr.bf16.gmra.mrb[0].mxu0 %v951
        %v1958 = vpop.f32.mrb[0].mxu0
        %v1959 = vadd.f32 0.0, %v1958
        %v1960 = vpop.f32.mrb[0].mxu0
        %v1961 = vpop.f32.mrb[0].mxu0
        %v1962 = vadd.f32 0.0, %v1961
        %v1963 = vpop.f32.mrb[0].mxu0
        %1964 = vmatprep.mubr.bf16.mxu0 %v648
        %1965 = vmatmul.mubr.bf16.gmra.mrb[0].mxu0 %v952
        %v1966 = vpop.f32.mrb[0].mxu0
        %v1967 = vadd.f32 0.0, %v1966
        %v1968 = vpop.f32.mrb[0].mxu0
        %v1969 = vpop.f32.mrb[0].mxu0
        %v1970 = vadd.f32 0.0, %v1969
        %v1971 = vpop.f32.mrb[0].mxu0
        %1972 = vdwg.mxu0
        %1973 = vmatprep.subr.bf16.mxu0 0
        %1974 = vmatpush1.bf16.msra.mxu0 %v1876
        %1975 = vmatprep.subr.bf16.mxu0 0
        %1976 = vmatpush1.bf16.msra.mxu0 %v1877
        %1977 = vmatprep.subr.bf16.mxu0 0
        %1978 = vmatpush1.bf16.msra.mxu0 %v1878
        %1979 = vmatprep.subr.bf16.mxu0 0
        %1980 = vmatpush1.bf16.msra.mxu0 %v1879
        %1981 = vmatprep.subr.bf16.mxu0 0
        %1982 = vmatpush1.bf16.msra.mxu0 %v1880
        %1983 = vmatprep.subr.bf16.mxu0 0
        %1984 = vmatpush1.bf16.msra.mxu0 %v1881
        %1985 = vmatprep.subr.bf16.mxu0 0
        %1986 = vmatpush1.bf16.msra.mxu0 %v1882
        %1987 = vmatprep.subr.bf16.mxu0 0
        %1988 = vmatpush1.bf16.msra.mxu0 %v1883
        %1989 = vmatprep.subr.bf16.mxu0 0
        %1990 = vmatpush1.bf16.msra.mxu0 0
        %1991 = vmatprep.subr.bf16.mxu0 0
        %1992 = vmatpush1.bf16.msra.mxu0 0
        %1993 = vmatprep.subr.bf16.mxu0 0
        %1994 = vmatpush1.bf16.msra.mxu0 0
        %1995 = vmatprep.subr.bf16.mxu0 0
        %1996 = vmatpush1.bf16.msra.mxu0 0
        %1997 = vmatprep.subr.bf16.mxu0 0
        %1998 = vmatpush1.bf16.msra.mxu0 0
        %1999 = vmatprep.subr.bf16.mxu0 0
        %2000 = vmatpush1.bf16.msra.mxu0 0
        %2001 = vmatprep.subr.bf16.mxu0 0
        %2002 = vmatpush1.bf16.msra.mxu0 0
        %2003 = vmatprep.subr.bf16.mxu0 0
        %2004 = vmatpush1.bf16.msra.mxu0 0
        %2005 = vmatprep.mubr.bf16.mxu0 0
        %2006 = vmatmul.mubr.bf16.gmra.mrb[0].mxu0 %v1066
        %v2007 = vpop.f32.mrb[0].mxu0
        %v2008 = vadd.f32 %v1943, %v2007
        %v2009 = vpop.f32.mrb[0].mxu0
        %v2010 = vpop.f32.mrb[0].mxu0
        %v2011 = vadd.f32 %v1946, %v2010
        %v2012 = vpop.f32.mrb[0].mxu0
        %2013 = vmatprep.mubr.bf16.mxu0 0
        %2014 = vmatmul.mubr.bf16.gmra.mrb[0].mxu0 %v1067
        %v2015 = vpop.f32.mrb[0].mxu0
        %v2016 = vadd.f32 %v1951, %v2015
        %v2017 = vpop.f32.mrb[0].mxu0
        %v2018 = vpop.f32.mrb[0].mxu0
        %v2019 = vadd.f32 %v1954, %v2018
        %v2020 = vpop.f32.mrb[0].mxu0
        %2021 = vmatprep.mubr.bf16.mxu0 0
        %2022 = vmatmul.mubr.bf16.gmra.mrb[0].mxu0 %v1068
        %v2023 = vpop.f32.mrb[0].mxu0
        %v2024 = vadd.f32 %v1959, %v2023
        %v2025 = vpop.f32.mrb[0].mxu0
        %v2026 = vpop.f32.mrb[0].mxu0
        %v2027 = vadd.f32 %v1962, %v2026
        %v2028 = vpop.f32.mrb[0].mxu0
        %2029 = vmatprep.mubr.bf16.mxu0 0
        %2030 = vmatmul.mubr.bf16.gmra.mrb[0].mxu0 %v1069
        %v2031 = vpop.f32.mrb[0].mxu0
        %v2032 = vadd.f32 %v1967, %v2031
        %v2033 = vpop.f32.mrb[0].mxu0
        %v2034 = vpop.f32.mrb[0].mxu0
        %v2035 = vadd.f32 %v1970, %v2034
        %v2036 = vpop.f32.mrb[0].mxu0
        %2037 = vdwg.mxu0
        %v2038 = vadd.f32 %v1685, %v2008
        %v2039 = vadd.f32 %v1688, %v2011
        %v2040 = vadd.f32 %v1693, %v2016
        %v2041 = vadd.f32 %v1696, %v2019
        %v2042 = vadd.f32 %v1701, %v2024
        %v2043 = vadd.f32 %v1704, %v2027
        %v2044 = vadd.f32 %v1709, %v2032
        %v2045 = vadd.f32 %v1712, %v2035
        %v2046 = vld [vmem:[%s5] sm:$0x1]
        %v2048 = vlaneseq
        %v2049 = vshrl.u32 %v2048, 7
        %v2050 = vsub.s32 0, %v2049
        %v2051 = vrot.slane %v2046, %v2050
        %v2053 = vadd.f32 %v2038, %v2051
        %v2054 = vadd.f32 %v2039, %v2051
        %v2055 = vadd.f32 %v2040, %v2051
        %v2056 = vadd.f32 %v2041, %v2051
        %v2057 = vadd.f32 %v2042, %v2051
        %v2058 = vadd.f32 %v2043, %v2051
        %v2059 = vadd.f32 %v2044, %v2051
        %v2060 = vadd.f32 %v2045, %v2051
        %v2061 = vld [vmem:[%s486] sm:$0xff]
        %v2062 = vld [vmem:[%s486 + $0x8] sm:$0xff]
        %v2063 = vld [vmem:[%s486 + $0x10] sm:$0xff]
        %v2064 = vld [vmem:[%s486 + $0x18] sm:$0xff]
        %v2065 = vld [vmem:[%s486 + $0x20] sm:$0xff]
        %v2066 = vld [vmem:[%s486 + $0x28] sm:$0xff]
        %v2067 = vld [vmem:[%s486 + $0x30] sm:$0xff]
        %v2068 = vld [vmem:[%s486 + $0x38] sm:$0xff]
        %v2069 = vadd.f32 %v2053, %v2061
        %v2070 = vadd.f32 %v2054, %v2062
        %v2071 = vadd.f32 %v2055, %v2063
        %v2072 = vadd.f32 %v2056, %v2064
        %v2073 = vadd.f32 %v2057, %v2065
        %v2074 = vadd.f32 %v2058, %v2066
        %v2075 = vadd.f32 %v2059, %v2067
        %v2076 = vadd.f32 %v2060, %v2068
        %2077 = vst [vmem:[%s427] sm:$0xff] %v2069
        %2078 = vst [vmem:[%s427 + $0x8] sm:$0xff] %v2070
        %2079 = vst [vmem:[%s427 + $0x10] sm:$0xff] %v2071
        %2080 = vst [vmem:[%s427 + $0x18] sm:$0xff] %v2072
        %2081 = vst [vmem:[%s427 + $0x20] sm:$0xff] %v2073
        %2082 = vst [vmem:[%s427 + $0x28] sm:$0xff] %v2074
        %2083 = vst [vmem:[%s427 + $0x30] sm:$0xff] %v2075
        %2084 = vst [vmem:[%s427 + $0x38] sm:$0xff] %v2076
        %s2085 = sand.u32 %s239, 1
        %s2086 = scalar_lea.sflag [#allocation3], %s2085
        %s2087 = sand.u32 %s239, 1
        %s2088 = smul.addr %s2087, 64
        %s2089 = scalar_lea.vmem [#allocation2], %s2088
        // Predicated region
        $region49: #{resnet_block_forward.7} parent=47 // pred_check
          %p2090 = pneg %p249
        $region50: #{resnet_block_forward.7} parent=47 // pred_check_branch
          %2092 = sbr.rel (%p2090) target = $region52
        $region51: #{resnet_block_forward.7} parent=47 // pred_region
          %s2093 = smul.u32 8, %s26
          %s2095 = ssub.s32 1024, 1024
          %2096 = vsyncadd %s2086, %s2095
          %s2097 = smul.addr %s25, 32
          %s2098 = sadd.s32 %s2093, %s2097
          %s2099 = smul.addr %s2098, 128
          %s2100 = scalar_lea.hbm %s7, %s2099
          %s2101 = sshll.u32 %s2089, 4
          %s2102 = int_to_ptr.vmem [resolvable:$true] %s2101
          %2107 = dma.vmem_to_hbm [thread:$0]  %s2102, 1024, %s2100, %s2086, 128, 128, 8
        $region52: #{resnet_block_forward.7} parent=47 // pred_fallthru
          _
      $region48: #{resnet_block_forward.7} parent=5 // pred_fallthru
        _
      %p2108 = scmp.le.s32.totalorder 2, %s16
      // Predicated region
      $region53: #{resnet_block_forward.7} parent=5 // pred_check
        %p2109 = pneg %p2108
      $region54: #{resnet_block_forward.7} parent=5 // pred_check_branch
        %2111 = sbr.rel (%p2109) target = $region56
      $region55: #{resnet_block_forward.7} parent=5 // pred_region
        %s2112 = ssub.s32 %s16, 2
        // Predicated region
        $region57: #{resnet_block_forward.7} parent=55 // pred_check
          %p2113 = pneg %p255
        $region58: #{resnet_block_forward.7} parent=55 // pred_check_branch
          %2115 = sbr.rel (%p2113) target = $region60
        $region59: #{resnet_block_forward.7} parent=55 // pred_region
          %s2116 = sand.u32 %s240, 1
          %s2117 = scalar_lea.sflag [#allocation3], %s2116
          %s2118 = sand.u32 %s240, 1
          %s2119 = smul.addr %s2118, 64
          %s2120 = scalar_lea.vmem [#allocation2], %s2119
          %2121 = dma.done %s2117, 1024
        $region60: #{resnet_block_forward.7} parent=55 // pred_fallthru
          _
      $region56: #{resnet_block_forward.7} parent=5 // pred_fallthru
        _
    $region6: #{resnet_block_forward.7} parent=1 // loop_footer
      %s20 = sadd.s32 1, %s16
    $region7: #{resnet_block_forward.7} parent=1 // loop_footer_branch
      %15 = sbr.rel target = $region3
    $region8: #{resnet_block_forward.7} parent=1 // loop_exit
      _
    %2122 = vsyncpa [#allocation3], 1
    %s2123 = scalar_lea.sflag [#allocation3], 1
    %2124 = vsyncpa %s2123, 1

</llo_original>
